<compile_context>
chip_gen: v7x
topology: tpu7x:2x2x1
jax: 0.10.0
libtpu: 0.0.40
codegen_flags: <defaults>
</compile_context>

<pallas_src>
import functools

import jax
import jax.numpy as jnp
from jax.experimental import pallas as pl
from jax.experimental.pallas import tpu as pltpu


def sa_gc_kernel(x_ref, ln_g_ref, ln_b_ref, wqk_ref, bqk_ref,
                 topo_ref, wdall_ref, bn_scale_ref, bn_shift_ref,
                 out_ref, *, n_heads, d_head, scale):
    x = x_ref[...]                                          # (B, V, C) f32
    B, V, C = x.shape
    Cout = out_ref.shape[-1]
    hd = n_heads * d_head

    # --- LayerNorm over channels (f32 VPU/EUP math) -----------------------
    mu = jnp.mean(x, axis=-1, keepdims=True)
    var = jnp.mean((x - mu) ** 2, axis=-1, keepdims=True)
    xn = (x - mu) * jax.lax.rsqrt(var + 1e-5)
    xn = xn * ln_g_ref[...] + ln_b_ref[...]                 # (1, C) broadcasts

    # bf16 MXU operands, f32 accumulation.
    xn_b = xn.astype(jnp.bfloat16)
    x_b = x.astype(jnp.bfloat16)

    # --- q/k projection: one matmul against pre-transposed weight ---------
    qk = jnp.einsum('bvc,cn->bvn', xn_b, wqk_ref[...],
                    preferred_element_type=jnp.float32) + bqk_ref[...]
    q = qk[..., :hd]
    k = qk[..., hd:]

    # --- fused conv_d projection ------------------------------------------
    # (A_h @ x) @ Wd_h^T == A_h @ (x @ Wd_h^T), so all H 1x1 convs become a
    # single K=C, N=H*Cout matmul done once per tile.
    y_all = jnp.einsum('bvc,cn->bvn', x_b, wdall_ref[...],
                       preferred_element_type=jnp.float32)  # (B, V, H*Cout)

    acc = jnp.zeros((B, V, Cout), jnp.float32)
    for h in range(n_heads):                                # H is small (3)
        qh = q[..., h * d_head:(h + 1) * d_head].astype(jnp.bfloat16)
        kh = k[..., h * d_head:(h + 1) * d_head].astype(jnp.bfloat16)
        dots = jnp.einsum('bid,bjd->bij', qh, kh,
                          preferred_element_type=jnp.float32) * scale
        dots = dots - jnp.max(dots, axis=-1, keepdims=True)
        e = jnp.exp(dots)
        attn = e * pl.reciprocal(jnp.sum(e, axis=-1, keepdims=True),
                                 approx=True)
        A = (attn * topo_ref[h]).astype(jnp.bfloat16)       # (B,V,V)*(V,V)
        yh = y_all[..., h * Cout:(h + 1) * Cout].astype(jnp.bfloat16)
        acc = acc + jnp.einsum('bij,bjo->bio', A, yh,
                               preferred_element_type=jnp.float32)

    # --- BN (eval affine, conv_d biases folded) + residual + ReLU ---------
    out = acc * bn_scale_ref[...] + bn_shift_ref[...] + x
    out_ref[...] = jnp.maximum(out, 0.0).astype(out_ref.dtype)


def sa_gc_forward(x_nctv, params, n_heads, d_head, row_block=512):
    N, C, T, V = x_nctv.shape
    Cout = params['wd'].shape[1]
    # TODO(synk): in_channels != out_channels `down` (conv + BN) branch not implemented.
    assert C == Cout, "identity `down` branch only (in_channels == out_channels)"
    HD2 = 2 * n_heads * d_head
    NT = N * T

    # NCHW -> (N*T, V, C).  TODO(synk): at large sizes fold this transpose into
    # the producer (it is a full HBM round trip on its own).
    feat = jnp.transpose(x_nctv, (0, 2, 3, 1)).reshape(NT, V, C)

    # Row-block tiling with a zero-padded ragged tail (rows are independent).
    rb = max(1, min(row_block, NT))
    nt_pad = pl.cdiv(NT, rb) * rb
    if nt_pad != NT:
        feat = jnp.pad(feat, ((0, nt_pad - NT), (0, 0), (0, 0)))
    n_steps = nt_pad // rb

    # ---- one-time host-side parameter prep --------------------------------
    ln_g = params['ln_g'].reshape(1, C)
    ln_b = params['ln_b'].reshape(1, C)
    wqk_t = jnp.transpose(params['wqk']).astype(jnp.bfloat16)          # (C, 2*H*D)
    bqk = params['bqk'].reshape(1, HD2).astype(jnp.float32)
    topo = params['topo'].astype(jnp.float32)                          # (H, V, V)
    # fused conv_d weight: (C, H*Cout), column block h is Wd_h^T
    wd_all = jnp.transpose(params['wd'], (2, 0, 1)).reshape(C, n_heads * Cout)
    wd_all = wd_all.astype(jnp.bfloat16)
    bn_scale = params['bn_g'] / jnp.sqrt(params['bn_rv'] + 1e-5)
    bn_shift = (params['bn_b'] - params['bn_rm'] * bn_scale
                + bn_scale * jnp.sum(params['bd'], axis=0))            # fold conv_d biases
    bn_scale = bn_scale.reshape(1, Cout)
    bn_shift = bn_shift.reshape(1, Cout)

    kernel = functools.partial(sa_gc_kernel, n_heads=n_heads, d_head=d_head,
                               scale=float(d_head) ** -0.5)

    # ---- advisory cost estimate -------------------------------------------
    flops = nt_pad * (2 * V * C * HD2                        # q/k projection
                      + 2 * V * C * n_heads * Cout           # fused conv_d
                      + n_heads * (2 * V * V * d_head        # attention dots
                                   + 2 * V * V * Cout))      # graph mixing
    transcendentals = nt_pad * (n_heads * V * V + V + n_heads * V)
    small_f32 = (ln_g.size + ln_b.size + bqk.size + topo.size
                 + bn_scale.size + bn_shift.size) * 4
    weight_bytes = (wqk_t.size + wd_all.size) * 2 + small_f32
    bytes_accessed = nt_pad * V * (C + Cout) * 4 + n_steps * weight_bytes

    full = lambda a: pl.BlockSpec(a.shape, lambda i: (0,) * a.ndim)

    out_flat = pl.pallas_call(
        kernel,
        out_shape=jax.ShapeDtypeStruct((nt_pad, V, Cout), jnp.float32),
        grid_spec=pltpu.PrefetchScalarGridSpec(
            num_scalar_prefetch=0,
            grid=(n_steps,),
            in_specs=[
                pl.BlockSpec((rb, V, C), lambda i: (i, 0, 0)),
                full(ln_g), full(ln_b),
                full(wqk_t), full(bqk),
                full(topo), full(wd_all),
                full(bn_scale), full(bn_shift),
            ],
            # TODO(synk): a lane-dense (rb, V*Cout) output slab would avoid the
            # 32-lane masked stores but needs a minor-dims value reshape; 3-D
            # blocks kept for Mosaic-lowering robustness.
            out_specs=pl.BlockSpec((rb, V, Cout), lambda i: (i, 0, 0)),
        ),
        compiler_params=pltpu.CompilerParams(
            dimension_semantics=("parallel",),
            vmem_limit_bytes=48 * 1024 * 1024),
        cost_estimate=pl.CostEstimate(flops=int(flops),
                                      transcendentals=int(transcendentals),
                                      bytes_accessed=int(bytes_accessed)),
    )(feat, ln_g, ln_b, wqk_t, bqk, topo, wd_all, bn_scale, bn_shift)

    return out_flat[:NT].reshape(N, T, V, Cout).transpose(0, 3, 1, 2)


def sa_gc_reference(x_nctv, params, n_heads, d_head):
    """Pure-JAX f32 reference mirroring the PyTorch forward (per-head order)."""
    N, C, T, V = x_nctv.shape
    feat = jnp.transpose(x_nctv, (0, 2, 3, 1)).reshape(N * T, V, C)
    mu = feat.mean(-1, keepdims=True)
    var = ((feat - mu) ** 2).mean(-1, keepdims=True)
    xn = (feat - mu) / jnp.sqrt(var + 1e-5) * params['ln_g'] + params['ln_b']
    qk = xn @ params['wqk'].T + params['bqk']
    hd = n_heads * d_head
    q = qk[..., :hd].reshape(N * T, V, n_heads, d_head).transpose(0, 2, 1, 3)
    k = qk[..., hd:].reshape(N * T, V, n_heads, d_head).transpose(0, 2, 1, 3)
    dots = jnp.einsum('bhid,bhjd->bhij', q, k) * (float(d_head) ** -0.5)
    attn = jax.nn.softmax(dots, -1)
    A = attn * params['topo'][None]
    acc = 0.0
    for h in range(n_heads):
        z = jnp.einsum('bij,bjc->bic', A[:, h], feat)
        acc = acc + z @ params['wd'][h].T + params['bd'][h]
    scale = params['bn_g'] / jnp.sqrt(params['bn_rv'] + 1e-5)
    shift = params['bn_b'] - params['bn_rm'] * scale
    out = jnp.maximum(acc * scale + shift + feat, 0.0)
    return out.reshape(N, T, V, -1).transpose(0, 3, 1, 2)


def init_params(key, in_c, out_c, n_heads, V):
    d_head = in_c // 8
    inner2 = 2 * n_heads * d_head
    ks = jax.random.split(key, 5)
    return {
        'ln_g': jnp.ones((in_c,), jnp.float32),
        'ln_b': jnp.zeros((in_c,), jnp.float32),
        # nn.init.normal_(to_qk.weight, 0, 1)
        'wqk': jax.random.normal(ks[0], (inner2, in_c), jnp.float32),
        # default Linear bias init: U(-1/sqrt(fan_in), 1/sqrt(fan_in))
        'bqk': jax.random.uniform(ks[1], (inner2,), jnp.float32,
                                  -1.0 / in_c ** 0.5, 1.0 / in_c ** 0.5),
        # shared topology A: synthetic adjacency (H, V, V)
        'topo': jax.random.uniform(ks[2], (n_heads, V, V), jnp.float32),
        # conv_branch_init: normal(0, sqrt(2/(out_c*1*1*n_heads))), bias = 0
        'wd': jax.random.normal(ks[3], (n_heads, out_c, in_c), jnp.float32)
              * (2.0 / (out_c * n_heads)) ** 0.5,
        'bd': jnp.zeros((n_heads, out_c), jnp.float32),
        # bn_init(bn, 1e-6); inference-mode running stats
        'bn_g': jnp.full((out_c,), 1e-6, jnp.float32),
        'bn_b': jnp.zeros((out_c,), jnp.float32),
        'bn_rm': jnp.zeros((out_c,), jnp.float32),
        'bn_rv': jnp.ones((out_c,), jnp.float32),
    }, d_head


if __name__ == "__main__":
    key = jax.random.PRNGKey(0)
    N, C, T, V = 2, 32, 4, 8          # in_channels == out_channels -> identity down
    n_heads = 3
    kx, kp = jax.random.split(key)
    x = jax.random.normal(kx, (N, C, T, V), jnp.float32)
    params, d_head = init_params(kp, C, C, n_heads, V)

    # 1) module-faithful parameters (bn gamma = 1e-6)
    out = jax.block_until_ready(sa_gc_forward(x, params, n_heads, d_head))
    ref = sa_gc_reference(x, params, n_heads, d_head)
    assert out.shape == (N, C, T, V)
    assert jnp.allclose(out, ref, rtol=1e-2, atol=1e-2), "mismatch vs reference"

    # 2) stress-check the attention / fused-conv path with a non-degenerate BN
    #    gain and a temperate softmax (small row_block forces a multi-step,
    #    zero-padded grid); tolerance reflects bf16 MXU operands.
    stress = dict(params)
    stress['bn_g'] = jnp.ones_like(params['bn_g'])
    stress['wqk'] = params['wqk'] * 0.25
    out_s = jax.block_until_ready(
        sa_gc_forward(x, stress, n_heads, d_head, row_block=3))
    ref_s = sa_gc_reference(x, stress, n_heads, d_head)
    assert jnp.allclose(out_s, ref_s, rtol=5e-2, atol=1e-1), "mismatch (stress)"

    print("KERNEL_OK")
</pallas_src>

<mosaic_0001>
module attributes {stable_mosaic.version = 11 : i64} {
  func.func @sa_gc_kernel(%arg0: i32, %arg1: memref<8x8x32xf32, #tpu.memory_space<vmem>>, %arg2: memref<1x32xf32, #tpu.memory_space<vmem>>, %arg3: memref<1x32xf32, #tpu.memory_space<vmem>>, %arg4: memref<32x24xbf16, #tpu.memory_space<vmem>>, %arg5: memref<1x24xf32, #tpu.memory_space<vmem>>, %arg6: memref<3x8x8xf32, #tpu.memory_space<vmem>>, %arg7: memref<32x96xbf16, #tpu.memory_space<vmem>>, %arg8: memref<1x32xf32, #tpu.memory_space<vmem>>, %arg9: memref<1x32xf32, #tpu.memory_space<vmem>>, %arg10: memref<8x8x32xf32, #tpu.memory_space<vmem>>) attributes {dimension_semantics = [#tpu.dimension_semantics<parallel>], iteration_bounds = array<i64: 1>, scalar_prefetch = 0 : i64, scratch_operands = 0 : i64, tpu.core_type = #tpu.core_type<tc>, window_params = [{transform_indices = @transform_0, window_bounds = array<i64: 8, 8, 32>}, {pipeline_mode = #tpu.pipeline_mode<synchronous>, transform_indices = @transform_1, window_bounds = array<i64: 1, 32>}, {pipeline_mode = #tpu.pipeline_mode<synchronous>, transform_indices = @transform_2, window_bounds = array<i64: 1, 32>}, {pipeline_mode = #tpu.pipeline_mode<synchronous>, transform_indices = @transform_3, window_bounds = array<i64: 32, 24>}, {pipeline_mode = #tpu.pipeline_mode<synchronous>, transform_indices = @transform_4, window_bounds = array<i64: 1, 24>}, {pipeline_mode = #tpu.pipeline_mode<synchronous>, transform_indices = @transform_5, window_bounds = array<i64: 3, 8, 8>}, {pipeline_mode = #tpu.pipeline_mode<synchronous>, transform_indices = @transform_6, window_bounds = array<i64: 32, 96>}, {pipeline_mode = #tpu.pipeline_mode<synchronous>, transform_indices = @transform_7, window_bounds = array<i64: 1, 32>}, {pipeline_mode = #tpu.pipeline_mode<synchronous>, transform_indices = @transform_8, window_bounds = array<i64: 1, 32>}, {transform_indices = @transform_9, window_bounds = array<i64: 8, 8, 32>}]} {
    %c0 = arith.constant 0 : index
    %c0_0 = arith.constant 0 : index
    %c0_1 = arith.constant 0 : index
    %0 = vector.load %arg1[%c0, %c0_0, %c0_1] : memref<8x8x32xf32, #tpu.memory_space<vmem>>, vector<8x8x32xf32>
    %cst = arith.constant dense<0.000000e+00> : vector<8x8xf32>
    %1 = vector.multi_reduction <add>, %0, %cst [2] : vector<8x8x32xf32> to vector<8x8xf32>
    %2 = vector.shape_cast %1 : vector<8x8xf32> to vector<8x8x1xf32>
    %cst_2 = arith.constant 3.200000e+01 : f32
    %3 = vector.broadcast %cst_2 : f32 to vector<8x8x1xf32>
    %4 = arith.divf %2, %3 : vector<8x8x1xf32>
    %5 = vector.broadcast %4 : vector<8x8x1xf32> to vector<8x8x32xf32>
    %6 = arith.subf %0, %5 : vector<8x8x32xf32>
    %7 = arith.mulf %6, %6 : vector<8x8x32xf32>
    %cst_3 = arith.constant dense<0.000000e+00> : vector<8x8xf32>
    %8 = vector.multi_reduction <add>, %7, %cst_3 [2] : vector<8x8x32xf32> to vector<8x8xf32>
    %9 = vector.shape_cast %8 : vector<8x8xf32> to vector<8x8x1xf32>
    %cst_4 = arith.constant 3.200000e+01 : f32
    %10 = vector.broadcast %cst_4 : f32 to vector<8x8x1xf32>
    %11 = arith.divf %9, %10 : vector<8x8x1xf32>
    %12 = vector.broadcast %4 : vector<8x8x1xf32> to vector<8x8x32xf32>
    %13 = arith.subf %0, %12 : vector<8x8x32xf32>
    %cst_5 = arith.constant 9.99999974E-6 : f32
    %14 = vector.broadcast %cst_5 : f32 to vector<8x8x1xf32>
    %15 = arith.addf %11, %14 : vector<8x8x1xf32>
    %16 = math.rsqrt %15 : vector<8x8x1xf32>
    %17 = vector.broadcast %16 : vector<8x8x1xf32> to vector<8x8x32xf32>
    %18 = arith.mulf %13, %17 : vector<8x8x32xf32>
    %c0_6 = arith.constant 0 : index
    %c0_7 = arith.constant 0 : index
    %19 = vector.load %arg2[%c0_6, %c0_7] : memref<1x32xf32, #tpu.memory_space<vmem>>, vector<1x32xf32>
    %20 = vector.shape_cast %19 : vector<1x32xf32> to vector<1x1x32xf32>
    %21 = vector.broadcast %20 : vector<1x1x32xf32> to vector<8x8x32xf32>
    %22 = arith.mulf %18, %21 : vector<8x8x32xf32>
    %c0_8 = arith.constant 0 : index
    %c0_9 = arith.constant 0 : index
    %23 = vector.load %arg3[%c0_8, %c0_9] : memref<1x32xf32, #tpu.memory_space<vmem>>, vector<1x32xf32>
    %24 = vector.shape_cast %23 : vector<1x32xf32> to vector<1x1x32xf32>
    %25 = vector.broadcast %24 : vector<1x1x32xf32> to vector<8x8x32xf32>
    %26 = arith.addf %22, %25 : vector<8x8x32xf32>
    %27 = arith.truncf %26 : vector<8x8x32xf32> to vector<8x8x32xbf16>
    %28 = arith.truncf %0 : vector<8x8x32xf32> to vector<8x8x32xbf16>
    %c0_10 = arith.constant 0 : index
    %c0_11 = arith.constant 0 : index
    %29 = vector.load %arg4[%c0_10, %c0_11] : memref<32x24xbf16, #tpu.memory_space<vmem>>, vector<32x24xbf16>
    "tpu.trace_start"() <{level = 10 : i32, message = "bvc,cn->bvn"}> : () -> ()
    %cst_12 = arith.constant dense<0.000000e+00> : vector<8x8x24xf32>
    %30 = tpu.matmul %27, %29, %cst_12 {dimension_numbers = #tpu.dot_dimension_numbers<[2], [0], [0, 1], [1], [0, 0, 0, 1, 1, 1], [], []>} : vector<8x8x32xbf16>, vector<32x24xbf16>, vector<8x8x24xf32> -> vector<8x8x24xf32>
    "tpu.trace_stop"() : () -> ()
    %c0_13 = arith.constant 0 : index
    %c0_14 = arith.constant 0 : index
    %31 = vector.load %arg5[%c0_13, %c0_14] : memref<1x24xf32, #tpu.memory_space<vmem>>, vector<1x24xf32>
    %32 = vector.shape_cast %31 : vector<1x24xf32> to vector<1x1x24xf32>
    %33 = vector.broadcast %32 : vector<1x1x24xf32> to vector<8x8x24xf32>
    %34 = arith.addf %30, %33 : vector<8x8x24xf32>
    %35 = vector.extract_strided_slice %34 {offsets = [0, 0, 0], sizes = [8, 8, 12], strides = [1, 1, 1]} : vector<8x8x24xf32> to vector<8x8x12xf32>
    %36 = vector.extract_strided_slice %34 {offsets = [0, 0, 12], sizes = [8, 8, 12], strides = [1, 1, 1]} : vector<8x8x24xf32> to vector<8x8x12xf32>
    %c0_15 = arith.constant 0 : index
    %c0_16 = arith.constant 0 : index
    %37 = vector.load %arg7[%c0_15, %c0_16] : memref<32x96xbf16, #tpu.memory_space<vmem>>, vector<32x96xbf16>
    "tpu.trace_start"() <{level = 10 : i32, message = "bvc,cn->bvn"}> : () -> ()
    %cst_17 = arith.constant dense<0.000000e+00> : vector<8x8x96xf32>
    %38 = tpu.matmul %28, %37, %cst_17 {dimension_numbers = #tpu.dot_dimension_numbers<[2], [0], [0, 1], [1], [0, 0, 0, 1, 1, 1], [], []>} : vector<8x8x32xbf16>, vector<32x96xbf16>, vector<8x8x96xf32> -> vector<8x8x96xf32>
    %cst_18 = arith.constant 0.000000e+00 : f32
    "tpu.trace_stop"() : () -> ()
    %39 = vector.broadcast %cst_18 : f32 to vector<8x8x32xf32>
    %40 = vector.extract_strided_slice %35 {offsets = [0, 0, 0], sizes = [8, 8, 4], strides = [1, 1, 1]} : vector<8x8x12xf32> to vector<8x8x4xf32>
    %41 = arith.truncf %40 : vector<8x8x4xf32> to vector<8x8x4xbf16>
    %42 = vector.extract_strided_slice %36 {offsets = [0, 0, 0], sizes = [8, 8, 4], strides = [1, 1, 1]} : vector<8x8x12xf32> to vector<8x8x4xf32>
    %43 = arith.truncf %42 : vector<8x8x4xf32> to vector<8x8x4xbf16>
    "tpu.trace_start"() <{level = 10 : i32, message = "bid,bjd->bij"}> : () -> ()
    %cst_19 = arith.constant dense<0.000000e+00> : vector<8x8x8xf32>
    %44 = tpu.matmul %41, %43, %cst_19 {dimension_numbers = #tpu.dot_dimension_numbers<[2], [2], [1], [1], [0, 0, 0, 1, 1, 1], [0], [0]>} : vector<8x8x4xbf16>, vector<8x8x4xbf16>, vector<8x8x8xf32> -> vector<8x8x8xf32>
    "tpu.trace_stop"() : () -> ()
    %cst_20 = arith.constant 5.000000e-01 : f32
    %45 = vector.broadcast %cst_20 : f32 to vector<8x8x8xf32>
    %46 = arith.mulf %44, %45 : vector<8x8x8xf32>
    %cst_21 = arith.constant dense<0xFF800000> : vector<8x8xf32>
    %47 = vector.multi_reduction <maximumf>, %46, %cst_21 [2] : vector<8x8x8xf32> to vector<8x8xf32>
    %48 = vector.shape_cast %47 : vector<8x8xf32> to vector<8x8x1xf32>
    %49 = vector.broadcast %48 : vector<8x8x1xf32> to vector<8x8x8xf32>
    %50 = arith.subf %46, %49 : vector<8x8x8xf32>
    %51 = math.exp %50 : vector<8x8x8xf32>
    %cst_22 = arith.constant dense<0.000000e+00> : vector<8x8xf32>
    %52 = vector.multi_reduction <add>, %51, %cst_22 [2] : vector<8x8x8xf32> to vector<8x8xf32>
    %53 = vector.shape_cast %52 : vector<8x8xf32> to vector<8x8x1xf32>
    %54 = tpu.reciprocal %53 {approx = true} : vector<8x8x1xf32> -> vector<8x8x1xf32>
    %55 = vector.broadcast %54 : vector<8x8x1xf32> to vector<8x8x8xf32>
    %56 = arith.mulf %51, %55 : vector<8x8x8xf32>
    %c0_23 = arith.constant 0 : index
    %c0_24 = arith.constant 0 : index
    %c0_25 = arith.constant 0 : index
    %57 = vector.load %arg6[%c0_23, %c0_24, %c0_25] : memref<3x8x8xf32, #tpu.memory_space<vmem>>, vector<1x8x8xf32>
    %58 = vector.shape_cast %57 : vector<1x8x8xf32> to vector<8x8xf32>
    %59 = vector.shape_cast %58 : vector<8x8xf32> to vector<1x8x8xf32>
    %60 = vector.broadcast %59 : vector<1x8x8xf32> to vector<8x8x8xf32>
    %61 = arith.mulf %56, %60 : vector<8x8x8xf32>
    %62 = arith.truncf %61 : vector<8x8x8xf32> to vector<8x8x8xbf16>
    %63 = vector.extract_strided_slice %38 {offsets = [0, 0, 0], sizes = [8, 8, 32], strides = [1, 1, 1]} : vector<8x8x96xf32> to vector<8x8x32xf32>
    %64 = arith.truncf %63 : vector<8x8x32xf32> to vector<8x8x32xbf16>
    "tpu.trace_start"() <{level = 10 : i32, message = "bij,bjo->bio"}> : () -> ()
    %cst_26 = arith.constant dense<0.000000e+00> : vector<8x8x32xf32>
    %65 = tpu.matmul %62, %64, %cst_26 {dimension_numbers = #tpu.dot_dimension_numbers<[2], [1], [1], [2], [0, 0, 0, 1, 1, 2], [0], [0]>} : vector<8x8x8xbf16>, vector<8x8x32xbf16>, vector<8x8x32xf32> -> vector<8x8x32xf32>
    "tpu.trace_stop"() : () -> ()
    %66 = arith.addf %39, %65 : vector<8x8x32xf32>
    %67 = vector.extract_strided_slice %35 {offsets = [0, 0, 4], sizes = [8, 8, 4], strides = [1, 1, 1]} : vector<8x8x12xf32> to vector<8x8x4xf32>
    %68 = arith.truncf %67 : vector<8x8x4xf32> to vector<8x8x4xbf16>
    %69 = vector.extract_strided_slice %36 {offsets = [0, 0, 4], sizes = [8, 8, 4], strides = [1, 1, 1]} : vector<8x8x12xf32> to vector<8x8x4xf32>
    %70 = arith.truncf %69 : vector<8x8x4xf32> to vector<8x8x4xbf16>
    "tpu.trace_start"() <{level = 10 : i32, message = "bid,bjd->bij"}> : () -> ()
    %cst_27 = arith.constant dense<0.000000e+00> : vector<8x8x8xf32>
    %71 = tpu.matmul %68, %70, %cst_27 {dimension_numbers = #tpu.dot_dimension_numbers<[2], [2], [1], [1], [0, 0, 0, 1, 1, 1], [0], [0]>} : vector<8x8x4xbf16>, vector<8x8x4xbf16>, vector<8x8x8xf32> -> vector<8x8x8xf32>
    "tpu.trace_stop"() : () -> ()
    %cst_28 = arith.constant 5.000000e-01 : f32
    %72 = vector.broadcast %cst_28 : f32 to vector<8x8x8xf32>
    %73 = arith.mulf %71, %72 : vector<8x8x8xf32>
    %cst_29 = arith.constant dense<0xFF800000> : vector<8x8xf32>
    %74 = vector.multi_reduction <maximumf>, %73, %cst_29 [2] : vector<8x8x8xf32> to vector<8x8xf32>
    %75 = vector.shape_cast %74 : vector<8x8xf32> to vector<8x8x1xf32>
    %76 = vector.broadcast %75 : vector<8x8x1xf32> to vector<8x8x8xf32>
    %77 = arith.subf %73, %76 : vector<8x8x8xf32>
    %78 = math.exp %77 : vector<8x8x8xf32>
    %cst_30 = arith.constant dense<0.000000e+00> : vector<8x8xf32>
    %79 = vector.multi_reduction <add>, %78, %cst_30 [2] : vector<8x8x8xf32> to vector<8x8xf32>
    %80 = vector.shape_cast %79 : vector<8x8xf32> to vector<8x8x1xf32>
    %81 = tpu.reciprocal %80 {approx = true} : vector<8x8x1xf32> -> vector<8x8x1xf32>
    %82 = vector.broadcast %81 : vector<8x8x1xf32> to vector<8x8x8xf32>
    %83 = arith.mulf %78, %82 : vector<8x8x8xf32>
    %c1 = arith.constant 1 : index
    %c0_31 = arith.constant 0 : index
    %c0_32 = arith.constant 0 : index
    %84 = vector.load %arg6[%c1, %c0_31, %c0_32] : memref<3x8x8xf32, #tpu.memory_space<vmem>>, vector<1x8x8xf32>
    %85 = vector.shape_cast %84 : vector<1x8x8xf32> to vector<8x8xf32>
    %86 = vector.shape_cast %85 : vector<8x8xf32> to vector<1x8x8xf32>
    %87 = vector.broadcast %86 : vector<1x8x8xf32> to vector<8x8x8xf32>
    %88 = arith.mulf %83, %87 : vector<8x8x8xf32>
    %89 = arith.truncf %88 : vector<8x8x8xf32> to vector<8x8x8xbf16>
    %90 = vector.extract_strided_slice %38 {offsets = [0, 0, 32], sizes = [8, 8, 32], strides = [1, 1, 1]} : vector<8x8x96xf32> to vector<8x8x32xf32>
    %91 = arith.truncf %90 : vector<8x8x32xf32> to vector<8x8x32xbf16>
    "tpu.trace_start"() <{level = 10 : i32, message = "bij,bjo->bio"}> : () -> ()
    %cst_33 = arith.constant dense<0.000000e+00> : vector<8x8x32xf32>
    %92 = tpu.matmul %89, %91, %cst_33 {dimension_numbers = #tpu.dot_dimension_numbers<[2], [1], [1], [2], [0, 0, 0, 1, 1, 2], [0], [0]>} : vector<8x8x8xbf16>, vector<8x8x32xbf16>, vector<8x8x32xf32> -> vector<8x8x32xf32>
    "tpu.trace_stop"() : () -> ()
    %93 = arith.addf %66, %92 : vector<8x8x32xf32>
    %94 = vector.extract_strided_slice %35 {offsets = [0, 0, 8], sizes = [8, 8, 4], strides = [1, 1, 1]} : vector<8x8x12xf32> to vector<8x8x4xf32>
    %95 = arith.truncf %94 : vector<8x8x4xf32> to vector<8x8x4xbf16>
    %96 = vector.extract_strided_slice %36 {offsets = [0, 0, 8], sizes = [8, 8, 4], strides = [1, 1, 1]} : vector<8x8x12xf32> to vector<8x8x4xf32>
    %97 = arith.truncf %96 : vector<8x8x4xf32> to vector<8x8x4xbf16>
    "tpu.trace_start"() <{level = 10 : i32, message = "bid,bjd->bij"}> : () -> ()
    %cst_34 = arith.constant dense<0.000000e+00> : vector<8x8x8xf32>
    %98 = tpu.matmul %95, %97, %cst_34 {dimension_numbers = #tpu.dot_dimension_numbers<[2], [2], [1], [1], [0, 0, 0, 1, 1, 1], [0], [0]>} : vector<8x8x4xbf16>, vector<8x8x4xbf16>, vector<8x8x8xf32> -> vector<8x8x8xf32>
    "tpu.trace_stop"() : () -> ()
    %cst_35 = arith.constant 5.000000e-01 : f32
    %99 = vector.broadcast %cst_35 : f32 to vector<8x8x8xf32>
    %100 = arith.mulf %98, %99 : vector<8x8x8xf32>
    %cst_36 = arith.constant dense<0xFF800000> : vector<8x8xf32>
    %101 = vector.multi_reduction <maximumf>, %100, %cst_36 [2] : vector<8x8x8xf32> to vector<8x8xf32>
    %102 = vector.shape_cast %101 : vector<8x8xf32> to vector<8x8x1xf32>
    %103 = vector.broadcast %102 : vector<8x8x1xf32> to vector<8x8x8xf32>
    %104 = arith.subf %100, %103 : vector<8x8x8xf32>
    %105 = math.exp %104 : vector<8x8x8xf32>
    %cst_37 = arith.constant dense<0.000000e+00> : vector<8x8xf32>
    %106 = vector.multi_reduction <add>, %105, %cst_37 [2] : vector<8x8x8xf32> to vector<8x8xf32>
    %107 = vector.shape_cast %106 : vector<8x8xf32> to vector<8x8x1xf32>
    %108 = tpu.reciprocal %107 {approx = true} : vector<8x8x1xf32> -> vector<8x8x1xf32>
    %109 = vector.broadcast %108 : vector<8x8x1xf32> to vector<8x8x8xf32>
    %110 = arith.mulf %105, %109 : vector<8x8x8xf32>
    %c2 = arith.constant 2 : index
    %c0_38 = arith.constant 0 : index
    %c0_39 = arith.constant 0 : index
    %111 = vector.load %arg6[%c2, %c0_38, %c0_39] : memref<3x8x8xf32, #tpu.memory_space<vmem>>, vector<1x8x8xf32>
    %112 = vector.shape_cast %111 : vector<1x8x8xf32> to vector<8x8xf32>
    %113 = vector.shape_cast %112 : vector<8x8xf32> to vector<1x8x8xf32>
    %114 = vector.broadcast %113 : vector<1x8x8xf32> to vector<8x8x8xf32>
    %115 = arith.mulf %110, %114 : vector<8x8x8xf32>
    %116 = arith.truncf %115 : vector<8x8x8xf32> to vector<8x8x8xbf16>
    %117 = vector.extract_strided_slice %38 {offsets = [0, 0, 64], sizes = [8, 8, 32], strides = [1, 1, 1]} : vector<8x8x96xf32> to vector<8x8x32xf32>
    %118 = arith.truncf %117 : vector<8x8x32xf32> to vector<8x8x32xbf16>
    "tpu.trace_start"() <{level = 10 : i32, message = "bij,bjo->bio"}> : () -> ()
    %cst_40 = arith.constant dense<0.000000e+00> : vector<8x8x32xf32>
    %119 = tpu.matmul %116, %118, %cst_40 {dimension_numbers = #tpu.dot_dimension_numbers<[2], [1], [1], [2], [0, 0, 0, 1, 1, 2], [0], [0]>} : vector<8x8x8xbf16>, vector<8x8x32xbf16>, vector<8x8x32xf32> -> vector<8x8x32xf32>
    "tpu.trace_stop"() : () -> ()
    %120 = arith.addf %93, %119 : vector<8x8x32xf32>
    %c0_41 = arith.constant 0 : index
    %c0_42 = arith.constant 0 : index
    %121 = vector.load %arg8[%c0_41, %c0_42] : memref<1x32xf32, #tpu.memory_space<vmem>>, vector<1x32xf32>
    %122 = vector.shape_cast %121 : vector<1x32xf32> to vector<1x1x32xf32>
    %123 = vector.broadcast %122 : vector<1x1x32xf32> to vector<8x8x32xf32>
    %124 = arith.mulf %120, %123 : vector<8x8x32xf32>
    %c0_43 = arith.constant 0 : index
    %c0_44 = arith.constant 0 : index
    %125 = vector.load %arg9[%c0_43, %c0_44] : memref<1x32xf32, #tpu.memory_space<vmem>>, vector<1x32xf32>
    %126 = vector.shape_cast %125 : vector<1x32xf32> to vector<1x1x32xf32>
    %127 = vector.broadcast %126 : vector<1x1x32xf32> to vector<8x8x32xf32>
    %128 = arith.addf %124, %127 : vector<8x8x32xf32>
    %129 = arith.addf %128, %0 : vector<8x8x32xf32>
    %cst_45 = arith.constant 0.000000e+00 : f32
    %130 = vector.broadcast %cst_45 : f32 to vector<8x8x32xf32>
    %131 = arith.maximumf %129, %130 : vector<8x8x32xf32>
    %c0_46 = arith.constant 0 : index
    %c0_47 = arith.constant 0 : index
    %c0_48 = arith.constant 0 : index
    %132 = vector.load %arg10[%c0_46, %c0_47, %c0_48] : memref<8x8x32xf32, #tpu.memory_space<vmem>>, vector<8x8x32xf32>
    tpu.vector_store %arg10[%c0_46, %c0_47, %c0_48], %131 {strides = array<i32>} : memref<8x8x32xf32, #tpu.memory_space<vmem>>, vector<8x8x32xf32>,
    return
  }
  func.func @transform_0(%arg0: i32) -> (i32, i32, i32) {
    %c0_i32 = arith.constant 0 : i32
    %c0_i32_0 = arith.constant 0 : i32
    %c0_i32_1 = arith.constant 0 : i32
    return %arg0, %c0_i32, %c0_i32_0 : i32, i32, i32
  }
  func.func @transform_1(%arg0: i32) -> (i32, i32) {
    %c0_i32 = arith.constant 0 : i32
    %c0_i32_0 = arith.constant 0 : i32
    %c0_i32_1 = arith.constant 0 : i32
    return %c0_i32, %c0_i32_0 : i32, i32
  }
  func.func @transform_2(%arg0: i32) -> (i32, i32) {
    %c0_i32 = arith.constant 0 : i32
    %c0_i32_0 = arith.constant 0 : i32
    %c0_i32_1 = arith.constant 0 : i32
    return %c0_i32, %c0_i32_0 : i32, i32
  }
  func.func @transform_3(%arg0: i32) -> (i32, i32) {
    %c0_i32 = arith.constant 0 : i32
    %c0_i32_0 = arith.constant 0 : i32
    %c0_i32_1 = arith.constant 0 : i32
    return %c0_i32, %c0_i32_0 : i32, i32
  }
  func.func @transform_4(%arg0: i32) -> (i32, i32) {
    %c0_i32 = arith.constant 0 : i32
    %c0_i32_0 = arith.constant 0 : i32
    %c0_i32_1 = arith.constant 0 : i32
    return %c0_i32, %c0_i32_0 : i32, i32
  }
  func.func @transform_5(%arg0: i32) -> (i32, i32, i32) {
    %c0_i32 = arith.constant 0 : i32
    %c0_i32_0 = arith.constant 0 : i32
    %c0_i32_1 = arith.constant 0 : i32
    %c0_i32_2 = arith.constant 0 : i32
    return %c0_i32, %c0_i32_0, %c0_i32_1 : i32, i32, i32
  }
  func.func @transform_6(%arg0: i32) -> (i32, i32) {
    %c0_i32 = arith.constant 0 : i32
    %c0_i32_0 = arith.constant 0 : i32
    %c0_i32_1 = arith.constant 0 : i32
    return %c0_i32, %c0_i32_0 : i32, i32
  }
  func.func @transform_7(%arg0: i32) -> (i32, i32) {
    %c0_i32 = arith.constant 0 : i32
    %c0_i32_0 = arith.constant 0 : i32
    %c0_i32_1 = arith.constant 0 : i32
    return %c0_i32, %c0_i32_0 : i32, i32
  }
  func.func @transform_8(%arg0: i32) -> (i32, i32) {
    %c0_i32 = arith.constant 0 : i32
    %c0_i32_0 = arith.constant 0 : i32
    %c0_i32_1 = arith.constant 0 : i32
    return %c0_i32, %c0_i32_0 : i32, i32
  }
  func.func @transform_9(%arg0: i32) -> (i32, i32, i32) {
    %c0_i32 = arith.constant 0 : i32
    %c0_i32_0 = arith.constant 0 : i32
    %c0_i32_1 = arith.constant 0 : i32
    return %arg0, %c0_i32, %c0_i32_0 : i32, i32, i32
  }
}

</mosaic_0001>

<llo_original>
// kernel: tpu_custom_call.1
$region0: #{tpu_custom_call.1}
  #allocation0 [shape = 'u32[]', space=smem, size = 0x4, offset = 0x4, fixed_abs, tag = 'smem constant byte address 0x4 - core index']
  #allocation1 [shape = 'u32[144,128]{1,0:T(1,128)}', space=vmem, size = 0x12000, scoped, tag = 'internal scratch']
  %s0 = inlined_call_operand.hbm [shape: f32[8,8,32], index: 0, kind: input, shape index: {}]
  %s1 = inlined_call_operand.vmem [shape: f32[1,32], index: 1, kind: input, shape index: {}]
  %s2 = inlined_call_operand.vmem [shape: f32[1,32], index: 2, kind: input, shape index: {}]
  %s3 = inlined_call_operand.vmem [shape: bf16[32,24], index: 3, kind: input, shape index: {}]
  %s4 = inlined_call_operand.vmem [shape: f32[1,24], index: 4, kind: input, shape index: {}]
  %s5 = inlined_call_operand.vmem [shape: f32[3,8,8], index: 5, kind: input, shape index: {}]
  %s6 = inlined_call_operand.vmem [shape: bf16[32,96], index: 6, kind: input, shape index: {}]
  %s7 = inlined_call_operand.vmem [shape: f32[1,32], index: 7, kind: input, shape index: {}]
  %s8 = inlined_call_operand.vmem [shape: f32[1,32], index: 8, kind: input, shape index: {}]
  %s9 = inlined_call_operand.hbm [shape: f32[8,8,32], index: 9, kind: output, shape index: {}]
  %s10 = sld [smem:[#allocation0]]
  $region50: #{tpu_custom_call.1} parent=0
    _
  %s12 = ssub.s32 1, %s10
  %s13 = scalar_select 0, %s12, %s10
  $region1: #{tpu_custom_call.1} parent=0
    #allocation2 [shape = 'u8[32768]{0}', space=vmem, size = 0x8000, scoped, tag = 'input window, operand 0, single buffered']
    #allocation3 [shape = 's32[1]{0}', space=sflag, size = 0x4, scoped, tag = 'scoped memory for tpu_custom_call.1']
    #allocation4 [shape = 's32[1]{0}', space=sflag, size = 0x4, scoped, tag = 'scoped memory for tpu_custom_call.1']
    #allocation5 [shape = 'u8[32768]{0}', space=vmem, size = 0x8000, scoped, tag = 'output window, operand 0, single buffered']
    %14 = vsyncpa [#allocation3], 0
    %15 = vsyncpa [#allocation4], 0
    // Predicated region
    $region2: #{tpu_custom_call.1} parent=1 // pred_check
      _
    $region3: #{tpu_custom_call.1} parent=1 // pred_check_branch
      %17 = sbr.rel (0) target = $region5
    $region4: #{tpu_custom_call.1} parent=1 // pred_region
      %s19 = ssub.s32 1024, 1024
      %20 = vsyncadd [#allocation3], %s19
      %s21 = sshll.u32 [#allocation2], 4
      %s22 = int_to_ptr.vmem [resolvable:$true] %s21
      %27 = dma.hbm_to_vmem [thread:$0]  %s0, 1024, %s22, [#allocation3], 128, 128, 8
    $region5: #{tpu_custom_call.1} parent=1 // pred_fallthru
      _
    // Predicated region
    $region6: #{tpu_custom_call.1} parent=1 // pred_check
      _
    $region7: #{tpu_custom_call.1} parent=1 // pred_check_branch
      %29 = sbr.rel (0) target = $region9
    $region8: #{tpu_custom_call.1} parent=1 // pred_region
      _
    $region9: #{tpu_custom_call.1} parent=1 // pred_fallthru
      _
    // Predicated region
    $region10: #{tpu_custom_call.1} parent=1 // pred_check
      _
    $region11: #{tpu_custom_call.1} parent=1 // pred_check_branch
      %31 = sbr.rel (0) target = $region13
    $region12: #{tpu_custom_call.1} parent=1 // pred_region
      _
    $region13: #{tpu_custom_call.1} parent=1 // pred_fallthru
      _
    // Predicated region
    $region14: #{tpu_custom_call.1} parent=1 // pred_check
      _
    $region15: #{tpu_custom_call.1} parent=1 // pred_check_branch
      %33 = sbr.rel (0) target = $region17
    $region16: #{tpu_custom_call.1} parent=1 // pred_region
      _
    $region17: #{tpu_custom_call.1} parent=1 // pred_fallthru
      _
    // Predicated region
    $region18: #{tpu_custom_call.1} parent=1 // pred_check
      _
    $region19: #{tpu_custom_call.1} parent=1 // pred_check_branch
      %35 = sbr.rel (0) target = $region21
    $region20: #{tpu_custom_call.1} parent=1 // pred_region
      _
    $region21: #{tpu_custom_call.1} parent=1 // pred_fallthru
      _
    // Predicated region
    $region22: #{tpu_custom_call.1} parent=1 // pred_check
      _
    $region23: #{tpu_custom_call.1} parent=1 // pred_check_branch
      %37 = sbr.rel (0) target = $region25
    $region24: #{tpu_custom_call.1} parent=1 // pred_region
      _
    $region25: #{tpu_custom_call.1} parent=1 // pred_fallthru
      _
    // Predicated region
    $region26: #{tpu_custom_call.1} parent=1 // pred_check
      _
    $region27: #{tpu_custom_call.1} parent=1 // pred_check_branch
      %39 = sbr.rel (0) target = $region29
    $region28: #{tpu_custom_call.1} parent=1 // pred_region
      _
    $region29: #{tpu_custom_call.1} parent=1 // pred_fallthru
      _
    // Predicated region
    $region30: #{tpu_custom_call.1} parent=1 // pred_check
      _
    $region31: #{tpu_custom_call.1} parent=1 // pred_check_branch
      %41 = sbr.rel (0) target = $region33
    $region32: #{tpu_custom_call.1} parent=1 // pred_region
      _
    $region33: #{tpu_custom_call.1} parent=1 // pred_fallthru
      _
    // Predicated region
    $region34: #{tpu_custom_call.1} parent=1 // pred_check
      _
    $region35: #{tpu_custom_call.1} parent=1 // pred_check_branch
      %43 = sbr.rel (0) target = $region37
    $region36: #{tpu_custom_call.1} parent=1 // pred_region
      _
    $region37: #{tpu_custom_call.1} parent=1 // pred_fallthru
      _
    // Predicated region
    $region38: #{tpu_custom_call.1} parent=1 // pred_check
      _
    $region39: #{tpu_custom_call.1} parent=1 // pred_check_branch
      %45 = sbr.rel (0) target = $region41
    $region40: #{tpu_custom_call.1} parent=1 // pred_region
      %46 = dma.done [#allocation3], 1024
    $region41: #{tpu_custom_call.1} parent=1 // pred_fallthru
      _
    %v48 = vld [vmem:[#allocation2] sm:$0xff]
    %v49 = vld [vmem:[#allocation2 + $0x8] sm:$0xff]
    %v50 = vld [vmem:[#allocation2 + $0x10] sm:$0xff]
    %v51 = vld [vmem:[#allocation2 + $0x18] sm:$0xff]
    %v52 = vld [vmem:[#allocation2 + $0x20] sm:$0xff]
    %v53 = vld [vmem:[#allocation2 + $0x28] sm:$0xff]
    %v54 = vld [vmem:[#allocation2 + $0x30] sm:$0xff]
    %v55 = vld [vmem:[#allocation2 + $0x38] sm:$0xff]
    %vm56 = vcmask 261120
    %v57 = vsel %vm56, %v48, 0.0
    %58 = vadd.xlane.f32.xlu0 %v57
    %v59 = vpop.xlane.xlu0 %58
    %v60 = vsel %vm56, %v49, 0.0
    %61 = vadd.xlane.f32.xlu0 %v60
    %v62 = vpop.xlane.xlu0 %61
    %v63 = vsel %vm56, %v50, 0.0
    %64 = vadd.xlane.f32.xlu0 %v63
    %v65 = vpop.xlane.xlu0 %64
    %v66 = vsel %vm56, %v51, 0.0
    %67 = vadd.xlane.f32.xlu0 %v66
    %v68 = vpop.xlane.xlu0 %67
    %v69 = vsel %vm56, %v52, 0.0
    %70 = vadd.xlane.f32.xlu0 %v69
    %v71 = vpop.xlane.xlu0 %70
    %v72 = vsel %vm56, %v53, 0.0
    %73 = vadd.xlane.f32.xlu0 %v72
    %v74 = vpop.xlane.xlu0 %73
    %v75 = vsel %vm56, %v54, 0.0
    %76 = vadd.xlane.f32.xlu0 %v75
    %v77 = vpop.xlane.xlu0 %76
    %v78 = vsel %vm56, %v55, 0.0
    %79 = vadd.xlane.f32.xlu0 %v78
    %v80 = vpop.xlane.xlu0 %79
    %v81 = vrcp.pop 32.0
    %v82 = vmul.f32 %v59, %v81
    %v83 = vmul.f32 %v62, %v81
    %v84 = vmul.f32 %v65, %v81
    %v85 = vmul.f32 %v68, %v81
    %v86 = vmul.f32 %v71, %v81
    %v87 = vmul.f32 %v74, %v81
    %v88 = vmul.f32 %v77, %v81
    %v89 = vmul.f32 %v80, %v81
    %v90 = vsub.f32 %v48, %v82
    %v91 = vsub.f32 %v49, %v83
    %v92 = vsub.f32 %v50, %v84
    %v93 = vsub.f32 %v51, %v85
    %v94 = vsub.f32 %v52, %v86
    %v95 = vsub.f32 %v53, %v87
    %v96 = vsub.f32 %v54, %v88
    %v97 = vsub.f32 %v55, %v89
    %v98 = vmul.f32 %v90, %v90
    %v99 = vmul.f32 %v91, %v91
    %v100 = vmul.f32 %v92, %v92
    %v101 = vmul.f32 %v93, %v93
    %v102 = vmul.f32 %v94, %v94
    %v103 = vmul.f32 %v95, %v95
    %v104 = vmul.f32 %v96, %v96
    %v105 = vmul.f32 %v97, %v97
    %v106 = vsel %vm56, %v98, 0.0
    %107 = vadd.xlane.f32.xlu0 %v106
    %v108 = vpop.xlane.xlu0 %107
    %v109 = vsel %vm56, %v99, 0.0
    %110 = vadd.xlane.f32.xlu0 %v109
    %v111 = vpop.xlane.xlu0 %110
    %v112 = vsel %vm56, %v100, 0.0
    %113 = vadd.xlane.f32.xlu0 %v112
    %v114 = vpop.xlane.xlu0 %113
    %v115 = vsel %vm56, %v101, 0.0
    %116 = vadd.xlane.f32.xlu0 %v115
    %v117 = vpop.xlane.xlu0 %116
    %v118 = vsel %vm56, %v102, 0.0
    %119 = vadd.xlane.f32.xlu0 %v118
    %v120 = vpop.xlane.xlu0 %119
    %v121 = vsel %vm56, %v103, 0.0
    %122 = vadd.xlane.f32.xlu0 %v121
    %v123 = vpop.xlane.xlu0 %122
    %v124 = vsel %vm56, %v104, 0.0
    %125 = vadd.xlane.f32.xlu0 %v124
    %v126 = vpop.xlane.xlu0 %125
    %v127 = vsel %vm56, %v105, 0.0
    %128 = vadd.xlane.f32.xlu0 %v127
    %v129 = vpop.xlane.xlu0 %128
    %v130 = vmul.f32 %v108, %v81
    %v131 = vmul.f32 %v111, %v81
    %v132 = vmul.f32 %v114, %v81
    %v133 = vmul.f32 %v117, %v81
    %v134 = vmul.f32 %v120, %v81
    %v135 = vmul.f32 %v123, %v81
    %v136 = vmul.f32 %v126, %v81
    %v137 = vmul.f32 %v129, %v81
    %v138 = vadd.f32 %v130, 1e-05
    %v139 = vadd.f32 %v131, 1e-05
    %v140 = vadd.f32 %v132, 1e-05
    %v141 = vadd.f32 %v133, 1e-05
    %v142 = vadd.f32 %v134, 1e-05
    %v143 = vadd.f32 %v135, 1e-05
    %v144 = vadd.f32 %v136, 1e-05
    %v145 = vadd.f32 %v137, 1e-05
    %v146 = vrsqrt.pop %v138
    %v147 = vrsqrt.pop %v139
    %v148 = vrsqrt.pop %v140
    %v149 = vrsqrt.pop %v141
    %v150 = vrsqrt.pop %v142
    %v151 = vrsqrt.pop %v143
    %v152 = vrsqrt.pop %v144
    %v153 = vrsqrt.pop %v145
    %v154 = vmul.f32 %v90, %v146
    %v155 = vmul.f32 %v91, %v147
    %v156 = vmul.f32 %v92, %v148
    %v157 = vmul.f32 %v93, %v149
    %v158 = vmul.f32 %v94, %v150
    %v159 = vmul.f32 %v95, %v151
    %v160 = vmul.f32 %v96, %v152
    %v161 = vmul.f32 %v97, %v153
    %v162 = vld [vmem:[%s1] sm:$0x1]
    %v164 = vlaneseq
    %v165 = vshrl.u32 %v164, 7
    %v166 = vsub.s32 0, %v165
    %v167 = vrot.slane %v162, %v166
    %v169 = vmul.f32 %v154, %v167
    %v170 = vmul.f32 %v155, %v167
    %v171 = vmul.f32 %v156, %v167
    %v172 = vmul.f32 %v157, %v167
    %v173 = vmul.f32 %v158, %v167
    %v174 = vmul.f32 %v159, %v167
    %v175 = vmul.f32 %v160, %v167
    %v176 = vmul.f32 %v161, %v167
    %v177 = vld [vmem:[%s2] sm:$0x1]
    %v179 = vlaneseq
    %v180 = vshrl.u32 %v179, 7
    %v181 = vsub.s32 0, %v180
    %v182 = vrot.slane %v177, %v181
    %v184 = vadd.f32 %v169, %v182
    %v185 = vadd.f32 %v170, %v182
    %v186 = vadd.f32 %v171, %v182
    %v187 = vadd.f32 %v172, %v182
    %v188 = vadd.f32 %v173, %v182
    %v189 = vadd.f32 %v174, %v182
    %v190 = vadd.f32 %v175, %v182
    %v191 = vadd.f32 %v176, %v182
    %v192 = vpack.c.bf16 %v184, %v184
    %v193 = vpack.c.bf16 %v185, %v185
    %v194 = vpack.c.bf16 %v186, %v186
    %v195 = vpack.c.bf16 %v187, %v187
    %v196 = vpack.c.bf16 %v188, %v188
    %v197 = vpack.c.bf16 %v189, %v189
    %v198 = vpack.c.bf16 %v190, %v190
    %v199 = vpack.c.bf16 %v191, %v191
    %v200 = vpack.c.bf16 %v48, %v48
    %v201 = vpack.c.bf16 %v49, %v49
    %v202 = vpack.c.bf16 %v50, %v50
    %v203 = vpack.c.bf16 %v51, %v51
    %v204 = vpack.c.bf16 %v52, %v52
    %v205 = vpack.c.bf16 %v53, %v53
    %v206 = vpack.c.bf16 %v54, %v54
    %v207 = vpack.c.bf16 %v55, %v55
    %v208 = vld [vmem:[%s3] sm:$0xf]
    %v209 = vld [vmem:[%s3 + $0x4] sm:$0xf]
    %v210 = vld [vmem:[%s3 + $0x8] sm:$0xf]
    %v211 = vld [vmem:[%s3 + $0xc] sm:$0xf]
    %v212 = vld [vmem:[%s4] sm:$0x1]
    %v214 = vlaneseq
    %v215 = vshrl.u32 %v214, 7
    %v216 = vsub.s32 0, %v215
    %v217 = vrot.slane %v212, %v216
    %v227 = vunpack.c.l.b16 %v192
    %v228 = vunpack.c.l.b16 %v193
    %v229 = vunpack.c.l.b16 %v194
    %v230 = vunpack.c.l.b16 %v195
    %v231 = vunpack.c.l.b16 %v196
    %v232 = vunpack.c.l.b16 %v197
    %v233 = vunpack.c.l.b16 %v198
    %v234 = vunpack.c.l.b16 %v199
    %v235 = vpack.c.b16 %v228, %v227
    %v236 = vpack.c.b16 %v230, %v229
    %v237 = vpack.c.b16 %v232, %v231
    %v238 = vpack.c.b16 %v234, %v233
    %v243 = vunpack.c.l.b16 %v208
    %v244 = vunpack.c.l.b16 %v209
    %v245 = vunpack.c.l.b16 %v210
    %v246 = vunpack.c.l.b16 %v211
    %v247 = vpack.c.b16 %v244, %v243
    %v248 = vpack.c.b16 %v246, %v245
    %v252 = vsel %vm56, %v235, 0
    %v255 = vsel %vm56, %v236, 0
    %v258 = vsel %vm56, %v237, 0
    %v261 = vsel %vm56, %v238, 0
    %263 = vmatprep.subr.bf16.mxu0 0
    %264 = vmatpush1.bf16.msra.mxu0 %v247
    %265 = vmatprep.subr.bf16.mxu0 0
    %266 = vmatpush1.bf16.msra.mxu0 %v248
    %267 = vmatprep.subr.bf16.mxu0 0
    %268 = vmatpush1.bf16.msra.mxu0 0
    %269 = vmatprep.subr.bf16.mxu0 0
    %270 = vmatpush1.bf16.msra.mxu0 0
    %271 = vmatprep.subr.bf16.mxu0 0
    %272 = vmatpush1.bf16.msra.mxu0 0
    %273 = vmatprep.subr.bf16.mxu0 0
    %274 = vmatpush1.bf16.msra.mxu0 0
    %275 = vmatprep.subr.bf16.mxu0 0
    %276 = vmatpush1.bf16.msra.mxu0 0
    %277 = vmatprep.subr.bf16.mxu0 0
    %278 = vmatpush1.bf16.msra.mxu0 0
    %279 = vmatprep.subr.bf16.mxu0 0
    %280 = vmatpush1.bf16.msra.mxu0 0
    %281 = vmatprep.subr.bf16.mxu0 0
    %282 = vmatpush1.bf16.msra.mxu0 0
    %283 = vmatprep.subr.bf16.mxu0 0
    %284 = vmatpush1.bf16.msra.mxu0 0
    %285 = vmatprep.subr.bf16.mxu0 0
    %286 = vmatpush1.bf16.msra.mxu0 0
    %287 = vmatprep.subr.bf16.mxu0 0
    %288 = vmatpush1.bf16.msra.mxu0 0
    %289 = vmatprep.subr.bf16.mxu0 0
    %290 = vmatpush1.bf16.msra.mxu0 0
    %291 = vmatprep.subr.bf16.mxu0 0
    %292 = vmatpush1.bf16.msra.mxu0 0
    %293 = vmatprep.subr.bf16.mxu0 0
    %294 = vmatpush1.bf16.msra.mxu0 0
    %295 = vmatprep.mubr.bf16.mxu0 0
    %296 = vmatmul.mubr.bf16.gmra.mrb[0].mxu0 %v252
    %v297 = vpop.f32.mrb[0].mxu0
    %v298 = vadd.f32 %v217, %v297
    %v299 = vpop.f32.mrb[0].mxu0
    %v300 = vpop.f32.mrb[0].mxu0
    %v301 = vadd.f32 %v217, %v300
    %v302 = vpop.f32.mrb[0].mxu0
    %303 = vmatprep.mubr.bf16.mxu0 0
    %304 = vmatmul.mubr.bf16.gmra.mrb[0].mxu0 %v255
    %v305 = vpop.f32.mrb[0].mxu0
    %v306 = vadd.f32 %v217, %v305
    %v307 = vpop.f32.mrb[0].mxu0
    %v308 = vpop.f32.mrb[0].mxu0
    %v309 = vadd.f32 %v217, %v308
    %v310 = vpop.f32.mrb[0].mxu0
    %311 = vmatprep.mubr.bf16.mxu0 0
    %312 = vmatmul.mubr.bf16.gmra.mrb[0].mxu0 %v258
    %v313 = vpop.f32.mrb[0].mxu0
    %v314 = vadd.f32 %v217, %v313
    %v315 = vpop.f32.mrb[0].mxu0
    %v316 = vpop.f32.mrb[0].mxu0
    %v317 = vadd.f32 %v217, %v316
    %v318 = vpop.f32.mrb[0].mxu0
    %319 = vmatprep.mubr.bf16.mxu0 0
    %320 = vmatmul.mubr.bf16.gmra.mrb[0].mxu0 %v261
    %v321 = vpop.f32.mrb[0].mxu0
    %v322 = vadd.f32 %v217, %v321
    %v323 = vpop.f32.mrb[0].mxu0
    %v324 = vpop.f32.mrb[0].mxu0
    %v325 = vadd.f32 %v217, %v324
    %v326 = vpop.f32.mrb[0].mxu0
    %327 = vdwg.mxu0
    %v328 = vld [vmem:[%s6] sm:$0xf]
    %v329 = vld [vmem:[%s6 + $0x4] sm:$0xf]
    %v330 = vld [vmem:[%s6 + $0x8] sm:$0xf]
    %v331 = vld [vmem:[%s6 + $0xc] sm:$0xf]
    %v340 = vunpack.c.l.b16 %v200
    %v341 = vunpack.c.l.b16 %v201
    %v342 = vunpack.c.l.b16 %v202
    %v343 = vunpack.c.l.b16 %v203
    %v344 = vunpack.c.l.b16 %v204
    %v345 = vunpack.c.l.b16 %v205
    %v346 = vunpack.c.l.b16 %v206
    %v347 = vunpack.c.l.b16 %v207
    %v348 = vpack.c.b16 %v341, %v340
    %v349 = vpack.c.b16 %v343, %v342
    %v350 = vpack.c.b16 %v345, %v344
    %v351 = vpack.c.b16 %v347, %v346
    %v356 = vunpack.c.l.b16 %v328
    %v357 = vunpack.c.l.b16 %v329
    %v358 = vunpack.c.l.b16 %v330
    %v359 = vunpack.c.l.b16 %v331
    %v360 = vpack.c.b16 %v357, %v356
    %v361 = vpack.c.b16 %v359, %v358
    %v365 = vsel %vm56, %v348, 0
    %v368 = vsel %vm56, %v349, 0
    %v371 = vsel %vm56, %v350, 0
    %v374 = vsel %vm56, %v351, 0
    %376 = vmatprep.subr.bf16.mxu0 0
    %377 = vmatpush1.bf16.msra.mxu0 %v360
    %378 = vmatprep.subr.bf16.mxu0 0
    %379 = vmatpush1.bf16.msra.mxu0 %v361
    %380 = vmatprep.subr.bf16.mxu0 0
    %381 = vmatpush1.bf16.msra.mxu0 0
    %382 = vmatprep.subr.bf16.mxu0 0
    %383 = vmatpush1.bf16.msra.mxu0 0
    %384 = vmatprep.subr.bf16.mxu0 0
    %385 = vmatpush1.bf16.msra.mxu0 0
    %386 = vmatprep.subr.bf16.mxu0 0
    %387 = vmatpush1.bf16.msra.mxu0 0
    %388 = vmatprep.subr.bf16.mxu0 0
    %389 = vmatpush1.bf16.msra.mxu0 0
    %390 = vmatprep.subr.bf16.mxu0 0
    %391 = vmatpush1.bf16.msra.mxu0 0
    %392 = vmatprep.subr.bf16.mxu0 0
    %393 = vmatpush1.bf16.msra.mxu0 0
    %394 = vmatprep.subr.bf16.mxu0 0
    %395 = vmatpush1.bf16.msra.mxu0 0
    %396 = vmatprep.subr.bf16.mxu0 0
    %397 = vmatpush1.bf16.msra.mxu0 0
    %398 = vmatprep.subr.bf16.mxu0 0
    %399 = vmatpush1.bf16.msra.mxu0 0
    %400 = vmatprep.subr.bf16.mxu0 0
    %401 = vmatpush1.bf16.msra.mxu0 0
    %402 = vmatprep.subr.bf16.mxu0 0
    %403 = vmatpush1.bf16.msra.mxu0 0
    %404 = vmatprep.subr.bf16.mxu0 0
    %405 = vmatpush1.bf16.msra.mxu0 0
    %406 = vmatprep.subr.bf16.mxu0 0
    %407 = vmatpush1.bf16.msra.mxu0 0
    %408 = vmatprep.mubr.bf16.mxu0 0
    %409 = vmatmul.mubr.bf16.gmra.mrb[0].mxu0 %v365
    %v410 = vpop.f32.mrb[0].mxu0
    %v411 = vadd.f32 0.0, %v410
    %v412 = vpop.f32.mrb[0].mxu0
    %v413 = vpop.f32.mrb[0].mxu0
    %v414 = vadd.f32 0.0, %v413
    %v415 = vpop.f32.mrb[0].mxu0
    %416 = vmatprep.mubr.bf16.mxu0 0
    %417 = vmatmul.mubr.bf16.gmra.mrb[0].mxu0 %v368
    %v418 = vpop.f32.mrb[0].mxu0
    %v419 = vadd.f32 0.0, %v418
    %v420 = vpop.f32.mrb[0].mxu0
    %v421 = vpop.f32.mrb[0].mxu0
    %v422 = vadd.f32 0.0, %v421
    %v423 = vpop.f32.mrb[0].mxu0
    %424 = vmatprep.mubr.bf16.mxu0 0
    %425 = vmatmul.mubr.bf16.gmra.mrb[0].mxu0 %v371
    %v426 = vpop.f32.mrb[0].mxu0
    %v427 = vadd.f32 0.0, %v426
    %v428 = vpop.f32.mrb[0].mxu0
    %v429 = vpop.f32.mrb[0].mxu0
    %v430 = vadd.f32 0.0, %v429
    %v431 = vpop.f32.mrb[0].mxu0
    %432 = vmatprep.mubr.bf16.mxu0 0
    %433 = vmatmul.mubr.bf16.gmra.mrb[0].mxu0 %v374
    %v434 = vpop.f32.mrb[0].mxu0
    %v435 = vadd.f32 0.0, %v434
    %v436 = vpop.f32.mrb[0].mxu0
    %v437 = vpop.f32.mrb[0].mxu0
    %v438 = vadd.f32 0.0, %v437
    %v439 = vpop.f32.mrb[0].mxu0
    %440 = vdwg.mxu0
    %v441 = vpack.c.bf16 %v298, %v298
    %v442 = vpack.c.bf16 %v301, %v301
    %v443 = vpack.c.bf16 %v306, %v306
    %v444 = vpack.c.bf16 %v309, %v309
    %v445 = vpack.c.bf16 %v314, %v314
    %v446 = vpack.c.bf16 %v317, %v317
    %v447 = vpack.c.bf16 %v322, %v322
    %v448 = vpack.c.bf16 %v325, %v325
    %450 = vrot.lane.b32.xlu0 %v441, 116
    %v451 = vpop.permute.xlu0 %450
    %vm452 = vcmask 31744
    %v454 = vsel %vm452, %v441, 0
    %v457 = vsel %vm452, %v451, 0
    %459 = vmatprep.subr.bf16.mxu0 0
    %460 = vmatpush1.bf16.xpose.msra.mxu0 %v457
    %461 = vmatprep.subr.bf16.mxu0 0
    %462 = vmatpush1.bf16.xpose.msra.mxu0 0
    %463 = vmatprep.subr.bf16.mxu0 0
    %464 = vmatpush1.bf16.xpose.msra.mxu0 0
    %465 = vmatprep.subr.bf16.mxu0 0
    %466 = vmatpush1.bf16.xpose.msra.mxu0 0
    %467 = vmatprep.subr.bf16.mxu0 0
    %468 = vmatpush1.bf16.xpose.msra.mxu0 0
    %469 = vmatprep.subr.bf16.mxu0 0
    %470 = vmatpush1.bf16.xpose.msra.mxu0 0
    %471 = vmatprep.subr.bf16.mxu0 0
    %472 = vmatpush1.bf16.xpose.msra.mxu0 0
    %473 = vmatprep.subr.bf16.mxu0 0
    %474 = vmatpush1.bf16.xpose.msra.mxu0 0
    %475 = vmatprep.subr.bf16.mxu0 0
    %476 = vmatpush1.bf16.xpose.msra.mxu0 0
    %477 = vmatprep.subr.bf16.mxu0 0
    %478 = vmatpush1.bf16.xpose.msra.mxu0 0
    %479 = vmatprep.subr.bf16.mxu0 0
    %480 = vmatpush1.bf16.xpose.msra.mxu0 0
    %481 = vmatprep.subr.bf16.mxu0 0
    %482 = vmatpush1.bf16.xpose.msra.mxu0 0
    %483 = vmatprep.subr.bf16.mxu0 0
    %484 = vmatpush1.bf16.xpose.msra.mxu0 0
    %485 = vmatprep.subr.bf16.mxu0 0
    %486 = vmatpush1.bf16.xpose.msra.mxu0 0
    %487 = vmatprep.subr.bf16.mxu0 0
    %488 = vmatpush1.bf16.xpose.msra.mxu0 0
    %489 = vmatprep.subr.bf16.mxu0 0
    %490 = vmatpush1.bf16.xpose.msra.mxu0 0
    %491 = vmatprep.mubr.bf16.mxu0 0
    %492 = vmatmul.mubr.bf16.gmra.mrb[0].mxu0 %v454
    %v493 = vpop.f32.mrb[0].mxu0
    %v494 = vadd.f32 0.0, %v493
    %v495 = vpop.f32.mrb[0].mxu0
    %v496 = vpop.f32.mrb[0].mxu0
    %v497 = vpop.f32.mrb[0].mxu0
    %498 = vdwg.mxu0
    %500 = vrot.lane.b32.xlu0 %v442, 116
    %v501 = vpop.permute.xlu0 %500
    %v503 = vsel %vm452, %v442, 0
    %v506 = vsel %vm452, %v501, 0
    %508 = vmatprep.subr.bf16.mxu0 0
    %509 = vmatpush1.bf16.xpose.msra.mxu0 %v506
    %510 = vmatprep.subr.bf16.mxu0 0
    %511 = vmatpush1.bf16.xpose.msra.mxu0 0
    %512 = vmatprep.subr.bf16.mxu0 0
    %513 = vmatpush1.bf16.xpose.msra.mxu0 0
    %514 = vmatprep.subr.bf16.mxu0 0
    %515 = vmatpush1.bf16.xpose.msra.mxu0 0
    %516 = vmatprep.subr.bf16.mxu0 0
    %517 = vmatpush1.bf16.xpose.msra.mxu0 0
    %518 = vmatprep.subr.bf16.mxu0 0
    %519 = vmatpush1.bf16.xpose.msra.mxu0 0
    %520 = vmatprep.subr.bf16.mxu0 0
    %521 = vmatpush1.bf16.xpose.msra.mxu0 0
    %522 = vmatprep.subr.bf16.mxu0 0
    %523 = vmatpush1.bf16.xpose.msra.mxu0 0
    %524 = vmatprep.subr.bf16.mxu0 0
    %525 = vmatpush1.bf16.xpose.msra.mxu0 0
    %526 = vmatprep.subr.bf16.mxu0 0
    %527 = vmatpush1.bf16.xpose.msra.mxu0 0
    %528 = vmatprep.subr.bf16.mxu0 0
    %529 = vmatpush1.bf16.xpose.msra.mxu0 0
    %530 = vmatprep.subr.bf16.mxu0 0
    %531 = vmatpush1.bf16.xpose.msra.mxu0 0
    %532 = vmatprep.subr.bf16.mxu0 0
    %533 = vmatpush1.bf16.xpose.msra.mxu0 0
    %534 = vmatprep.subr.bf16.mxu0 0
    %535 = vmatpush1.bf16.xpose.msra.mxu0 0
    %536 = vmatprep.subr.bf16.mxu0 0
    %537 = vmatpush1.bf16.xpose.msra.mxu0 0
    %538 = vmatprep.subr.bf16.mxu0 0
    %539 = vmatpush1.bf16.xpose.msra.mxu0 0
    %540 = vmatprep.mubr.bf16.mxu0 0
    %541 = vmatmul.mubr.bf16.gmra.mrb[0].mxu0 %v503
    %v542 = vpop.f32.mrb[0].mxu0
    %v543 = vadd.f32 0.0, %v542
    %v544 = vpop.f32.mrb[0].mxu0
    %v545 = vpop.f32.mrb[0].mxu0
    %v546 = vpop.f32.mrb[0].mxu0
    %547 = vdwg.mxu0
    %549 = vrot.lane.b32.xlu0 %v443, 116
    %v550 = vpop.permute.xlu0 %549
    %v552 = vsel %vm452, %v443, 0
    %v555 = vsel %vm452, %v550, 0
    %557 = vmatprep.subr.bf16.mxu0 0
    %558 = vmatpush1.bf16.xpose.msra.mxu0 %v555
    %559 = vmatprep.subr.bf16.mxu0 0
    %560 = vmatpush1.bf16.xpose.msra.mxu0 0
    %561 = vmatprep.subr.bf16.mxu0 0
    %562 = vmatpush1.bf16.xpose.msra.mxu0 0
    %563 = vmatprep.subr.bf16.mxu0 0
    %564 = vmatpush1.bf16.xpose.msra.mxu0 0
    %565 = vmatprep.subr.bf16.mxu0 0
    %566 = vmatpush1.bf16.xpose.msra.mxu0 0
    %567 = vmatprep.subr.bf16.mxu0 0
    %568 = vmatpush1.bf16.xpose.msra.mxu0 0
    %569 = vmatprep.subr.bf16.mxu0 0
    %570 = vmatpush1.bf16.xpose.msra.mxu0 0
    %571 = vmatprep.subr.bf16.mxu0 0
    %572 = vmatpush1.bf16.xpose.msra.mxu0 0
    %573 = vmatprep.subr.bf16.mxu0 0
    %574 = vmatpush1.bf16.xpose.msra.mxu0 0
    %575 = vmatprep.subr.bf16.mxu0 0
    %576 = vmatpush1.bf16.xpose.msra.mxu0 0
    %577 = vmatprep.subr.bf16.mxu0 0
    %578 = vmatpush1.bf16.xpose.msra.mxu0 0
    %579 = vmatprep.subr.bf16.mxu0 0
    %580 = vmatpush1.bf16.xpose.msra.mxu0 0
    %581 = vmatprep.subr.bf16.mxu0 0
    %582 = vmatpush1.bf16.xpose.msra.mxu0 0
    %583 = vmatprep.subr.bf16.mxu0 0
    %584 = vmatpush1.bf16.xpose.msra.mxu0 0
    %585 = vmatprep.subr.bf16.mxu0 0
    %586 = vmatpush1.bf16.xpose.msra.mxu0 0
    %587 = vmatprep.subr.bf16.mxu0 0
    %588 = vmatpush1.bf16.xpose.msra.mxu0 0
    %589 = vmatprep.mubr.bf16.mxu0 0
    %590 = vmatmul.mubr.bf16.gmra.mrb[0].mxu0 %v552
    %v591 = vpop.f32.mrb[0].mxu0
    %v592 = vadd.f32 0.0, %v591
    %v593 = vpop.f32.mrb[0].mxu0
    %v594 = vpop.f32.mrb[0].mxu0
    %v595 = vpop.f32.mrb[0].mxu0
    %596 = vdwg.mxu0
    %598 = vrot.lane.b32.xlu0 %v444, 116
    %v599 = vpop.permute.xlu0 %598
    %v601 = vsel %vm452, %v444, 0
    %v604 = vsel %vm452, %v599, 0
    %606 = vmatprep.subr.bf16.mxu0 0
    %607 = vmatpush1.bf16.xpose.msra.mxu0 %v604
    %608 = vmatprep.subr.bf16.mxu0 0
    %609 = vmatpush1.bf16.xpose.msra.mxu0 0
    %610 = vmatprep.subr.bf16.mxu0 0
    %611 = vmatpush1.bf16.xpose.msra.mxu0 0
    %612 = vmatprep.subr.bf16.mxu0 0
    %613 = vmatpush1.bf16.xpose.msra.mxu0 0
    %614 = vmatprep.subr.bf16.mxu0 0
    %615 = vmatpush1.bf16.xpose.msra.mxu0 0
    %616 = vmatprep.subr.bf16.mxu0 0
    %617 = vmatpush1.bf16.xpose.msra.mxu0 0
    %618 = vmatprep.subr.bf16.mxu0 0
    %619 = vmatpush1.bf16.xpose.msra.mxu0 0
    %620 = vmatprep.subr.bf16.mxu0 0
    %621 = vmatpush1.bf16.xpose.msra.mxu0 0
    %622 = vmatprep.subr.bf16.mxu0 0
    %623 = vmatpush1.bf16.xpose.msra.mxu0 0
    %624 = vmatprep.subr.bf16.mxu0 0
    %625 = vmatpush1.bf16.xpose.msra.mxu0 0
    %626 = vmatprep.subr.bf16.mxu0 0
    %627 = vmatpush1.bf16.xpose.msra.mxu0 0
    %628 = vmatprep.subr.bf16.mxu0 0
    %629 = vmatpush1.bf16.xpose.msra.mxu0 0
    %630 = vmatprep.subr.bf16.mxu0 0
    %631 = vmatpush1.bf16.xpose.msra.mxu0 0
    %632 = vmatprep.subr.bf16.mxu0 0
    %633 = vmatpush1.bf16.xpose.msra.mxu0 0
    %634 = vmatprep.subr.bf16.mxu0 0
    %635 = vmatpush1.bf16.xpose.msra.mxu0 0
    %636 = vmatprep.subr.bf16.mxu0 0
    %637 = vmatpush1.bf16.xpose.msra.mxu0 0
    %638 = vmatprep.mubr.bf16.mxu0 0
    %639 = vmatmul.mubr.bf16.gmra.mrb[0].mxu0 %v601
    %v640 = vpop.f32.mrb[0].mxu0
    %v641 = vadd.f32 0.0, %v640
    %v642 = vpop.f32.mrb[0].mxu0
    %v643 = vpop.f32.mrb[0].mxu0
    %v644 = vpop.f32.mrb[0].mxu0
    %645 = vdwg.mxu0
    %647 = vrot.lane.b32.xlu0 %v445, 116
    %v648 = vpop.permute.xlu0 %647
    %v650 = vsel %vm452, %v445, 0
    %v653 = vsel %vm452, %v648, 0
    %655 = vmatprep.subr.bf16.mxu0 0
    %656 = vmatpush1.bf16.xpose.msra.mxu0 %v653
    %657 = vmatprep.subr.bf16.mxu0 0
    %658 = vmatpush1.bf16.xpose.msra.mxu0 0
    %659 = vmatprep.subr.bf16.mxu0 0
    %660 = vmatpush1.bf16.xpose.msra.mxu0 0
    %661 = vmatprep.subr.bf16.mxu0 0
    %662 = vmatpush1.bf16.xpose.msra.mxu0 0
    %663 = vmatprep.subr.bf16.mxu0 0
    %664 = vmatpush1.bf16.xpose.msra.mxu0 0
    %665 = vmatprep.subr.bf16.mxu0 0
    %666 = vmatpush1.bf16.xpose.msra.mxu0 0
    %667 = vmatprep.subr.bf16.mxu0 0
    %668 = vmatpush1.bf16.xpose.msra.mxu0 0
    %669 = vmatprep.subr.bf16.mxu0 0
    %670 = vmatpush1.bf16.xpose.msra.mxu0 0
    %671 = vmatprep.subr.bf16.mxu0 0
    %672 = vmatpush1.bf16.xpose.msra.mxu0 0
    %673 = vmatprep.subr.bf16.mxu0 0
    %674 = vmatpush1.bf16.xpose.msra.mxu0 0
    %675 = vmatprep.subr.bf16.mxu0 0
    %676 = vmatpush1.bf16.xpose.msra.mxu0 0
    %677 = vmatprep.subr.bf16.mxu0 0
    %678 = vmatpush1.bf16.xpose.msra.mxu0 0
    %679 = vmatprep.subr.bf16.mxu0 0
    %680 = vmatpush1.bf16.xpose.msra.mxu0 0
    %681 = vmatprep.subr.bf16.mxu0 0
    %682 = vmatpush1.bf16.xpose.msra.mxu0 0
    %683 = vmatprep.subr.bf16.mxu0 0
    %684 = vmatpush1.bf16.xpose.msra.mxu0 0
    %685 = vmatprep.subr.bf16.mxu0 0
    %686 = vmatpush1.bf16.xpose.msra.mxu0 0
    %687 = vmatprep.mubr.bf16.mxu0 0
    %688 = vmatmul.mubr.bf16.gmra.mrb[0].mxu0 %v650
    %v689 = vpop.f32.mrb[0].mxu0
    %v690 = vadd.f32 0.0, %v689
    %v691 = vpop.f32.mrb[0].mxu0
    %v692 = vpop.f32.mrb[0].mxu0
    %v693 = vpop.f32.mrb[0].mxu0
    %694 = vdwg.mxu0
    %696 = vrot.lane.b32.xlu0 %v446, 116
    %v697 = vpop.permute.xlu0 %696
    %v699 = vsel %vm452, %v446, 0
    %v702 = vsel %vm452, %v697, 0
    %704 = vmatprep.subr.bf16.mxu0 0
    %705 = vmatpush1.bf16.xpose.msra.mxu0 %v702
    %706 = vmatprep.subr.bf16.mxu0 0
    %707 = vmatpush1.bf16.xpose.msra.mxu0 0
    %708 = vmatprep.subr.bf16.mxu0 0
    %709 = vmatpush1.bf16.xpose.msra.mxu0 0
    %710 = vmatprep.subr.bf16.mxu0 0
    %711 = vmatpush1.bf16.xpose.msra.mxu0 0
    %712 = vmatprep.subr.bf16.mxu0 0
    %713 = vmatpush1.bf16.xpose.msra.mxu0 0
    %714 = vmatprep.subr.bf16.mxu0 0
    %715 = vmatpush1.bf16.xpose.msra.mxu0 0
    %716 = vmatprep.subr.bf16.mxu0 0
    %717 = vmatpush1.bf16.xpose.msra.mxu0 0
    %718 = vmatprep.subr.bf16.mxu0 0
    %719 = vmatpush1.bf16.xpose.msra.mxu0 0
    %720 = vmatprep.subr.bf16.mxu0 0
    %721 = vmatpush1.bf16.xpose.msra.mxu0 0
    %722 = vmatprep.subr.bf16.mxu0 0
    %723 = vmatpush1.bf16.xpose.msra.mxu0 0
    %724 = vmatprep.subr.bf16.mxu0 0
    %725 = vmatpush1.bf16.xpose.msra.mxu0 0
    %726 = vmatprep.subr.bf16.mxu0 0
    %727 = vmatpush1.bf16.xpose.msra.mxu0 0
    %728 = vmatprep.subr.bf16.mxu0 0
    %729 = vmatpush1.bf16.xpose.msra.mxu0 0
    %730 = vmatprep.subr.bf16.mxu0 0
    %731 = vmatpush1.bf16.xpose.msra.mxu0 0
    %732 = vmatprep.subr.bf16.mxu0 0
    %733 = vmatpush1.bf16.xpose.msra.mxu0 0
    %734 = vmatprep.subr.bf16.mxu0 0
    %735 = vmatpush1.bf16.xpose.msra.mxu0 0
    %736 = vmatprep.mubr.bf16.mxu0 0
    %737 = vmatmul.mubr.bf16.gmra.mrb[0].mxu0 %v699
    %v738 = vpop.f32.mrb[0].mxu0
    %v739 = vadd.f32 0.0, %v738
    %v740 = vpop.f32.mrb[0].mxu0
    %v741 = vpop.f32.mrb[0].mxu0
    %v742 = vpop.f32.mrb[0].mxu0
    %743 = vdwg.mxu0
    %745 = vrot.lane.b32.xlu0 %v447, 116
    %v746 = vpop.permute.xlu0 %745
    %v748 = vsel %vm452, %v447, 0
    %v751 = vsel %vm452, %v746, 0
    %753 = vmatprep.subr.bf16.mxu0 0
    %754 = vmatpush1.bf16.xpose.msra.mxu0 %v751
    %755 = vmatprep.subr.bf16.mxu0 0
    %756 = vmatpush1.bf16.xpose.msra.mxu0 0
    %757 = vmatprep.subr.bf16.mxu0 0
    %758 = vmatpush1.bf16.xpose.msra.mxu0 0
    %759 = vmatprep.subr.bf16.mxu0 0
    %760 = vmatpush1.bf16.xpose.msra.mxu0 0
    %761 = vmatprep.subr.bf16.mxu0 0
    %762 = vmatpush1.bf16.xpose.msra.mxu0 0
    %763 = vmatprep.subr.bf16.mxu0 0
    %764 = vmatpush1.bf16.xpose.msra.mxu0 0
    %765 = vmatprep.subr.bf16.mxu0 0
    %766 = vmatpush1.bf16.xpose.msra.mxu0 0
    %767 = vmatprep.subr.bf16.mxu0 0
    %768 = vmatpush1.bf16.xpose.msra.mxu0 0
    %769 = vmatprep.subr.bf16.mxu0 0
    %770 = vmatpush1.bf16.xpose.msra.mxu0 0
    %771 = vmatprep.subr.bf16.mxu0 0
    %772 = vmatpush1.bf16.xpose.msra.mxu0 0
    %773 = vmatprep.subr.bf16.mxu0 0
    %774 = vmatpush1.bf16.xpose.msra.mxu0 0
    %775 = vmatprep.subr.bf16.mxu0 0
    %776 = vmatpush1.bf16.xpose.msra.mxu0 0
    %777 = vmatprep.subr.bf16.mxu0 0
    %778 = vmatpush1.bf16.xpose.msra.mxu0 0
    %779 = vmatprep.subr.bf16.mxu0 0
    %780 = vmatpush1.bf16.xpose.msra.mxu0 0
    %781 = vmatprep.subr.bf16.mxu0 0
    %782 = vmatpush1.bf16.xpose.msra.mxu0 0
    %783 = vmatprep.subr.bf16.mxu0 0
    %784 = vmatpush1.bf16.xpose.msra.mxu0 0
    %785 = vmatprep.mubr.bf16.mxu0 0
    %786 = vmatmul.mubr.bf16.gmra.mrb[0].mxu0 %v748
    %v787 = vpop.f32.mrb[0].mxu0
    %v788 = vadd.f32 0.0, %v787
    %v789 = vpop.f32.mrb[0].mxu0
    %v790 = vpop.f32.mrb[0].mxu0
    %v791 = vpop.f32.mrb[0].mxu0
    %792 = vdwg.mxu0
    %794 = vrot.lane.b32.xlu0 %v448, 116
    %v795 = vpop.permute.xlu0 %794
    %v797 = vsel %vm452, %v448, 0
    %v800 = vsel %vm452, %v795, 0
    %802 = vmatprep.subr.bf16.mxu0 0
    %803 = vmatpush1.bf16.xpose.msra.mxu0 %v800
    %804 = vmatprep.subr.bf16.mxu0 0
    %805 = vmatpush1.bf16.xpose.msra.mxu0 0
    %806 = vmatprep.subr.bf16.mxu0 0
    %807 = vmatpush1.bf16.xpose.msra.mxu0 0
    %808 = vmatprep.subr.bf16.mxu0 0
    %809 = vmatpush1.bf16.xpose.msra.mxu0 0
    %810 = vmatprep.subr.bf16.mxu0 0
    %811 = vmatpush1.bf16.xpose.msra.mxu0 0
    %812 = vmatprep.subr.bf16.mxu0 0
    %813 = vmatpush1.bf16.xpose.msra.mxu0 0
    %814 = vmatprep.subr.bf16.mxu0 0
    %815 = vmatpush1.bf16.xpose.msra.mxu0 0
    %816 = vmatprep.subr.bf16.mxu0 0
    %817 = vmatpush1.bf16.xpose.msra.mxu0 0
    %818 = vmatprep.subr.bf16.mxu0 0
    %819 = vmatpush1.bf16.xpose.msra.mxu0 0
    %820 = vmatprep.subr.bf16.mxu0 0
    %821 = vmatpush1.bf16.xpose.msra.mxu0 0
    %822 = vmatprep.subr.bf16.mxu0 0
    %823 = vmatpush1.bf16.xpose.msra.mxu0 0
    %824 = vmatprep.subr.bf16.mxu0 0
    %825 = vmatpush1.bf16.xpose.msra.mxu0 0
    %826 = vmatprep.subr.bf16.mxu0 0
    %827 = vmatpush1.bf16.xpose.msra.mxu0 0
    %828 = vmatprep.subr.bf16.mxu0 0
    %829 = vmatpush1.bf16.xpose.msra.mxu0 0
    %830 = vmatprep.subr.bf16.mxu0 0
    %831 = vmatpush1.bf16.xpose.msra.mxu0 0
    %832 = vmatprep.subr.bf16.mxu0 0
    %833 = vmatpush1.bf16.xpose.msra.mxu0 0
    %834 = vmatprep.mubr.bf16.mxu0 0
    %835 = vmatmul.mubr.bf16.gmra.mrb[0].mxu0 %v797
    %v836 = vpop.f32.mrb[0].mxu0
    %v837 = vadd.f32 0.0, %v836
    %v838 = vpop.f32.mrb[0].mxu0
    %v839 = vpop.f32.mrb[0].mxu0
    %v840 = vpop.f32.mrb[0].mxu0
    %841 = vdwg.mxu0
    %v842 = vmul.f32 %v494, 0.5
    %v843 = vmul.f32 %v543, 0.5
    %v844 = vmul.f32 %v592, 0.5
    %v845 = vmul.f32 %v641, 0.5
    %v846 = vmul.f32 %v690, 0.5
    %v847 = vmul.f32 %v739, 0.5
    %v848 = vmul.f32 %v788, 0.5
    %v849 = vmul.f32 %v837, 0.5
    %vm850 = vcmask 64512
    %v851 = vsel %vm850, %v842, -inf
    %852 = vmax.xlane.f32.xlu0 %v851
    %v853 = vpop.xlane.xlu0 %852
    %v854 = vsel %vm850, %v843, -inf
    %855 = vmax.xlane.f32.xlu0 %v854
    %v856 = vpop.xlane.xlu0 %855
    %v857 = vsel %vm850, %v844, -inf
    %858 = vmax.xlane.f32.xlu0 %v857
    %v859 = vpop.xlane.xlu0 %858
    %v860 = vsel %vm850, %v845, -inf
    %861 = vmax.xlane.f32.xlu0 %v860
    %v862 = vpop.xlane.xlu0 %861
    %v863 = vsel %vm850, %v846, -inf
    %864 = vmax.xlane.f32.xlu0 %v863
    %v865 = vpop.xlane.xlu0 %864
    %v866 = vsel %vm850, %v847, -inf
    %867 = vmax.xlane.f32.xlu0 %v866
    %v868 = vpop.xlane.xlu0 %867
    %v869 = vsel %vm850, %v848, -inf
    %870 = vmax.xlane.f32.xlu0 %v869
    %v871 = vpop.xlane.xlu0 %870
    %v872 = vsel %vm850, %v849, -inf
    %873 = vmax.xlane.f32.xlu0 %v872
    %v874 = vpop.xlane.xlu0 %873
    %v875 = vsub.f32 %v842, %v853
    %v876 = vsub.f32 %v843, %v856
    %v877 = vsub.f32 %v844, %v859
    %v878 = vsub.f32 %v845, %v862
    %v879 = vsub.f32 %v846, %v865
    %v880 = vsub.f32 %v847, %v868
    %v881 = vsub.f32 %v848, %v871
    %v882 = vsub.f32 %v849, %v874
    %v883 = vmul.f32 %v875, 1.442695
    %v884 = vpow.pop %v883
    %v885 = vmul.f32 %v876, 1.442695
    %v886 = vpow.pop %v885
    %v887 = vmul.f32 %v877, 1.442695
    %v888 = vpow.pop %v887
    %v889 = vmul.f32 %v878, 1.442695
    %v890 = vpow.pop %v889
    %v891 = vmul.f32 %v879, 1.442695
    %v892 = vpow.pop %v891
    %v893 = vmul.f32 %v880, 1.442695
    %v894 = vpow.pop %v893
    %v895 = vmul.f32 %v881, 1.442695
    %v896 = vpow.pop %v895
    %v897 = vmul.f32 %v882, 1.442695
    %v898 = vpow.pop %v897
    %v899 = vsel %vm850, %v884, 0.0
    %900 = vadd.xlane.f32.xlu0 %v899
    %v901 = vpop.xlane.xlu0 %900
    %v902 = vsel %vm850, %v886, 0.0
    %903 = vadd.xlane.f32.xlu0 %v902
    %v904 = vpop.xlane.xlu0 %903
    %v905 = vsel %vm850, %v888, 0.0
    %906 = vadd.xlane.f32.xlu0 %v905
    %v907 = vpop.xlane.xlu0 %906
    %v908 = vsel %vm850, %v890, 0.0
    %909 = vadd.xlane.f32.xlu0 %v908
    %v910 = vpop.xlane.xlu0 %909
    %v911 = vsel %vm850, %v892, 0.0
    %912 = vadd.xlane.f32.xlu0 %v911
    %v913 = vpop.xlane.xlu0 %912
    %v914 = vsel %vm850, %v894, 0.0
    %915 = vadd.xlane.f32.xlu0 %v914
    %v916 = vpop.xlane.xlu0 %915
    %v917 = vsel %vm850, %v896, 0.0
    %918 = vadd.xlane.f32.xlu0 %v917
    %v919 = vpop.xlane.xlu0 %918
    %v920 = vsel %vm850, %v898, 0.0
    %921 = vadd.xlane.f32.xlu0 %v920
    %v922 = vpop.xlane.xlu0 %921
    %v923 = vrcp.pop %v901
    %v924 = vrcp.pop %v904
    %v925 = vrcp.pop %v907
    %v926 = vrcp.pop %v910
    %v927 = vrcp.pop %v913
    %v928 = vrcp.pop %v916
    %v929 = vrcp.pop %v919
    %v930 = vrcp.pop %v922
    %v931 = vmul.f32 %v884, %v923
    %v932 = vmul.f32 %v886, %v924
    %v933 = vmul.f32 %v888, %v925
    %v934 = vmul.f32 %v890, %v926
    %v935 = vmul.f32 %v892, %v927
    %v936 = vmul.f32 %v894, %v928
    %v937 = vmul.f32 %v896, %v929
    %v938 = vmul.f32 %v898, %v930
    %v939 = vld [vmem:[%s5] sm:$0xff]
    %v940 = vmul.f32 %v931, %v939
    %v941 = vmul.f32 %v932, %v939
    %v942 = vmul.f32 %v933, %v939
    %v943 = vmul.f32 %v934, %v939
    %v944 = vmul.f32 %v935, %v939
    %v945 = vmul.f32 %v936, %v939
    %v946 = vmul.f32 %v937, %v939
    %v947 = vmul.f32 %v938, %v939
    %v948 = vpack.c.bf16 %v940, %v940
    %v949 = vpack.c.bf16 %v941, %v941
    %v950 = vpack.c.bf16 %v942, %v942
    %v951 = vpack.c.bf16 %v943, %v943
    %v952 = vpack.c.bf16 %v944, %v944
    %v953 = vpack.c.bf16 %v945, %v945
    %v954 = vpack.c.bf16 %v946, %v946
    %v955 = vpack.c.bf16 %v947, %v947
    %v956 = vpack.c.bf16 %v411, %v411
    %v957 = vpack.c.bf16 %v414, %v414
    %v958 = vpack.c.bf16 %v419, %v419
    %v959 = vpack.c.bf16 %v422, %v422
    %v960 = vpack.c.bf16 %v427, %v427
    %v961 = vpack.c.bf16 %v430, %v430
    %v962 = vpack.c.bf16 %v435, %v435
    %v963 = vpack.c.bf16 %v438, %v438
    %964 = vrot.lane.b32.xlu0 %v441, 124
    %v965 = vpop.permute.xlu0 %964
    %966 = vrot.lane.b32.xlu0 %v441, 112
    %v967 = vpop.permute.xlu0 %966
    %v969 = vsel %vm452, %v965, 0
    %v972 = vsel %vm452, %v967, 0
    %974 = vmatprep.subr.bf16.mxu0 0
    %975 = vmatpush1.bf16.xpose.msra.mxu0 %v972
    %976 = vmatprep.subr.bf16.mxu0 0
    %977 = vmatpush1.bf16.xpose.msra.mxu0 0
    %978 = vmatprep.subr.bf16.mxu0 0
    %979 = vmatpush1.bf16.xpose.msra.mxu0 0
    %980 = vmatprep.subr.bf16.mxu0 0
    %981 = vmatpush1.bf16.xpose.msra.mxu0 0
    %982 = vmatprep.subr.bf16.mxu0 0
    %983 = vmatpush1.bf16.xpose.msra.mxu0 0
    %984 = vmatprep.subr.bf16.mxu0 0
    %985 = vmatpush1.bf16.xpose.msra.mxu0 0
    %986 = vmatprep.subr.bf16.mxu0 0
    %987 = vmatpush1.bf16.xpose.msra.mxu0 0
    %988 = vmatprep.subr.bf16.mxu0 0
    %989 = vmatpush1.bf16.xpose.msra.mxu0 0
    %990 = vmatprep.subr.bf16.mxu0 0
    %991 = vmatpush1.bf16.xpose.msra.mxu0 0
    %992 = vmatprep.subr.bf16.mxu0 0
    %993 = vmatpush1.bf16.xpose.msra.mxu0 0
    %994 = vmatprep.subr.bf16.mxu0 0
    %995 = vmatpush1.bf16.xpose.msra.mxu0 0
    %996 = vmatprep.subr.bf16.mxu0 0
    %997 = vmatpush1.bf16.xpose.msra.mxu0 0
    %998 = vmatprep.subr.bf16.mxu0 0
    %999 = vmatpush1.bf16.xpose.msra.mxu0 0
    %1000 = vmatprep.subr.bf16.mxu0 0
    %1001 = vmatpush1.bf16.xpose.msra.mxu0 0
    %1002 = vmatprep.subr.bf16.mxu0 0
    %1003 = vmatpush1.bf16.xpose.msra.mxu0 0
    %1004 = vmatprep.subr.bf16.mxu0 0
    %1005 = vmatpush1.bf16.xpose.msra.mxu0 0
    %1006 = vmatprep.mubr.bf16.mxu0 0
    %1007 = vmatmul.mubr.bf16.gmra.mrb[0].mxu0 %v969
    %v1008 = vpop.f32.mrb[0].mxu0
    %v1009 = vadd.f32 0.0, %v1008
    %v1010 = vpop.f32.mrb[0].mxu0
    %v1011 = vpop.f32.mrb[0].mxu0
    %v1012 = vpop.f32.mrb[0].mxu0
    %1013 = vdwg.mxu0
    %1014 = vrot.lane.b32.xlu0 %v442, 124
    %v1015 = vpop.permute.xlu0 %1014
    %1016 = vrot.lane.b32.xlu0 %v442, 112
    %v1017 = vpop.permute.xlu0 %1016
    %v1019 = vsel %vm452, %v1015, 0
    %v1022 = vsel %vm452, %v1017, 0
    %1024 = vmatprep.subr.bf16.mxu0 0
    %1025 = vmatpush1.bf16.xpose.msra.mxu0 %v1022
    %1026 = vmatprep.subr.bf16.mxu0 0
    %1027 = vmatpush1.bf16.xpose.msra.mxu0 0
    %1028 = vmatprep.subr.bf16.mxu0 0
    %1029 = vmatpush1.bf16.xpose.msra.mxu0 0
    %1030 = vmatprep.subr.bf16.mxu0 0
    %1031 = vmatpush1.bf16.xpose.msra.mxu0 0
    %1032 = vmatprep.subr.bf16.mxu0 0
    %1033 = vmatpush1.bf16.xpose.msra.mxu0 0
    %1034 = vmatprep.subr.bf16.mxu0 0
    %1035 = vmatpush1.bf16.xpose.msra.mxu0 0
    %1036 = vmatprep.subr.bf16.mxu0 0
    %1037 = vmatpush1.bf16.xpose.msra.mxu0 0
    %1038 = vmatprep.subr.bf16.mxu0 0
    %1039 = vmatpush1.bf16.xpose.msra.mxu0 0
    %1040 = vmatprep.subr.bf16.mxu0 0
    %1041 = vmatpush1.bf16.xpose.msra.mxu0 0
    %1042 = vmatprep.subr.bf16.mxu0 0
    %1043 = vmatpush1.bf16.xpose.msra.mxu0 0
    %1044 = vmatprep.subr.bf16.mxu0 0
    %1045 = vmatpush1.bf16.xpose.msra.mxu0 0
    %1046 = vmatprep.subr.bf16.mxu0 0
    %1047 = vmatpush1.bf16.xpose.msra.mxu0 0
    %1048 = vmatprep.subr.bf16.mxu0 0
    %1049 = vmatpush1.bf16.xpose.msra.mxu0 0
    %1050 = vmatprep.subr.bf16.mxu0 0
    %1051 = vmatpush1.bf16.xpose.msra.mxu0 0
    %1052 = vmatprep.subr.bf16.mxu0 0
    %1053 = vmatpush1.bf16.xpose.msra.mxu0 0
    %1054 = vmatprep.subr.bf16.mxu0 0
    %1055 = vmatpush1.bf16.xpose.msra.mxu0 0
    %1056 = vmatprep.mubr.bf16.mxu0 0
    %1057 = vmatmul.mubr.bf16.gmra.mrb[0].mxu0 %v1019
    %v1058 = vpop.f32.mrb[0].mxu0
    %v1059 = vadd.f32 0.0, %v1058
    %v1060 = vpop.f32.mrb[0].mxu0
    %v1061 = vpop.f32.mrb[0].mxu0
    %v1062 = vpop.f32.mrb[0].mxu0
    %1063 = vdwg.mxu0
    %1064 = vrot.lane.b32.xlu0 %v443, 124
    %v1065 = vpop.permute.xlu0 %1064
    %1066 = vrot.lane.b32.xlu0 %v443, 112
    %v1067 = vpop.permute.xlu0 %1066
    %v1069 = vsel %vm452, %v1065, 0
    %v1072 = vsel %vm452, %v1067, 0
    %1074 = vmatprep.subr.bf16.mxu0 0
    %1075 = vmatpush1.bf16.xpose.msra.mxu0 %v1072
    %1076 = vmatprep.subr.bf16.mxu0 0
    %1077 = vmatpush1.bf16.xpose.msra.mxu0 0
    %1078 = vmatprep.subr.bf16.mxu0 0
    %1079 = vmatpush1.bf16.xpose.msra.mxu0 0
    %1080 = vmatprep.subr.bf16.mxu0 0
    %1081 = vmatpush1.bf16.xpose.msra.mxu0 0
    %1082 = vmatprep.subr.bf16.mxu0 0
    %1083 = vmatpush1.bf16.xpose.msra.mxu0 0
    %1084 = vmatprep.subr.bf16.mxu0 0
    %1085 = vmatpush1.bf16.xpose.msra.mxu0 0
    %1086 = vmatprep.subr.bf16.mxu0 0
    %1087 = vmatpush1.bf16.xpose.msra.mxu0 0
    %1088 = vmatprep.subr.bf16.mxu0 0
    %1089 = vmatpush1.bf16.xpose.msra.mxu0 0
    %1090 = vmatprep.subr.bf16.mxu0 0
    %1091 = vmatpush1.bf16.xpose.msra.mxu0 0
    %1092 = vmatprep.subr.bf16.mxu0 0
    %1093 = vmatpush1.bf16.xpose.msra.mxu0 0
    %1094 = vmatprep.subr.bf16.mxu0 0
    %1095 = vmatpush1.bf16.xpose.msra.mxu0 0
    %1096 = vmatprep.subr.bf16.mxu0 0
    %1097 = vmatpush1.bf16.xpose.msra.mxu0 0
    %1098 = vmatprep.subr.bf16.mxu0 0
    %1099 = vmatpush1.bf16.xpose.msra.mxu0 0
    %1100 = vmatprep.subr.bf16.mxu0 0
    %1101 = vmatpush1.bf16.xpose.msra.mxu0 0
    %1102 = vmatprep.subr.bf16.mxu0 0
    %1103 = vmatpush1.bf16.xpose.msra.mxu0 0
    %1104 = vmatprep.subr.bf16.mxu0 0
    %1105 = vmatpush1.bf16.xpose.msra.mxu0 0
    %1106 = vmatprep.mubr.bf16.mxu0 0
    %1107 = vmatmul.mubr.bf16.gmra.mrb[0].mxu0 %v1069
    %v1108 = vpop.f32.mrb[0].mxu0
    %v1109 = vadd.f32 0.0, %v1108
    %v1110 = vpop.f32.mrb[0].mxu0
    %v1111 = vpop.f32.mrb[0].mxu0
    %v1112 = vpop.f32.mrb[0].mxu0
    %1113 = vdwg.mxu0
    %1114 = vrot.lane.b32.xlu0 %v444, 124
    %v1115 = vpop.permute.xlu0 %1114
    %1116 = vrot.lane.b32.xlu0 %v444, 112
    %v1117 = vpop.permute.xlu0 %1116
    %v1119 = vsel %vm452, %v1115, 0
    %v1122 = vsel %vm452, %v1117, 0
    %1124 = vmatprep.subr.bf16.mxu0 0
    %1125 = vmatpush1.bf16.xpose.msra.mxu0 %v1122
    %1126 = vmatprep.subr.bf16.mxu0 0
    %1127 = vmatpush1.bf16.xpose.msra.mxu0 0
    %1128 = vmatprep.subr.bf16.mxu0 0
    %1129 = vmatpush1.bf16.xpose.msra.mxu0 0
    %1130 = vmatprep.subr.bf16.mxu0 0
    %1131 = vmatpush1.bf16.xpose.msra.mxu0 0
    %1132 = vmatprep.subr.bf16.mxu0 0
    %1133 = vmatpush1.bf16.xpose.msra.mxu0 0
    %1134 = vmatprep.subr.bf16.mxu0 0
    %1135 = vmatpush1.bf16.xpose.msra.mxu0 0
    %1136 = vmatprep.subr.bf16.mxu0 0
    %1137 = vmatpush1.bf16.xpose.msra.mxu0 0
    %1138 = vmatprep.subr.bf16.mxu0 0
    %1139 = vmatpush1.bf16.xpose.msra.mxu0 0
    %1140 = vmatprep.subr.bf16.mxu0 0
    %1141 = vmatpush1.bf16.xpose.msra.mxu0 0
    %1142 = vmatprep.subr.bf16.mxu0 0
    %1143 = vmatpush1.bf16.xpose.msra.mxu0 0
    %1144 = vmatprep.subr.bf16.mxu0 0
    %1145 = vmatpush1.bf16.xpose.msra.mxu0 0
    %1146 = vmatprep.subr.bf16.mxu0 0
    %1147 = vmatpush1.bf16.xpose.msra.mxu0 0
    %1148 = vmatprep.subr.bf16.mxu0 0
    %1149 = vmatpush1.bf16.xpose.msra.mxu0 0
    %1150 = vmatprep.subr.bf16.mxu0 0
    %1151 = vmatpush1.bf16.xpose.msra.mxu0 0
    %1152 = vmatprep.subr.bf16.mxu0 0
    %1153 = vmatpush1.bf16.xpose.msra.mxu0 0
    %1154 = vmatprep.subr.bf16.mxu0 0
    %1155 = vmatpush1.bf16.xpose.msra.mxu0 0
    %1156 = vmatprep.mubr.bf16.mxu0 0
    %1157 = vmatmul.mubr.bf16.gmra.mrb[0].mxu0 %v1119
    %v1158 = vpop.f32.mrb[0].mxu0
    %v1159 = vadd.f32 0.0, %v1158
    %v1160 = vpop.f32.mrb[0].mxu0
    %v1161 = vpop.f32.mrb[0].mxu0
    %v1162 = vpop.f32.mrb[0].mxu0
    %1163 = vdwg.mxu0
    %1164 = vrot.lane.b32.xlu0 %v445, 124
    %v1165 = vpop.permute.xlu0 %1164
    %1166 = vrot.lane.b32.xlu0 %v445, 112
    %v1167 = vpop.permute.xlu0 %1166
    %v1169 = vsel %vm452, %v1165, 0
    %v1172 = vsel %vm452, %v1167, 0
    %1174 = vmatprep.subr.bf16.mxu0 0
    %1175 = vmatpush1.bf16.xpose.msra.mxu0 %v1172
    %1176 = vmatprep.subr.bf16.mxu0 0
    %1177 = vmatpush1.bf16.xpose.msra.mxu0 0
    %1178 = vmatprep.subr.bf16.mxu0 0
    %1179 = vmatpush1.bf16.xpose.msra.mxu0 0
    %1180 = vmatprep.subr.bf16.mxu0 0
    %1181 = vmatpush1.bf16.xpose.msra.mxu0 0
    %1182 = vmatprep.subr.bf16.mxu0 0
    %1183 = vmatpush1.bf16.xpose.msra.mxu0 0
    %1184 = vmatprep.subr.bf16.mxu0 0
    %1185 = vmatpush1.bf16.xpose.msra.mxu0 0
    %1186 = vmatprep.subr.bf16.mxu0 0
    %1187 = vmatpush1.bf16.xpose.msra.mxu0 0
    %1188 = vmatprep.subr.bf16.mxu0 0
    %1189 = vmatpush1.bf16.xpose.msra.mxu0 0
    %1190 = vmatprep.subr.bf16.mxu0 0
    %1191 = vmatpush1.bf16.xpose.msra.mxu0 0
    %1192 = vmatprep.subr.bf16.mxu0 0
    %1193 = vmatpush1.bf16.xpose.msra.mxu0 0
    %1194 = vmatprep.subr.bf16.mxu0 0
    %1195 = vmatpush1.bf16.xpose.msra.mxu0 0
    %1196 = vmatprep.subr.bf16.mxu0 0
    %1197 = vmatpush1.bf16.xpose.msra.mxu0 0
    %1198 = vmatprep.subr.bf16.mxu0 0
    %1199 = vmatpush1.bf16.xpose.msra.mxu0 0
    %1200 = vmatprep.subr.bf16.mxu0 0
    %1201 = vmatpush1.bf16.xpose.msra.mxu0 0
    %1202 = vmatprep.subr.bf16.mxu0 0
    %1203 = vmatpush1.bf16.xpose.msra.mxu0 0
    %1204 = vmatprep.subr.bf16.mxu0 0
    %1205 = vmatpush1.bf16.xpose.msra.mxu0 0
    %1206 = vmatprep.mubr.bf16.mxu0 0
    %1207 = vmatmul.mubr.bf16.gmra.mrb[0].mxu0 %v1169
    %v1208 = vpop.f32.mrb[0].mxu0
    %v1209 = vadd.f32 0.0, %v1208
    %v1210 = vpop.f32.mrb[0].mxu0
    %v1211 = vpop.f32.mrb[0].mxu0
    %v1212 = vpop.f32.mrb[0].mxu0
    %1213 = vdwg.mxu0
    %1214 = vrot.lane.b32.xlu0 %v446, 124
    %v1215 = vpop.permute.xlu0 %1214
    %1216 = vrot.lane.b32.xlu0 %v446, 112
    %v1217 = vpop.permute.xlu0 %1216
    %v1219 = vsel %vm452, %v1215, 0
    %v1222 = vsel %vm452, %v1217, 0
    %1224 = vmatprep.subr.bf16.mxu0 0
    %1225 = vmatpush1.bf16.xpose.msra.mxu0 %v1222
    %1226 = vmatprep.subr.bf16.mxu0 0
    %1227 = vmatpush1.bf16.xpose.msra.mxu0 0
    %1228 = vmatprep.subr.bf16.mxu0 0
    %1229 = vmatpush1.bf16.xpose.msra.mxu0 0
    %1230 = vmatprep.subr.bf16.mxu0 0
    %1231 = vmatpush1.bf16.xpose.msra.mxu0 0
    %1232 = vmatprep.subr.bf16.mxu0 0
    %1233 = vmatpush1.bf16.xpose.msra.mxu0 0
    %1234 = vmatprep.subr.bf16.mxu0 0
    %1235 = vmatpush1.bf16.xpose.msra.mxu0 0
    %1236 = vmatprep.subr.bf16.mxu0 0
    %1237 = vmatpush1.bf16.xpose.msra.mxu0 0
    %1238 = vmatprep.subr.bf16.mxu0 0
    %1239 = vmatpush1.bf16.xpose.msra.mxu0 0
    %1240 = vmatprep.subr.bf16.mxu0 0
    %1241 = vmatpush1.bf16.xpose.msra.mxu0 0
    %1242 = vmatprep.subr.bf16.mxu0 0
    %1243 = vmatpush1.bf16.xpose.msra.mxu0 0
    %1244 = vmatprep.subr.bf16.mxu0 0
    %1245 = vmatpush1.bf16.xpose.msra.mxu0 0
    %1246 = vmatprep.subr.bf16.mxu0 0
    %1247 = vmatpush1.bf16.xpose.msra.mxu0 0
    %1248 = vmatprep.subr.bf16.mxu0 0
    %1249 = vmatpush1.bf16.xpose.msra.mxu0 0
    %1250 = vmatprep.subr.bf16.mxu0 0
    %1251 = vmatpush1.bf16.xpose.msra.mxu0 0
    %1252 = vmatprep.subr.bf16.mxu0 0
    %1253 = vmatpush1.bf16.xpose.msra.mxu0 0
    %1254 = vmatprep.subr.bf16.mxu0 0
    %1255 = vmatpush1.bf16.xpose.msra.mxu0 0
    %1256 = vmatprep.mubr.bf16.mxu0 0
    %1257 = vmatmul.mubr.bf16.gmra.mrb[0].mxu0 %v1219
    %v1258 = vpop.f32.mrb[0].mxu0
    %v1259 = vadd.f32 0.0, %v1258
    %v1260 = vpop.f32.mrb[0].mxu0
    %v1261 = vpop.f32.mrb[0].mxu0
    %v1262 = vpop.f32.mrb[0].mxu0
    %1263 = vdwg.mxu0
    %1264 = vrot.lane.b32.xlu0 %v447, 124
    %v1265 = vpop.permute.xlu0 %1264
    %1266 = vrot.lane.b32.xlu0 %v447, 112
    %v1267 = vpop.permute.xlu0 %1266
    %v1269 = vsel %vm452, %v1265, 0
    %v1272 = vsel %vm452, %v1267, 0
    %1274 = vmatprep.subr.bf16.mxu0 0
    %1275 = vmatpush1.bf16.xpose.msra.mxu0 %v1272
    %1276 = vmatprep.subr.bf16.mxu0 0
    %1277 = vmatpush1.bf16.xpose.msra.mxu0 0
    %1278 = vmatprep.subr.bf16.mxu0 0
    %1279 = vmatpush1.bf16.xpose.msra.mxu0 0
    %1280 = vmatprep.subr.bf16.mxu0 0
    %1281 = vmatpush1.bf16.xpose.msra.mxu0 0
    %1282 = vmatprep.subr.bf16.mxu0 0
    %1283 = vmatpush1.bf16.xpose.msra.mxu0 0
    %1284 = vmatprep.subr.bf16.mxu0 0
    %1285 = vmatpush1.bf16.xpose.msra.mxu0 0
    %1286 = vmatprep.subr.bf16.mxu0 0
    %1287 = vmatpush1.bf16.xpose.msra.mxu0 0
    %1288 = vmatprep.subr.bf16.mxu0 0
    %1289 = vmatpush1.bf16.xpose.msra.mxu0 0
    %1290 = vmatprep.subr.bf16.mxu0 0
    %1291 = vmatpush1.bf16.xpose.msra.mxu0 0
    %1292 = vmatprep.subr.bf16.mxu0 0
    %1293 = vmatpush1.bf16.xpose.msra.mxu0 0
    %1294 = vmatprep.subr.bf16.mxu0 0
    %1295 = vmatpush1.bf16.xpose.msra.mxu0 0
    %1296 = vmatprep.subr.bf16.mxu0 0
    %1297 = vmatpush1.bf16.xpose.msra.mxu0 0
    %1298 = vmatprep.subr.bf16.mxu0 0
    %1299 = vmatpush1.bf16.xpose.msra.mxu0 0
    %1300 = vmatprep.subr.bf16.mxu0 0
    %1301 = vmatpush1.bf16.xpose.msra.mxu0 0
    %1302 = vmatprep.subr.bf16.mxu0 0
    %1303 = vmatpush1.bf16.xpose.msra.mxu0 0
    %1304 = vmatprep.subr.bf16.mxu0 0
    %1305 = vmatpush1.bf16.xpose.msra.mxu0 0
    %1306 = vmatprep.mubr.bf16.mxu0 0
    %1307 = vmatmul.mubr.bf16.gmra.mrb[0].mxu0 %v1269
    %v1308 = vpop.f32.mrb[0].mxu0
    %v1309 = vadd.f32 0.0, %v1308
    %v1310 = vpop.f32.mrb[0].mxu0
    %v1311 = vpop.f32.mrb[0].mxu0
    %v1312 = vpop.f32.mrb[0].mxu0
    %1313 = vdwg.mxu0
    %1314 = vrot.lane.b32.xlu0 %v448, 124
    %v1315 = vpop.permute.xlu0 %1314
    %1316 = vrot.lane.b32.xlu0 %v448, 112
    %v1317 = vpop.permute.xlu0 %1316
    %v1319 = vsel %vm452, %v1315, 0
    %v1322 = vsel %vm452, %v1317, 0
    %1324 = vmatprep.subr.bf16.mxu0 0
    %1325 = vmatpush1.bf16.xpose.msra.mxu0 %v1322
    %1326 = vmatprep.subr.bf16.mxu0 0
    %1327 = vmatpush1.bf16.xpose.msra.mxu0 0
    %1328 = vmatprep.subr.bf16.mxu0 0
    %1329 = vmatpush1.bf16.xpose.msra.mxu0 0
    %1330 = vmatprep.subr.bf16.mxu0 0
    %1331 = vmatpush1.bf16.xpose.msra.mxu0 0
    %1332 = vmatprep.subr.bf16.mxu0 0
    %1333 = vmatpush1.bf16.xpose.msra.mxu0 0
    %1334 = vmatprep.subr.bf16.mxu0 0
    %1335 = vmatpush1.bf16.xpose.msra.mxu0 0
    %1336 = vmatprep.subr.bf16.mxu0 0
    %1337 = vmatpush1.bf16.xpose.msra.mxu0 0
    %1338 = vmatprep.subr.bf16.mxu0 0
    %1339 = vmatpush1.bf16.xpose.msra.mxu0 0
    %1340 = vmatprep.subr.bf16.mxu0 0
    %1341 = vmatpush1.bf16.xpose.msra.mxu0 0
    %1342 = vmatprep.subr.bf16.mxu0 0
    %1343 = vmatpush1.bf16.xpose.msra.mxu0 0
    %1344 = vmatprep.subr.bf16.mxu0 0
    %1345 = vmatpush1.bf16.xpose.msra.mxu0 0
    %1346 = vmatprep.subr.bf16.mxu0 0
    %1347 = vmatpush1.bf16.xpose.msra.mxu0 0
    %1348 = vmatprep.subr.bf16.mxu0 0
    %1349 = vmatpush1.bf16.xpose.msra.mxu0 0
    %1350 = vmatprep.subr.bf16.mxu0 0
    %1351 = vmatpush1.bf16.xpose.msra.mxu0 0
    %1352 = vmatprep.subr.bf16.mxu0 0
    %1353 = vmatpush1.bf16.xpose.msra.mxu0 0
    %1354 = vmatprep.subr.bf16.mxu0 0
    %1355 = vmatpush1.bf16.xpose.msra.mxu0 0
    %1356 = vmatprep.mubr.bf16.mxu0 0
    %1357 = vmatmul.mubr.bf16.gmra.mrb[0].mxu0 %v1319
    %v1358 = vpop.f32.mrb[0].mxu0
    %v1359 = vadd.f32 0.0, %v1358
    %v1360 = vpop.f32.mrb[0].mxu0
    %v1361 = vpop.f32.mrb[0].mxu0
    %v1362 = vpop.f32.mrb[0].mxu0
    %1363 = vdwg.mxu0
    %v1364 = vmul.f32 %v1009, 0.5
    %v1365 = vmul.f32 %v1059, 0.5
    %v1366 = vmul.f32 %v1109, 0.5
    %v1367 = vmul.f32 %v1159, 0.5
    %v1368 = vmul.f32 %v1209, 0.5
    %v1369 = vmul.f32 %v1259, 0.5
    %v1370 = vmul.f32 %v1309, 0.5
    %v1371 = vmul.f32 %v1359, 0.5
    %v1372 = vsel %vm850, %v1364, -inf
    %1373 = vmax.xlane.f32.xlu0 %v1372
    %v1374 = vpop.xlane.xlu0 %1373
    %v1375 = vsel %vm850, %v1365, -inf
    %1376 = vmax.xlane.f32.xlu0 %v1375
    %v1377 = vpop.xlane.xlu0 %1376
    %v1378 = vsel %vm850, %v1366, -inf
    %1379 = vmax.xlane.f32.xlu0 %v1378
    %v1380 = vpop.xlane.xlu0 %1379
    %v1381 = vsel %vm850, %v1367, -inf
    %1382 = vmax.xlane.f32.xlu0 %v1381
    %v1383 = vpop.xlane.xlu0 %1382
    %v1384 = vsel %vm850, %v1368, -inf
    %1385 = vmax.xlane.f32.xlu0 %v1384
    %v1386 = vpop.xlane.xlu0 %1385
    %v1387 = vsel %vm850, %v1369, -inf
    %1388 = vmax.xlane.f32.xlu0 %v1387
    %v1389 = vpop.xlane.xlu0 %1388
    %v1390 = vsel %vm850, %v1370, -inf
    %1391 = vmax.xlane.f32.xlu0 %v1390
    %v1392 = vpop.xlane.xlu0 %1391
    %v1393 = vsel %vm850, %v1371, -inf
    %1394 = vmax.xlane.f32.xlu0 %v1393
    %v1395 = vpop.xlane.xlu0 %1394
    %v1396 = vsub.f32 %v1364, %v1374
    %v1397 = vsub.f32 %v1365, %v1377
    %v1398 = vsub.f32 %v1366, %v1380
    %v1399 = vsub.f32 %v1367, %v1383
    %v1400 = vsub.f32 %v1368, %v1386
    %v1401 = vsub.f32 %v1369, %v1389
    %v1402 = vsub.f32 %v1370, %v1392
    %v1403 = vsub.f32 %v1371, %v1395
    %v1404 = vmul.f32 %v1396, 1.442695
    %v1405 = vpow.pop %v1404
    %v1406 = vmul.f32 %v1397, 1.442695
    %v1407 = vpow.pop %v1406
    %v1408 = vmul.f32 %v1398, 1.442695
    %v1409 = vpow.pop %v1408
    %v1410 = vmul.f32 %v1399, 1.442695
    %v1411 = vpow.pop %v1410
    %v1412 = vmul.f32 %v1400, 1.442695
    %v1413 = vpow.pop %v1412
    %v1414 = vmul.f32 %v1401, 1.442695
    %v1415 = vpow.pop %v1414
    %v1416 = vmul.f32 %v1402, 1.442695
    %v1417 = vpow.pop %v1416
    %v1418 = vmul.f32 %v1403, 1.442695
    %v1419 = vpow.pop %v1418
    %v1420 = vsel %vm850, %v1405, 0.0
    %1421 = vadd.xlane.f32.xlu0 %v1420
    %v1422 = vpop.xlane.xlu0 %1421
    %v1423 = vsel %vm850, %v1407, 0.0
    %1424 = vadd.xlane.f32.xlu0 %v1423
    %v1425 = vpop.xlane.xlu0 %1424
    %v1426 = vsel %vm850, %v1409, 0.0
    %1427 = vadd.xlane.f32.xlu0 %v1426
    %v1428 = vpop.xlane.xlu0 %1427
    %v1429 = vsel %vm850, %v1411, 0.0
    %1430 = vadd.xlane.f32.xlu0 %v1429
    %v1431 = vpop.xlane.xlu0 %1430
    %v1432 = vsel %vm850, %v1413, 0.0
    %1433 = vadd.xlane.f32.xlu0 %v1432
    %v1434 = vpop.xlane.xlu0 %1433
    %v1435 = vsel %vm850, %v1415, 0.0
    %1436 = vadd.xlane.f32.xlu0 %v1435
    %v1437 = vpop.xlane.xlu0 %1436
    %v1438 = vsel %vm850, %v1417, 0.0
    %1439 = vadd.xlane.f32.xlu0 %v1438
    %v1440 = vpop.xlane.xlu0 %1439
    %v1441 = vsel %vm850, %v1419, 0.0
    %1442 = vadd.xlane.f32.xlu0 %v1441
    %v1443 = vpop.xlane.xlu0 %1442
    %v1444 = vrcp.pop %v1422
    %v1445 = vrcp.pop %v1425
    %v1446 = vrcp.pop %v1428
    %v1447 = vrcp.pop %v1431
    %v1448 = vrcp.pop %v1434
    %v1449 = vrcp.pop %v1437
    %v1450 = vrcp.pop %v1440
    %v1451 = vrcp.pop %v1443
    %v1452 = vmul.f32 %v1405, %v1444
    %v1453 = vmul.f32 %v1407, %v1445
    %v1454 = vmul.f32 %v1409, %v1446
    %v1455 = vmul.f32 %v1411, %v1447
    %v1456 = vmul.f32 %v1413, %v1448
    %v1457 = vmul.f32 %v1415, %v1449
    %v1458 = vmul.f32 %v1417, %v1450
    %v1459 = vmul.f32 %v1419, %v1451
    %s1460 = scalar_lea.vmem %s5, 8
    %v1461 = vld [vmem:[%s1460] sm:$0xff]
    %v1462 = vmul.f32 %v1452, %v1461
    %v1463 = vmul.f32 %v1453, %v1461
    %v1464 = vmul.f32 %v1454, %v1461
    %v1465 = vmul.f32 %v1455, %v1461
    %v1466 = vmul.f32 %v1456, %v1461
    %v1467 = vmul.f32 %v1457, %v1461
    %v1468 = vmul.f32 %v1458, %v1461
    %v1469 = vmul.f32 %v1459, %v1461
    %v1470 = vpack.c.bf16 %v1462, %v1462
    %v1471 = vpack.c.bf16 %v1463, %v1463
    %v1472 = vpack.c.bf16 %v1464, %v1464
    %v1473 = vpack.c.bf16 %v1465, %v1465
    %v1474 = vpack.c.bf16 %v1466, %v1466
    %v1475 = vpack.c.bf16 %v1467, %v1467
    %v1476 = vpack.c.bf16 %v1468, %v1468
    %v1477 = vpack.c.bf16 %v1469, %v1469
    %1479 = vrot.lane.b32.xlu0 %v956, 96
    %v1480 = vpop.permute.xlu0 %1479
    %v1482 = vsel %vm850, %v1470, 0
    %vm1484 = vcmask 1043456
    %v1486 = vsel %vm1484, %v1480, 0
    %1488 = vmatprep.subr.bf16.mxu0 0
    %1489 = vmatpush1.bf16.msra.mxu0 %v1486
    %1490 = vmatprep.subr.bf16.mxu0 0
    %1491 = vmatpush1.bf16.msra.mxu0 0
    %1492 = vmatprep.subr.bf16.mxu0 0
    %1493 = vmatpush1.bf16.msra.mxu0 0
    %1494 = vmatprep.subr.bf16.mxu0 0
    %1495 = vmatpush1.bf16.msra.mxu0 0
    %1496 = vmatprep.subr.bf16.mxu0 0
    %1497 = vmatpush1.bf16.msra.mxu0 0
    %1498 = vmatprep.subr.bf16.mxu0 0
    %1499 = vmatpush1.bf16.msra.mxu0 0
    %1500 = vmatprep.subr.bf16.mxu0 0
    %1501 = vmatpush1.bf16.msra.mxu0 0
    %1502 = vmatprep.subr.bf16.mxu0 0
    %1503 = vmatpush1.bf16.msra.mxu0 0
    %1504 = vmatprep.subr.bf16.mxu0 0
    %1505 = vmatpush1.bf16.msra.mxu0 0
    %1506 = vmatprep.subr.bf16.mxu0 0
    %1507 = vmatpush1.bf16.msra.mxu0 0
    %1508 = vmatprep.subr.bf16.mxu0 0
    %1509 = vmatpush1.bf16.msra.mxu0 0
    %1510 = vmatprep.subr.bf16.mxu0 0
    %1511 = vmatpush1.bf16.msra.mxu0 0
    %1512 = vmatprep.subr.bf16.mxu0 0
    %1513 = vmatpush1.bf16.msra.mxu0 0
    %1514 = vmatprep.subr.bf16.mxu0 0
    %1515 = vmatpush1.bf16.msra.mxu0 0
    %1516 = vmatprep.subr.bf16.mxu0 0
    %1517 = vmatpush1.bf16.msra.mxu0 0
    %1518 = vmatprep.subr.bf16.mxu0 0
    %1519 = vmatpush1.bf16.msra.mxu0 0
    %1520 = vmatprep.mubr.bf16.mxu0 0
    %1521 = vmatmul.mubr.bf16.gmra.mrb[0].mxu0 %v1482
    %v1522 = vpop.f32.mrb[0].mxu0
    %v1523 = vadd.f32 0.0, %v1522
    %v1524 = vpop.f32.mrb[0].mxu0
    %v1525 = vpop.f32.mrb[0].mxu0
    %v1526 = vpop.f32.mrb[0].mxu0
    %1527 = vdwg.mxu0
    %1529 = vrot.lane.b32.xlu0 %v957, 96
    %v1530 = vpop.permute.xlu0 %1529
    %v1532 = vsel %vm850, %v1471, 0
    %v1535 = vsel %vm1484, %v1530, 0
    %1537 = vmatprep.subr.bf16.mxu0 0
    %1538 = vmatpush1.bf16.msra.mxu0 %v1535
    %1539 = vmatprep.subr.bf16.mxu0 0
    %1540 = vmatpush1.bf16.msra.mxu0 0
    %1541 = vmatprep.subr.bf16.mxu0 0
    %1542 = vmatpush1.bf16.msra.mxu0 0
    %1543 = vmatprep.subr.bf16.mxu0 0
    %1544 = vmatpush1.bf16.msra.mxu0 0
    %1545 = vmatprep.subr.bf16.mxu0 0
    %1546 = vmatpush1.bf16.msra.mxu0 0
    %1547 = vmatprep.subr.bf16.mxu0 0
    %1548 = vmatpush1.bf16.msra.mxu0 0
    %1549 = vmatprep.subr.bf16.mxu0 0
    %1550 = vmatpush1.bf16.msra.mxu0 0
    %1551 = vmatprep.subr.bf16.mxu0 0
    %1552 = vmatpush1.bf16.msra.mxu0 0
    %1553 = vmatprep.subr.bf16.mxu0 0
    %1554 = vmatpush1.bf16.msra.mxu0 0
    %1555 = vmatprep.subr.bf16.mxu0 0
    %1556 = vmatpush1.bf16.msra.mxu0 0
    %1557 = vmatprep.subr.bf16.mxu0 0
    %1558 = vmatpush1.bf16.msra.mxu0 0
    %1559 = vmatprep.subr.bf16.mxu0 0
    %1560 = vmatpush1.bf16.msra.mxu0 0
    %1561 = vmatprep.subr.bf16.mxu0 0
    %1562 = vmatpush1.bf16.msra.mxu0 0
    %1563 = vmatprep.subr.bf16.mxu0 0
    %1564 = vmatpush1.bf16.msra.mxu0 0
    %1565 = vmatprep.subr.bf16.mxu0 0
    %1566 = vmatpush1.bf16.msra.mxu0 0
    %1567 = vmatprep.subr.bf16.mxu0 0
    %1568 = vmatpush1.bf16.msra.mxu0 0
    %1569 = vmatprep.mubr.bf16.mxu0 0
    %1570 = vmatmul.mubr.bf16.gmra.mrb[0].mxu0 %v1532
    %v1571 = vpop.f32.mrb[0].mxu0
    %v1572 = vadd.f32 0.0, %v1571
    %v1573 = vpop.f32.mrb[0].mxu0
    %v1574 = vpop.f32.mrb[0].mxu0
    %v1575 = vpop.f32.mrb[0].mxu0
    %1576 = vdwg.mxu0
    %1578 = vrot.lane.b32.xlu0 %v958, 96
    %v1579 = vpop.permute.xlu0 %1578
    %v1581 = vsel %vm850, %v1472, 0
    %v1584 = vsel %vm1484, %v1579, 0
    %1586 = vmatprep.subr.bf16.mxu0 0
    %1587 = vmatpush1.bf16.msra.mxu0 %v1584
    %1588 = vmatprep.subr.bf16.mxu0 0
    %1589 = vmatpush1.bf16.msra.mxu0 0
    %1590 = vmatprep.subr.bf16.mxu0 0
    %1591 = vmatpush1.bf16.msra.mxu0 0
    %1592 = vmatprep.subr.bf16.mxu0 0
    %1593 = vmatpush1.bf16.msra.mxu0 0
    %1594 = vmatprep.subr.bf16.mxu0 0
    %1595 = vmatpush1.bf16.msra.mxu0 0
    %1596 = vmatprep.subr.bf16.mxu0 0
    %1597 = vmatpush1.bf16.msra.mxu0 0
    %1598 = vmatprep.subr.bf16.mxu0 0
    %1599 = vmatpush1.bf16.msra.mxu0 0
    %1600 = vmatprep.subr.bf16.mxu0 0
    %1601 = vmatpush1.bf16.msra.mxu0 0
    %1602 = vmatprep.subr.bf16.mxu0 0
    %1603 = vmatpush1.bf16.msra.mxu0 0
    %1604 = vmatprep.subr.bf16.mxu0 0
    %1605 = vmatpush1.bf16.msra.mxu0 0
    %1606 = vmatprep.subr.bf16.mxu0 0
    %1607 = vmatpush1.bf16.msra.mxu0 0
    %1608 = vmatprep.subr.bf16.mxu0 0
    %1609 = vmatpush1.bf16.msra.mxu0 0
    %1610 = vmatprep.subr.bf16.mxu0 0
    %1611 = vmatpush1.bf16.msra.mxu0 0
    %1612 = vmatprep.subr.bf16.mxu0 0
    %1613 = vmatpush1.bf16.msra.mxu0 0
    %1614 = vmatprep.subr.bf16.mxu0 0
    %1615 = vmatpush1.bf16.msra.mxu0 0
    %1616 = vmatprep.subr.bf16.mxu0 0
    %1617 = vmatpush1.bf16.msra.mxu0 0
    %1618 = vmatprep.mubr.bf16.mxu0 0
    %1619 = vmatmul.mubr.bf16.gmra.mrb[0].mxu0 %v1581
    %v1620 = vpop.f32.mrb[0].mxu0
    %v1621 = vadd.f32 0.0, %v1620
    %v1622 = vpop.f32.mrb[0].mxu0
    %v1623 = vpop.f32.mrb[0].mxu0
    %v1624 = vpop.f32.mrb[0].mxu0
    %1625 = vdwg.mxu0
    %1627 = vrot.lane.b32.xlu0 %v959, 96
    %v1628 = vpop.permute.xlu0 %1627
    %v1630 = vsel %vm850, %v1473, 0
    %v1633 = vsel %vm1484, %v1628, 0
    %1635 = vmatprep.subr.bf16.mxu0 0
    %1636 = vmatpush1.bf16.msra.mxu0 %v1633
    %1637 = vmatprep.subr.bf16.mxu0 0
    %1638 = vmatpush1.bf16.msra.mxu0 0
    %1639 = vmatprep.subr.bf16.mxu0 0
    %1640 = vmatpush1.bf16.msra.mxu0 0
    %1641 = vmatprep.subr.bf16.mxu0 0
    %1642 = vmatpush1.bf16.msra.mxu0 0
    %1643 = vmatprep.subr.bf16.mxu0 0
    %1644 = vmatpush1.bf16.msra.mxu0 0
    %1645 = vmatprep.subr.bf16.mxu0 0
    %1646 = vmatpush1.bf16.msra.mxu0 0
    %1647 = vmatprep.subr.bf16.mxu0 0
    %1648 = vmatpush1.bf16.msra.mxu0 0
    %1649 = vmatprep.subr.bf16.mxu0 0
    %1650 = vmatpush1.bf16.msra.mxu0 0
    %1651 = vmatprep.subr.bf16.mxu0 0
    %1652 = vmatpush1.bf16.msra.mxu0 0
    %1653 = vmatprep.subr.bf16.mxu0 0
    %1654 = vmatpush1.bf16.msra.mxu0 0
    %1655 = vmatprep.subr.bf16.mxu0 0
    %1656 = vmatpush1.bf16.msra.mxu0 0
    %1657 = vmatprep.subr.bf16.mxu0 0
    %1658 = vmatpush1.bf16.msra.mxu0 0
    %1659 = vmatprep.subr.bf16.mxu0 0
    %1660 = vmatpush1.bf16.msra.mxu0 0
    %1661 = vmatprep.subr.bf16.mxu0 0
    %1662 = vmatpush1.bf16.msra.mxu0 0
    %1663 = vmatprep.subr.bf16.mxu0 0
    %1664 = vmatpush1.bf16.msra.mxu0 0
    %1665 = vmatprep.subr.bf16.mxu0 0
    %1666 = vmatpush1.bf16.msra.mxu0 0
    %1667 = vmatprep.mubr.bf16.mxu0 0
    %1668 = vmatmul.mubr.bf16.gmra.mrb[0].mxu0 %v1630
    %v1669 = vpop.f32.mrb[0].mxu0
    %v1670 = vadd.f32 0.0, %v1669
    %v1671 = vpop.f32.mrb[0].mxu0
    %v1672 = vpop.f32.mrb[0].mxu0
    %v1673 = vpop.f32.mrb[0].mxu0
    %1674 = vdwg.mxu0
    %1676 = vrot.lane.b32.xlu0 %v960, 96
    %v1677 = vpop.permute.xlu0 %1676
    %v1679 = vsel %vm850, %v1474, 0
    %v1682 = vsel %vm1484, %v1677, 0
    %1684 = vmatprep.subr.bf16.mxu0 0
    %1685 = vmatpush1.bf16.msra.mxu0 %v1682
    %1686 = vmatprep.subr.bf16.mxu0 0
    %1687 = vmatpush1.bf16.msra.mxu0 0
    %1688 = vmatprep.subr.bf16.mxu0 0
    %1689 = vmatpush1.bf16.msra.mxu0 0
    %1690 = vmatprep.subr.bf16.mxu0 0
    %1691 = vmatpush1.bf16.msra.mxu0 0
    %1692 = vmatprep.subr.bf16.mxu0 0
    %1693 = vmatpush1.bf16.msra.mxu0 0
    %1694 = vmatprep.subr.bf16.mxu0 0
    %1695 = vmatpush1.bf16.msra.mxu0 0
    %1696 = vmatprep.subr.bf16.mxu0 0
    %1697 = vmatpush1.bf16.msra.mxu0 0
    %1698 = vmatprep.subr.bf16.mxu0 0
    %1699 = vmatpush1.bf16.msra.mxu0 0
    %1700 = vmatprep.subr.bf16.mxu0 0
    %1701 = vmatpush1.bf16.msra.mxu0 0
    %1702 = vmatprep.subr.bf16.mxu0 0
    %1703 = vmatpush1.bf16.msra.mxu0 0
    %1704 = vmatprep.subr.bf16.mxu0 0
    %1705 = vmatpush1.bf16.msra.mxu0 0
    %1706 = vmatprep.subr.bf16.mxu0 0
    %1707 = vmatpush1.bf16.msra.mxu0 0
    %1708 = vmatprep.subr.bf16.mxu0 0
    %1709 = vmatpush1.bf16.msra.mxu0 0
    %1710 = vmatprep.subr.bf16.mxu0 0
    %1711 = vmatpush1.bf16.msra.mxu0 0
    %1712 = vmatprep.subr.bf16.mxu0 0
    %1713 = vmatpush1.bf16.msra.mxu0 0
    %1714 = vmatprep.subr.bf16.mxu0 0
    %1715 = vmatpush1.bf16.msra.mxu0 0
    %1716 = vmatprep.mubr.bf16.mxu0 0
    %1717 = vmatmul.mubr.bf16.gmra.mrb[0].mxu0 %v1679
    %v1718 = vpop.f32.mrb[0].mxu0
    %v1719 = vadd.f32 0.0, %v1718
    %v1720 = vpop.f32.mrb[0].mxu0
    %v1721 = vpop.f32.mrb[0].mxu0
    %v1722 = vpop.f32.mrb[0].mxu0
    %1723 = vdwg.mxu0
    %1725 = vrot.lane.b32.xlu0 %v961, 96
    %v1726 = vpop.permute.xlu0 %1725
    %v1728 = vsel %vm850, %v1475, 0
    %v1731 = vsel %vm1484, %v1726, 0
    %1733 = vmatprep.subr.bf16.mxu0 0
    %1734 = vmatpush1.bf16.msra.mxu0 %v1731
    %1735 = vmatprep.subr.bf16.mxu0 0
    %1736 = vmatpush1.bf16.msra.mxu0 0
    %1737 = vmatprep.subr.bf16.mxu0 0
    %1738 = vmatpush1.bf16.msra.mxu0 0
    %1739 = vmatprep.subr.bf16.mxu0 0
    %1740 = vmatpush1.bf16.msra.mxu0 0
    %1741 = vmatprep.subr.bf16.mxu0 0
    %1742 = vmatpush1.bf16.msra.mxu0 0
    %1743 = vmatprep.subr.bf16.mxu0 0
    %1744 = vmatpush1.bf16.msra.mxu0 0
    %1745 = vmatprep.subr.bf16.mxu0 0
    %1746 = vmatpush1.bf16.msra.mxu0 0
    %1747 = vmatprep.subr.bf16.mxu0 0
    %1748 = vmatpush1.bf16.msra.mxu0 0
    %1749 = vmatprep.subr.bf16.mxu0 0
    %1750 = vmatpush1.bf16.msra.mxu0 0
    %1751 = vmatprep.subr.bf16.mxu0 0
    %1752 = vmatpush1.bf16.msra.mxu0 0
    %1753 = vmatprep.subr.bf16.mxu0 0
    %1754 = vmatpush1.bf16.msra.mxu0 0
    %1755 = vmatprep.subr.bf16.mxu0 0
    %1756 = vmatpush1.bf16.msra.mxu0 0
    %1757 = vmatprep.subr.bf16.mxu0 0
    %1758 = vmatpush1.bf16.msra.mxu0 0
    %1759 = vmatprep.subr.bf16.mxu0 0
    %1760 = vmatpush1.bf16.msra.mxu0 0
    %1761 = vmatprep.subr.bf16.mxu0 0
    %1762 = vmatpush1.bf16.msra.mxu0 0
    %1763 = vmatprep.subr.bf16.mxu0 0
    %1764 = vmatpush1.bf16.msra.mxu0 0
    %1765 = vmatprep.mubr.bf16.mxu0 0
    %1766 = vmatmul.mubr.bf16.gmra.mrb[0].mxu0 %v1728
    %v1767 = vpop.f32.mrb[0].mxu0
    %v1768 = vadd.f32 0.0, %v1767
    %v1769 = vpop.f32.mrb[0].mxu0
    %v1770 = vpop.f32.mrb[0].mxu0
    %v1771 = vpop.f32.mrb[0].mxu0
    %1772 = vdwg.mxu0
    %1774 = vrot.lane.b32.xlu0 %v962, 96
    %v1775 = vpop.permute.xlu0 %1774
    %v1777 = vsel %vm850, %v1476, 0
    %v1780 = vsel %vm1484, %v1775, 0
    %1782 = vmatprep.subr.bf16.mxu0 0
    %1783 = vmatpush1.bf16.msra.mxu0 %v1780
    %1784 = vmatprep.subr.bf16.mxu0 0
    %1785 = vmatpush1.bf16.msra.mxu0 0
    %1786 = vmatprep.subr.bf16.mxu0 0
    %1787 = vmatpush1.bf16.msra.mxu0 0
    %1788 = vmatprep.subr.bf16.mxu0 0
    %1789 = vmatpush1.bf16.msra.mxu0 0
    %1790 = vmatprep.subr.bf16.mxu0 0
    %1791 = vmatpush1.bf16.msra.mxu0 0
    %1792 = vmatprep.subr.bf16.mxu0 0
    %1793 = vmatpush1.bf16.msra.mxu0 0
    %1794 = vmatprep.subr.bf16.mxu0 0
    %1795 = vmatpush1.bf16.msra.mxu0 0
    %1796 = vmatprep.subr.bf16.mxu0 0
    %1797 = vmatpush1.bf16.msra.mxu0 0
    %1798 = vmatprep.subr.bf16.mxu0 0
    %1799 = vmatpush1.bf16.msra.mxu0 0
    %1800 = vmatprep.subr.bf16.mxu0 0
    %1801 = vmatpush1.bf16.msra.mxu0 0
    %1802 = vmatprep.subr.bf16.mxu0 0
    %1803 = vmatpush1.bf16.msra.mxu0 0
    %1804 = vmatprep.subr.bf16.mxu0 0
    %1805 = vmatpush1.bf16.msra.mxu0 0
    %1806 = vmatprep.subr.bf16.mxu0 0
    %1807 = vmatpush1.bf16.msra.mxu0 0
    %1808 = vmatprep.subr.bf16.mxu0 0
    %1809 = vmatpush1.bf16.msra.mxu0 0
    %1810 = vmatprep.subr.bf16.mxu0 0
    %1811 = vmatpush1.bf16.msra.mxu0 0
    %1812 = vmatprep.subr.bf16.mxu0 0
    %1813 = vmatpush1.bf16.msra.mxu0 0
    %1814 = vmatprep.mubr.bf16.mxu0 0
    %1815 = vmatmul.mubr.bf16.gmra.mrb[0].mxu0 %v1777
    %v1816 = vpop.f32.mrb[0].mxu0
    %v1817 = vadd.f32 0.0, %v1816
    %v1818 = vpop.f32.mrb[0].mxu0
    %v1819 = vpop.f32.mrb[0].mxu0
    %v1820 = vpop.f32.mrb[0].mxu0
    %1821 = vdwg.mxu0
    %1823 = vrot.lane.b32.xlu0 %v963, 96
    %v1824 = vpop.permute.xlu0 %1823
    %v1826 = vsel %vm850, %v1477, 0
    %v1829 = vsel %vm1484, %v1824, 0
    %1831 = vmatprep.subr.bf16.mxu0 0
    %1832 = vmatpush1.bf16.msra.mxu0 %v1829
    %1833 = vmatprep.subr.bf16.mxu0 0
    %1834 = vmatpush1.bf16.msra.mxu0 0
    %1835 = vmatprep.subr.bf16.mxu0 0
    %1836 = vmatpush1.bf16.msra.mxu0 0
    %1837 = vmatprep.subr.bf16.mxu0 0
    %1838 = vmatpush1.bf16.msra.mxu0 0
    %1839 = vmatprep.subr.bf16.mxu0 0
    %1840 = vmatpush1.bf16.msra.mxu0 0
    %1841 = vmatprep.subr.bf16.mxu0 0
    %1842 = vmatpush1.bf16.msra.mxu0 0
    %1843 = vmatprep.subr.bf16.mxu0 0
    %1844 = vmatpush1.bf16.msra.mxu0 0
    %1845 = vmatprep.subr.bf16.mxu0 0
    %1846 = vmatpush1.bf16.msra.mxu0 0
    %1847 = vmatprep.subr.bf16.mxu0 0
    %1848 = vmatpush1.bf16.msra.mxu0 0
    %1849 = vmatprep.subr.bf16.mxu0 0
    %1850 = vmatpush1.bf16.msra.mxu0 0
    %1851 = vmatprep.subr.bf16.mxu0 0
    %1852 = vmatpush1.bf16.msra.mxu0 0
    %1853 = vmatprep.subr.bf16.mxu0 0
    %1854 = vmatpush1.bf16.msra.mxu0 0
    %1855 = vmatprep.subr.bf16.mxu0 0
    %1856 = vmatpush1.bf16.msra.mxu0 0
    %1857 = vmatprep.subr.bf16.mxu0 0
    %1858 = vmatpush1.bf16.msra.mxu0 0
    %1859 = vmatprep.subr.bf16.mxu0 0
    %1860 = vmatpush1.bf16.msra.mxu0 0
    %1861 = vmatprep.subr.bf16.mxu0 0
    %1862 = vmatpush1.bf16.msra.mxu0 0
    %1863 = vmatprep.mubr.bf16.mxu0 0
    %1864 = vmatmul.mubr.bf16.gmra.mrb[0].mxu0 %v1826
    %v1865 = vpop.f32.mrb[0].mxu0
    %v1866 = vadd.f32 0.0, %v1865
    %v1867 = vpop.f32.mrb[0].mxu0
    %v1868 = vpop.f32.mrb[0].mxu0
    %v1869 = vpop.f32.mrb[0].mxu0
    %1870 = vdwg.mxu0
    %v1872 = vsel %vm850, %v948, 0
    %v1875 = vsel %vm1484, %v956, 0
    %1877 = vmatprep.subr.bf16.mxu0 0
    %1878 = vmatpush1.bf16.msra.mxu0 %v1875
    %1879 = vmatprep.subr.bf16.mxu0 0
    %1880 = vmatpush1.bf16.msra.mxu0 0
    %1881 = vmatprep.subr.bf16.mxu0 0
    %1882 = vmatpush1.bf16.msra.mxu0 0
    %1883 = vmatprep.subr.bf16.mxu0 0
    %1884 = vmatpush1.bf16.msra.mxu0 0
    %1885 = vmatprep.subr.bf16.mxu0 0
    %1886 = vmatpush1.bf16.msra.mxu0 0
    %1887 = vmatprep.subr.bf16.mxu0 0
    %1888 = vmatpush1.bf16.msra.mxu0 0
    %1889 = vmatprep.subr.bf16.mxu0 0
    %1890 = vmatpush1.bf16.msra.mxu0 0
    %1891 = vmatprep.subr.bf16.mxu0 0
    %1892 = vmatpush1.bf16.msra.mxu0 0
    %1893 = vmatprep.subr.bf16.mxu0 0
    %1894 = vmatpush1.bf16.msra.mxu0 0
    %1895 = vmatprep.subr.bf16.mxu0 0
    %1896 = vmatpush1.bf16.msra.mxu0 0
    %1897 = vmatprep.subr.bf16.mxu0 0
    %1898 = vmatpush1.bf16.msra.mxu0 0
    %1899 = vmatprep.subr.bf16.mxu0 0
    %1900 = vmatpush1.bf16.msra.mxu0 0
    %1901 = vmatprep.subr.bf16.mxu0 0
    %1902 = vmatpush1.bf16.msra.mxu0 0
    %1903 = vmatprep.subr.bf16.mxu0 0
    %1904 = vmatpush1.bf16.msra.mxu0 0
    %1905 = vmatprep.subr.bf16.mxu0 0
    %1906 = vmatpush1.bf16.msra.mxu0 0
    %1907 = vmatprep.subr.bf16.mxu0 0
    %1908 = vmatpush1.bf16.msra.mxu0 0
    %1909 = vmatprep.mubr.bf16.mxu0 0
    %1910 = vmatmul.mubr.bf16.gmra.mrb[0].mxu0 %v1872
    %v1911 = vpop.f32.mrb[0].mxu0
    %v1912 = vadd.f32 %v1523, %v1911
    %v1913 = vpop.f32.mrb[0].mxu0
    %v1914 = vpop.f32.mrb[0].mxu0
    %v1915 = vpop.f32.mrb[0].mxu0
    %1916 = vdwg.mxu0
    %v1918 = vsel %vm850, %v949, 0
    %v1921 = vsel %vm1484, %v957, 0
    %1923 = vmatprep.subr.bf16.mxu0 0
    %1924 = vmatpush1.bf16.msra.mxu0 %v1921
    %1925 = vmatprep.subr.bf16.mxu0 0
    %1926 = vmatpush1.bf16.msra.mxu0 0
    %1927 = vmatprep.subr.bf16.mxu0 0
    %1928 = vmatpush1.bf16.msra.mxu0 0
    %1929 = vmatprep.subr.bf16.mxu0 0
    %1930 = vmatpush1.bf16.msra.mxu0 0
    %1931 = vmatprep.subr.bf16.mxu0 0
    %1932 = vmatpush1.bf16.msra.mxu0 0
    %1933 = vmatprep.subr.bf16.mxu0 0
    %1934 = vmatpush1.bf16.msra.mxu0 0
    %1935 = vmatprep.subr.bf16.mxu0 0
    %1936 = vmatpush1.bf16.msra.mxu0 0
    %1937 = vmatprep.subr.bf16.mxu0 0
    %1938 = vmatpush1.bf16.msra.mxu0 0
    %1939 = vmatprep.subr.bf16.mxu0 0
    %1940 = vmatpush1.bf16.msra.mxu0 0
    %1941 = vmatprep.subr.bf16.mxu0 0
    %1942 = vmatpush1.bf16.msra.mxu0 0
    %1943 = vmatprep.subr.bf16.mxu0 0
    %1944 = vmatpush1.bf16.msra.mxu0 0
    %1945 = vmatprep.subr.bf16.mxu0 0
    %1946 = vmatpush1.bf16.msra.mxu0 0
    %1947 = vmatprep.subr.bf16.mxu0 0
    %1948 = vmatpush1.bf16.msra.mxu0 0
    %1949 = vmatprep.subr.bf16.mxu0 0
    %1950 = vmatpush1.bf16.msra.mxu0 0
    %1951 = vmatprep.subr.bf16.mxu0 0
    %1952 = vmatpush1.bf16.msra.mxu0 0
    %1953 = vmatprep.subr.bf16.mxu0 0
    %1954 = vmatpush1.bf16.msra.mxu0 0
    %1955 = vmatprep.mubr.bf16.mxu0 0
    %1956 = vmatmul.mubr.bf16.gmra.mrb[0].mxu0 %v1918
    %v1957 = vpop.f32.mrb[0].mxu0
    %v1958 = vadd.f32 %v1572, %v1957
    %v1959 = vpop.f32.mrb[0].mxu0
    %v1960 = vpop.f32.mrb[0].mxu0
    %v1961 = vpop.f32.mrb[0].mxu0
    %1962 = vdwg.mxu0
    %v1964 = vsel %vm850, %v950, 0
    %v1967 = vsel %vm1484, %v958, 0
    %1969 = vmatprep.subr.bf16.mxu0 0
    %1970 = vmatpush1.bf16.msra.mxu0 %v1967
    %1971 = vmatprep.subr.bf16.mxu0 0
    %1972 = vmatpush1.bf16.msra.mxu0 0
    %1973 = vmatprep.subr.bf16.mxu0 0
    %1974 = vmatpush1.bf16.msra.mxu0 0
    %1975 = vmatprep.subr.bf16.mxu0 0
    %1976 = vmatpush1.bf16.msra.mxu0 0
    %1977 = vmatprep.subr.bf16.mxu0 0
    %1978 = vmatpush1.bf16.msra.mxu0 0
    %1979 = vmatprep.subr.bf16.mxu0 0
    %1980 = vmatpush1.bf16.msra.mxu0 0
    %1981 = vmatprep.subr.bf16.mxu0 0
    %1982 = vmatpush1.bf16.msra.mxu0 0
    %1983 = vmatprep.subr.bf16.mxu0 0
    %1984 = vmatpush1.bf16.msra.mxu0 0
    %1985 = vmatprep.subr.bf16.mxu0 0
    %1986 = vmatpush1.bf16.msra.mxu0 0
    %1987 = vmatprep.subr.bf16.mxu0 0
    %1988 = vmatpush1.bf16.msra.mxu0 0
    %1989 = vmatprep.subr.bf16.mxu0 0
    %1990 = vmatpush1.bf16.msra.mxu0 0
    %1991 = vmatprep.subr.bf16.mxu0 0
    %1992 = vmatpush1.bf16.msra.mxu0 0
    %1993 = vmatprep.subr.bf16.mxu0 0
    %1994 = vmatpush1.bf16.msra.mxu0 0
    %1995 = vmatprep.subr.bf16.mxu0 0
    %1996 = vmatpush1.bf16.msra.mxu0 0
    %1997 = vmatprep.subr.bf16.mxu0 0
    %1998 = vmatpush1.bf16.msra.mxu0 0
    %1999 = vmatprep.subr.bf16.mxu0 0
    %2000 = vmatpush1.bf16.msra.mxu0 0
    %2001 = vmatprep.mubr.bf16.mxu0 0
    %2002 = vmatmul.mubr.bf16.gmra.mrb[0].mxu0 %v1964
    %v2003 = vpop.f32.mrb[0].mxu0
    %v2004 = vadd.f32 %v1621, %v2003
    %v2005 = vpop.f32.mrb[0].mxu0
    %v2006 = vpop.f32.mrb[0].mxu0
    %v2007 = vpop.f32.mrb[0].mxu0
    %2008 = vdwg.mxu0
    %v2010 = vsel %vm850, %v951, 0
    %v2013 = vsel %vm1484, %v959, 0
    %2015 = vmatprep.subr.bf16.mxu0 0
    %2016 = vmatpush1.bf16.msra.mxu0 %v2013
    %2017 = vmatprep.subr.bf16.mxu0 0
    %2018 = vmatpush1.bf16.msra.mxu0 0
    %2019 = vmatprep.subr.bf16.mxu0 0
    %2020 = vmatpush1.bf16.msra.mxu0 0
    %2021 = vmatprep.subr.bf16.mxu0 0
    %2022 = vmatpush1.bf16.msra.mxu0 0
    %2023 = vmatprep.subr.bf16.mxu0 0
    %2024 = vmatpush1.bf16.msra.mxu0 0
    %2025 = vmatprep.subr.bf16.mxu0 0
    %2026 = vmatpush1.bf16.msra.mxu0 0
    %2027 = vmatprep.subr.bf16.mxu0 0
    %2028 = vmatpush1.bf16.msra.mxu0 0
    %2029 = vmatprep.subr.bf16.mxu0 0
    %2030 = vmatpush1.bf16.msra.mxu0 0
    %2031 = vmatprep.subr.bf16.mxu0 0
    %2032 = vmatpush1.bf16.msra.mxu0 0
    %2033 = vmatprep.subr.bf16.mxu0 0
    %2034 = vmatpush1.bf16.msra.mxu0 0
    %2035 = vmatprep.subr.bf16.mxu0 0
    %2036 = vmatpush1.bf16.msra.mxu0 0
    %2037 = vmatprep.subr.bf16.mxu0 0
    %2038 = vmatpush1.bf16.msra.mxu0 0
    %2039 = vmatprep.subr.bf16.mxu0 0
    %2040 = vmatpush1.bf16.msra.mxu0 0
    %2041 = vmatprep.subr.bf16.mxu0 0
    %2042 = vmatpush1.bf16.msra.mxu0 0
    %2043 = vmatprep.subr.bf16.mxu0 0
    %2044 = vmatpush1.bf16.msra.mxu0 0
    %2045 = vmatprep.subr.bf16.mxu0 0
    %2046 = vmatpush1.bf16.msra.mxu0 0
    %2047 = vmatprep.mubr.bf16.mxu0 0
    %2048 = vmatmul.mubr.bf16.gmra.mrb[0].mxu0 %v2010
    %v2049 = vpop.f32.mrb[0].mxu0
    %v2050 = vadd.f32 %v1670, %v2049
    %v2051 = vpop.f32.mrb[0].mxu0
    %v2052 = vpop.f32.mrb[0].mxu0
    %v2053 = vpop.f32.mrb[0].mxu0
    %2054 = vdwg.mxu0
    %v2056 = vsel %vm850, %v952, 0
    %v2059 = vsel %vm1484, %v960, 0
    %2061 = vmatprep.subr.bf16.mxu0 0
    %2062 = vmatpush1.bf16.msra.mxu0 %v2059
    %2063 = vmatprep.subr.bf16.mxu0 0
    %2064 = vmatpush1.bf16.msra.mxu0 0
    %2065 = vmatprep.subr.bf16.mxu0 0
    %2066 = vmatpush1.bf16.msra.mxu0 0
    %2067 = vmatprep.subr.bf16.mxu0 0
    %2068 = vmatpush1.bf16.msra.mxu0 0
    %2069 = vmatprep.subr.bf16.mxu0 0
    %2070 = vmatpush1.bf16.msra.mxu0 0
    %2071 = vmatprep.subr.bf16.mxu0 0
    %2072 = vmatpush1.bf16.msra.mxu0 0
    %2073 = vmatprep.subr.bf16.mxu0 0
    %2074 = vmatpush1.bf16.msra.mxu0 0
    %2075 = vmatprep.subr.bf16.mxu0 0
    %2076 = vmatpush1.bf16.msra.mxu0 0
    %2077 = vmatprep.subr.bf16.mxu0 0
    %2078 = vmatpush1.bf16.msra.mxu0 0
    %2079 = vmatprep.subr.bf16.mxu0 0
    %2080 = vmatpush1.bf16.msra.mxu0 0
    %2081 = vmatprep.subr.bf16.mxu0 0
    %2082 = vmatpush1.bf16.msra.mxu0 0
    %2083 = vmatprep.subr.bf16.mxu0 0
    %2084 = vmatpush1.bf16.msra.mxu0 0
    %2085 = vmatprep.subr.bf16.mxu0 0
    %2086 = vmatpush1.bf16.msra.mxu0 0
    %2087 = vmatprep.subr.bf16.mxu0 0
    %2088 = vmatpush1.bf16.msra.mxu0 0
    %2089 = vmatprep.subr.bf16.mxu0 0
    %2090 = vmatpush1.bf16.msra.mxu0 0
    %2091 = vmatprep.subr.bf16.mxu0 0
    %2092 = vmatpush1.bf16.msra.mxu0 0
    %2093 = vmatprep.mubr.bf16.mxu0 0
    %2094 = vmatmul.mubr.bf16.gmra.mrb[0].mxu0 %v2056
    %v2095 = vpop.f32.mrb[0].mxu0
    %v2096 = vadd.f32 %v1719, %v2095
    %v2097 = vpop.f32.mrb[0].mxu0
    %v2098 = vpop.f32.mrb[0].mxu0
    %v2099 = vpop.f32.mrb[0].mxu0
    %2100 = vdwg.mxu0
    %v2102 = vsel %vm850, %v953, 0
    %v2105 = vsel %vm1484, %v961, 0
    %2107 = vmatprep.subr.bf16.mxu0 0
    %2108 = vmatpush1.bf16.msra.mxu0 %v2105
    %2109 = vmatprep.subr.bf16.mxu0 0
    %2110 = vmatpush1.bf16.msra.mxu0 0
    %2111 = vmatprep.subr.bf16.mxu0 0
    %2112 = vmatpush1.bf16.msra.mxu0 0
    %2113 = vmatprep.subr.bf16.mxu0 0
    %2114 = vmatpush1.bf16.msra.mxu0 0
    %2115 = vmatprep.subr.bf16.mxu0 0
    %2116 = vmatpush1.bf16.msra.mxu0 0
    %2117 = vmatprep.subr.bf16.mxu0 0
    %2118 = vmatpush1.bf16.msra.mxu0 0
    %2119 = vmatprep.subr.bf16.mxu0 0
    %2120 = vmatpush1.bf16.msra.mxu0 0
    %2121 = vmatprep.subr.bf16.mxu0 0
    %2122 = vmatpush1.bf16.msra.mxu0 0
    %2123 = vmatprep.subr.bf16.mxu0 0
    %2124 = vmatpush1.bf16.msra.mxu0 0
    %2125 = vmatprep.subr.bf16.mxu0 0
    %2126 = vmatpush1.bf16.msra.mxu0 0
    %2127 = vmatprep.subr.bf16.mxu0 0
    %2128 = vmatpush1.bf16.msra.mxu0 0
    %2129 = vmatprep.subr.bf16.mxu0 0
    %2130 = vmatpush1.bf16.msra.mxu0 0
    %2131 = vmatprep.subr.bf16.mxu0 0
    %2132 = vmatpush1.bf16.msra.mxu0 0
    %2133 = vmatprep.subr.bf16.mxu0 0
    %2134 = vmatpush1.bf16.msra.mxu0 0
    %2135 = vmatprep.subr.bf16.mxu0 0
    %2136 = vmatpush1.bf16.msra.mxu0 0
    %2137 = vmatprep.subr.bf16.mxu0 0
    %2138 = vmatpush1.bf16.msra.mxu0 0
    %2139 = vmatprep.mubr.bf16.mxu0 0
    %2140 = vmatmul.mubr.bf16.gmra.mrb[0].mxu0 %v2102
    %v2141 = vpop.f32.mrb[0].mxu0
    %v2142 = vadd.f32 %v1768, %v2141
    %v2143 = vpop.f32.mrb[0].mxu0
    %v2144 = vpop.f32.mrb[0].mxu0
    %v2145 = vpop.f32.mrb[0].mxu0
    %2146 = vdwg.mxu0
    %v2148 = vsel %vm850, %v954, 0
    %v2151 = vsel %vm1484, %v962, 0
    %2153 = vmatprep.subr.bf16.mxu0 0
    %2154 = vmatpush1.bf16.msra.mxu0 %v2151
    %2155 = vmatprep.subr.bf16.mxu0 0
    %2156 = vmatpush1.bf16.msra.mxu0 0
    %2157 = vmatprep.subr.bf16.mxu0 0
    %2158 = vmatpush1.bf16.msra.mxu0 0
    %2159 = vmatprep.subr.bf16.mxu0 0
    %2160 = vmatpush1.bf16.msra.mxu0 0
    %2161 = vmatprep.subr.bf16.mxu0 0
    %2162 = vmatpush1.bf16.msra.mxu0 0
    %2163 = vmatprep.subr.bf16.mxu0 0
    %2164 = vmatpush1.bf16.msra.mxu0 0
    %2165 = vmatprep.subr.bf16.mxu0 0
    %2166 = vmatpush1.bf16.msra.mxu0 0
    %2167 = vmatprep.subr.bf16.mxu0 0
    %2168 = vmatpush1.bf16.msra.mxu0 0
    %2169 = vmatprep.subr.bf16.mxu0 0
    %2170 = vmatpush1.bf16.msra.mxu0 0
    %2171 = vmatprep.subr.bf16.mxu0 0
    %2172 = vmatpush1.bf16.msra.mxu0 0
    %2173 = vmatprep.subr.bf16.mxu0 0
    %2174 = vmatpush1.bf16.msra.mxu0 0
    %2175 = vmatprep.subr.bf16.mxu0 0
    %2176 = vmatpush1.bf16.msra.mxu0 0
    %2177 = vmatprep.subr.bf16.mxu0 0
    %2178 = vmatpush1.bf16.msra.mxu0 0
    %2179 = vmatprep.subr.bf16.mxu0 0
    %2180 = vmatpush1.bf16.msra.mxu0 0
    %2181 = vmatprep.subr.bf16.mxu0 0
    %2182 = vmatpush1.bf16.msra.mxu0 0
    %2183 = vmatprep.subr.bf16.mxu0 0
    %2184 = vmatpush1.bf16.msra.mxu0 0
    %2185 = vmatprep.mubr.bf16.mxu0 0
    %2186 = vmatmul.mubr.bf16.gmra.mrb[0].mxu0 %v2148
    %v2187 = vpop.f32.mrb[0].mxu0
    %v2188 = vadd.f32 %v1817, %v2187
    %v2189 = vpop.f32.mrb[0].mxu0
    %v2190 = vpop.f32.mrb[0].mxu0
    %v2191 = vpop.f32.mrb[0].mxu0
    %2192 = vdwg.mxu0
    %v2194 = vsel %vm850, %v955, 0
    %v2197 = vsel %vm1484, %v963, 0
    %2199 = vmatprep.subr.bf16.mxu0 0
    %2200 = vmatpush1.bf16.msra.mxu0 %v2197
    %2201 = vmatprep.subr.bf16.mxu0 0
    %2202 = vmatpush1.bf16.msra.mxu0 0
    %2203 = vmatprep.subr.bf16.mxu0 0
    %2204 = vmatpush1.bf16.msra.mxu0 0
    %2205 = vmatprep.subr.bf16.mxu0 0
    %2206 = vmatpush1.bf16.msra.mxu0 0
    %2207 = vmatprep.subr.bf16.mxu0 0
    %2208 = vmatpush1.bf16.msra.mxu0 0
    %2209 = vmatprep.subr.bf16.mxu0 0
    %2210 = vmatpush1.bf16.msra.mxu0 0
    %2211 = vmatprep.subr.bf16.mxu0 0
    %2212 = vmatpush1.bf16.msra.mxu0 0
    %2213 = vmatprep.subr.bf16.mxu0 0
    %2214 = vmatpush1.bf16.msra.mxu0 0
    %2215 = vmatprep.subr.bf16.mxu0 0
    %2216 = vmatpush1.bf16.msra.mxu0 0
    %2217 = vmatprep.subr.bf16.mxu0 0
    %2218 = vmatpush1.bf16.msra.mxu0 0
    %2219 = vmatprep.subr.bf16.mxu0 0
    %2220 = vmatpush1.bf16.msra.mxu0 0
    %2221 = vmatprep.subr.bf16.mxu0 0
    %2222 = vmatpush1.bf16.msra.mxu0 0
    %2223 = vmatprep.subr.bf16.mxu0 0
    %2224 = vmatpush1.bf16.msra.mxu0 0
    %2225 = vmatprep.subr.bf16.mxu0 0
    %2226 = vmatpush1.bf16.msra.mxu0 0
    %2227 = vmatprep.subr.bf16.mxu0 0
    %2228 = vmatpush1.bf16.msra.mxu0 0
    %2229 = vmatprep.subr.bf16.mxu0 0
    %2230 = vmatpush1.bf16.msra.mxu0 0
    %2231 = vmatprep.mubr.bf16.mxu0 0
    %2232 = vmatmul.mubr.bf16.gmra.mrb[0].mxu0 %v2194
    %v2233 = vpop.f32.mrb[0].mxu0
    %v2234 = vadd.f32 %v1866, %v2233
    %v2235 = vpop.f32.mrb[0].mxu0
    %v2236 = vpop.f32.mrb[0].mxu0
    %v2237 = vpop.f32.mrb[0].mxu0
    %2238 = vdwg.mxu0
    %2239 = vrot.lane.b32.xlu0 %v441, 120
    %v2240 = vpop.permute.xlu0 %2239
    %2241 = vrot.lane.b32.xlu0 %v441, 108
    %v2242 = vpop.permute.xlu0 %2241
    %v2244 = vsel %vm452, %v2240, 0
    %v2247 = vsel %vm452, %v2242, 0
    %2249 = vmatprep.subr.bf16.mxu0 0
    %2250 = vmatpush1.bf16.xpose.msra.mxu0 %v2247
    %2251 = vmatprep.subr.bf16.mxu0 0
    %2252 = vmatpush1.bf16.xpose.msra.mxu0 0
    %2253 = vmatprep.subr.bf16.mxu0 0
    %2254 = vmatpush1.bf16.xpose.msra.mxu0 0
    %2255 = vmatprep.subr.bf16.mxu0 0
    %2256 = vmatpush1.bf16.xpose.msra.mxu0 0
    %2257 = vmatprep.subr.bf16.mxu0 0
    %2258 = vmatpush1.bf16.xpose.msra.mxu0 0
    %2259 = vmatprep.subr.bf16.mxu0 0
    %2260 = vmatpush1.bf16.xpose.msra.mxu0 0
    %2261 = vmatprep.subr.bf16.mxu0 0
    %2262 = vmatpush1.bf16.xpose.msra.mxu0 0
    %2263 = vmatprep.subr.bf16.mxu0 0
    %2264 = vmatpush1.bf16.xpose.msra.mxu0 0
    %2265 = vmatprep.subr.bf16.mxu0 0
    %2266 = vmatpush1.bf16.xpose.msra.mxu0 0
    %2267 = vmatprep.subr.bf16.mxu0 0
    %2268 = vmatpush1.bf16.xpose.msra.mxu0 0
    %2269 = vmatprep.subr.bf16.mxu0 0
    %2270 = vmatpush1.bf16.xpose.msra.mxu0 0
    %2271 = vmatprep.subr.bf16.mxu0 0
    %2272 = vmatpush1.bf16.xpose.msra.mxu0 0
    %2273 = vmatprep.subr.bf16.mxu0 0
    %2274 = vmatpush1.bf16.xpose.msra.mxu0 0
    %2275 = vmatprep.subr.bf16.mxu0 0
    %2276 = vmatpush1.bf16.xpose.msra.mxu0 0
    %2277 = vmatprep.subr.bf16.mxu0 0
    %2278 = vmatpush1.bf16.xpose.msra.mxu0 0
    %2279 = vmatprep.subr.bf16.mxu0 0
    %2280 = vmatpush1.bf16.xpose.msra.mxu0 0
    %2281 = vmatprep.mubr.bf16.mxu0 0
    %2282 = vmatmul.mubr.bf16.gmra.mrb[0].mxu0 %v2244
    %v2283 = vpop.f32.mrb[0].mxu0
    %v2284 = vadd.f32 0.0, %v2283
    %v2285 = vpop.f32.mrb[0].mxu0
    %v2286 = vpop.f32.mrb[0].mxu0
    %v2287 = vpop.f32.mrb[0].mxu0
    %2288 = vdwg.mxu0
    %2289 = vrot.lane.b32.xlu0 %v442, 120
    %v2290 = vpop.permute.xlu0 %2289
    %2291 = vrot.lane.b32.xlu0 %v442, 108
    %v2292 = vpop.permute.xlu0 %2291
    %v2294 = vsel %vm452, %v2290, 0
    %v2297 = vsel %vm452, %v2292, 0
    %2299 = vmatprep.subr.bf16.mxu0 0
    %2300 = vmatpush1.bf16.xpose.msra.mxu0 %v2297
    %2301 = vmatprep.subr.bf16.mxu0 0
    %2302 = vmatpush1.bf16.xpose.msra.mxu0 0
    %2303 = vmatprep.subr.bf16.mxu0 0
    %2304 = vmatpush1.bf16.xpose.msra.mxu0 0
    %2305 = vmatprep.subr.bf16.mxu0 0
    %2306 = vmatpush1.bf16.xpose.msra.mxu0 0
    %2307 = vmatprep.subr.bf16.mxu0 0
    %2308 = vmatpush1.bf16.xpose.msra.mxu0 0
    %2309 = vmatprep.subr.bf16.mxu0 0
    %2310 = vmatpush1.bf16.xpose.msra.mxu0 0
    %2311 = vmatprep.subr.bf16.mxu0 0
    %2312 = vmatpush1.bf16.xpose.msra.mxu0 0
    %2313 = vmatprep.subr.bf16.mxu0 0
    %2314 = vmatpush1.bf16.xpose.msra.mxu0 0
    %2315 = vmatprep.subr.bf16.mxu0 0
    %2316 = vmatpush1.bf16.xpose.msra.mxu0 0
    %2317 = vmatprep.subr.bf16.mxu0 0
    %2318 = vmatpush1.bf16.xpose.msra.mxu0 0
    %2319 = vmatprep.subr.bf16.mxu0 0
    %2320 = vmatpush1.bf16.xpose.msra.mxu0 0
    %2321 = vmatprep.subr.bf16.mxu0 0
    %2322 = vmatpush1.bf16.xpose.msra.mxu0 0
    %2323 = vmatprep.subr.bf16.mxu0 0
    %2324 = vmatpush1.bf16.xpose.msra.mxu0 0
    %2325 = vmatprep.subr.bf16.mxu0 0
    %2326 = vmatpush1.bf16.xpose.msra.mxu0 0
    %2327 = vmatprep.subr.bf16.mxu0 0
    %2328 = vmatpush1.bf16.xpose.msra.mxu0 0
    %2329 = vmatprep.subr.bf16.mxu0 0
    %2330 = vmatpush1.bf16.xpose.msra.mxu0 0
    %2331 = vmatprep.mubr.bf16.mxu0 0
    %2332 = vmatmul.mubr.bf16.gmra.mrb[0].mxu0 %v2294
    %v2333 = vpop.f32.mrb[0].mxu0
    %v2334 = vadd.f32 0.0, %v2333
    %v2335 = vpop.f32.mrb[0].mxu0
    %v2336 = vpop.f32.mrb[0].mxu0
    %v2337 = vpop.f32.mrb[0].mxu0
    %2338 = vdwg.mxu0
    %2339 = vrot.lane.b32.xlu0 %v443, 120
    %v2340 = vpop.permute.xlu0 %2339
    %2341 = vrot.lane.b32.xlu0 %v443, 108
    %v2342 = vpop.permute.xlu0 %2341
    %v2344 = vsel %vm452, %v2340, 0
    %v2347 = vsel %vm452, %v2342, 0
    %2349 = vmatprep.subr.bf16.mxu0 0
    %2350 = vmatpush1.bf16.xpose.msra.mxu0 %v2347
    %2351 = vmatprep.subr.bf16.mxu0 0
    %2352 = vmatpush1.bf16.xpose.msra.mxu0 0
    %2353 = vmatprep.subr.bf16.mxu0 0
    %2354 = vmatpush1.bf16.xpose.msra.mxu0 0
    %2355 = vmatprep.subr.bf16.mxu0 0
    %2356 = vmatpush1.bf16.xpose.msra.mxu0 0
    %2357 = vmatprep.subr.bf16.mxu0 0
    %2358 = vmatpush1.bf16.xpose.msra.mxu0 0
    %2359 = vmatprep.subr.bf16.mxu0 0
    %2360 = vmatpush1.bf16.xpose.msra.mxu0 0
    %2361 = vmatprep.subr.bf16.mxu0 0
    %2362 = vmatpush1.bf16.xpose.msra.mxu0 0
    %2363 = vmatprep.subr.bf16.mxu0 0
    %2364 = vmatpush1.bf16.xpose.msra.mxu0 0
    %2365 = vmatprep.subr.bf16.mxu0 0
    %2366 = vmatpush1.bf16.xpose.msra.mxu0 0
    %2367 = vmatprep.subr.bf16.mxu0 0
    %2368 = vmatpush1.bf16.xpose.msra.mxu0 0
    %2369 = vmatprep.subr.bf16.mxu0 0
    %2370 = vmatpush1.bf16.xpose.msra.mxu0 0
    %2371 = vmatprep.subr.bf16.mxu0 0
    %2372 = vmatpush1.bf16.xpose.msra.mxu0 0
    %2373 = vmatprep.subr.bf16.mxu0 0
    %2374 = vmatpush1.bf16.xpose.msra.mxu0 0
    %2375 = vmatprep.subr.bf16.mxu0 0
    %2376 = vmatpush1.bf16.xpose.msra.mxu0 0
    %2377 = vmatprep.subr.bf16.mxu0 0
    %2378 = vmatpush1.bf16.xpose.msra.mxu0 0
    %2379 = vmatprep.subr.bf16.mxu0 0
    %2380 = vmatpush1.bf16.xpose.msra.mxu0 0
    %2381 = vmatprep.mubr.bf16.mxu0 0
    %2382 = vmatmul.mubr.bf16.gmra.mrb[0].mxu0 %v2344
    %v2383 = vpop.f32.mrb[0].mxu0
    %v2384 = vadd.f32 0.0, %v2383
    %v2385 = vpop.f32.mrb[0].mxu0
    %v2386 = vpop.f32.mrb[0].mxu0
    %v2387 = vpop.f32.mrb[0].mxu0
    %2388 = vdwg.mxu0
    %2389 = vrot.lane.b32.xlu0 %v444, 120
    %v2390 = vpop.permute.xlu0 %2389
    %2391 = vrot.lane.b32.xlu0 %v444, 108
    %v2392 = vpop.permute.xlu0 %2391
    %v2394 = vsel %vm452, %v2390, 0
    %v2397 = vsel %vm452, %v2392, 0
    %2399 = vmatprep.subr.bf16.mxu0 0
    %2400 = vmatpush1.bf16.xpose.msra.mxu0 %v2397
    %2401 = vmatprep.subr.bf16.mxu0 0
    %2402 = vmatpush1.bf16.xpose.msra.mxu0 0
    %2403 = vmatprep.subr.bf16.mxu0 0
    %2404 = vmatpush1.bf16.xpose.msra.mxu0 0
    %2405 = vmatprep.subr.bf16.mxu0 0
    %2406 = vmatpush1.bf16.xpose.msra.mxu0 0
    %2407 = vmatprep.subr.bf16.mxu0 0
    %2408 = vmatpush1.bf16.xpose.msra.mxu0 0
    %2409 = vmatprep.subr.bf16.mxu0 0
    %2410 = vmatpush1.bf16.xpose.msra.mxu0 0
    %2411 = vmatprep.subr.bf16.mxu0 0
    %2412 = vmatpush1.bf16.xpose.msra.mxu0 0
    %2413 = vmatprep.subr.bf16.mxu0 0
    %2414 = vmatpush1.bf16.xpose.msra.mxu0 0
    %2415 = vmatprep.subr.bf16.mxu0 0
    %2416 = vmatpush1.bf16.xpose.msra.mxu0 0
    %2417 = vmatprep.subr.bf16.mxu0 0
    %2418 = vmatpush1.bf16.xpose.msra.mxu0 0
    %2419 = vmatprep.subr.bf16.mxu0 0
    %2420 = vmatpush1.bf16.xpose.msra.mxu0 0
    %2421 = vmatprep.subr.bf16.mxu0 0
    %2422 = vmatpush1.bf16.xpose.msra.mxu0 0
    %2423 = vmatprep.subr.bf16.mxu0 0
    %2424 = vmatpush1.bf16.xpose.msra.mxu0 0
    %2425 = vmatprep.subr.bf16.mxu0 0
    %2426 = vmatpush1.bf16.xpose.msra.mxu0 0
    %2427 = vmatprep.subr.bf16.mxu0 0
    %2428 = vmatpush1.bf16.xpose.msra.mxu0 0
    %2429 = vmatprep.subr.bf16.mxu0 0
    %2430 = vmatpush1.bf16.xpose.msra.mxu0 0
    %2431 = vmatprep.mubr.bf16.mxu0 0
    %2432 = vmatmul.mubr.bf16.gmra.mrb[0].mxu0 %v2394
    %v2433 = vpop.f32.mrb[0].mxu0
    %v2434 = vadd.f32 0.0, %v2433
    %v2435 = vpop.f32.mrb[0].mxu0
    %v2436 = vpop.f32.mrb[0].mxu0
    %v2437 = vpop.f32.mrb[0].mxu0
    %2438 = vdwg.mxu0
    %2439 = vrot.lane.b32.xlu0 %v445, 120
    %v2440 = vpop.permute.xlu0 %2439
    %2441 = vrot.lane.b32.xlu0 %v445, 108
    %v2442 = vpop.permute.xlu0 %2441
    %v2444 = vsel %vm452, %v2440, 0
    %v2447 = vsel %vm452, %v2442, 0
    %2449 = vmatprep.subr.bf16.mxu0 0
    %2450 = vmatpush1.bf16.xpose.msra.mxu0 %v2447
    %2451 = vmatprep.subr.bf16.mxu0 0
    %2452 = vmatpush1.bf16.xpose.msra.mxu0 0
    %2453 = vmatprep.subr.bf16.mxu0 0
    %2454 = vmatpush1.bf16.xpose.msra.mxu0 0
    %2455 = vmatprep.subr.bf16.mxu0 0
    %2456 = vmatpush1.bf16.xpose.msra.mxu0 0
    %2457 = vmatprep.subr.bf16.mxu0 0
    %2458 = vmatpush1.bf16.xpose.msra.mxu0 0
    %2459 = vmatprep.subr.bf16.mxu0 0
    %2460 = vmatpush1.bf16.xpose.msra.mxu0 0
    %2461 = vmatprep.subr.bf16.mxu0 0
    %2462 = vmatpush1.bf16.xpose.msra.mxu0 0
    %2463 = vmatprep.subr.bf16.mxu0 0
    %2464 = vmatpush1.bf16.xpose.msra.mxu0 0
    %2465 = vmatprep.subr.bf16.mxu0 0
    %2466 = vmatpush1.bf16.xpose.msra.mxu0 0
    %2467 = vmatprep.subr.bf16.mxu0 0
    %2468 = vmatpush1.bf16.xpose.msra.mxu0 0
    %2469 = vmatprep.subr.bf16.mxu0 0
    %2470 = vmatpush1.bf16.xpose.msra.mxu0 0
    %2471 = vmatprep.subr.bf16.mxu0 0
    %2472 = vmatpush1.bf16.xpose.msra.mxu0 0
    %2473 = vmatprep.subr.bf16.mxu0 0
    %2474 = vmatpush1.bf16.xpose.msra.mxu0 0
    %2475 = vmatprep.subr.bf16.mxu0 0
    %2476 = vmatpush1.bf16.xpose.msra.mxu0 0
    %2477 = vmatprep.subr.bf16.mxu0 0
    %2478 = vmatpush1.bf16.xpose.msra.mxu0 0
    %2479 = vmatprep.subr.bf16.mxu0 0
    %2480 = vmatpush1.bf16.xpose.msra.mxu0 0
    %2481 = vmatprep.mubr.bf16.mxu0 0
    %2482 = vmatmul.mubr.bf16.gmra.mrb[0].mxu0 %v2444
    %v2483 = vpop.f32.mrb[0].mxu0
    %v2484 = vadd.f32 0.0, %v2483
    %v2485 = vpop.f32.mrb[0].mxu0
    %v2486 = vpop.f32.mrb[0].mxu0
    %v2487 = vpop.f32.mrb[0].mxu0
    %2488 = vdwg.mxu0
    %2489 = vrot.lane.b32.xlu0 %v446, 120
    %v2490 = vpop.permute.xlu0 %2489
    %2491 = vrot.lane.b32.xlu0 %v446, 108
    %v2492 = vpop.permute.xlu0 %2491
    %v2494 = vsel %vm452, %v2490, 0
    %v2497 = vsel %vm452, %v2492, 0
    %2499 = vmatprep.subr.bf16.mxu0 0
    %2500 = vmatpush1.bf16.xpose.msra.mxu0 %v2497
    %2501 = vmatprep.subr.bf16.mxu0 0
    %2502 = vmatpush1.bf16.xpose.msra.mxu0 0
    %2503 = vmatprep.subr.bf16.mxu0 0
    %2504 = vmatpush1.bf16.xpose.msra.mxu0 0
    %2505 = vmatprep.subr.bf16.mxu0 0
    %2506 = vmatpush1.bf16.xpose.msra.mxu0 0
    %2507 = vmatprep.subr.bf16.mxu0 0
    %2508 = vmatpush1.bf16.xpose.msra.mxu0 0
    %2509 = vmatprep.subr.bf16.mxu0 0
    %2510 = vmatpush1.bf16.xpose.msra.mxu0 0
    %2511 = vmatprep.subr.bf16.mxu0 0
    %2512 = vmatpush1.bf16.xpose.msra.mxu0 0
    %2513 = vmatprep.subr.bf16.mxu0 0
    %2514 = vmatpush1.bf16.xpose.msra.mxu0 0
    %2515 = vmatprep.subr.bf16.mxu0 0
    %2516 = vmatpush1.bf16.xpose.msra.mxu0 0
    %2517 = vmatprep.subr.bf16.mxu0 0
    %2518 = vmatpush1.bf16.xpose.msra.mxu0 0
    %2519 = vmatprep.subr.bf16.mxu0 0
    %2520 = vmatpush1.bf16.xpose.msra.mxu0 0
    %2521 = vmatprep.subr.bf16.mxu0 0
    %2522 = vmatpush1.bf16.xpose.msra.mxu0 0
    %2523 = vmatprep.subr.bf16.mxu0 0
    %2524 = vmatpush1.bf16.xpose.msra.mxu0 0
    %2525 = vmatprep.subr.bf16.mxu0 0
    %2526 = vmatpush1.bf16.xpose.msra.mxu0 0
    %2527 = vmatprep.subr.bf16.mxu0 0
    %2528 = vmatpush1.bf16.xpose.msra.mxu0 0
    %2529 = vmatprep.subr.bf16.mxu0 0
    %2530 = vmatpush1.bf16.xpose.msra.mxu0 0
    %2531 = vmatprep.mubr.bf16.mxu0 0
    %2532 = vmatmul.mubr.bf16.gmra.mrb[0].mxu0 %v2494
    %v2533 = vpop.f32.mrb[0].mxu0
    %v2534 = vadd.f32 0.0, %v2533
    %v2535 = vpop.f32.mrb[0].mxu0
    %v2536 = vpop.f32.mrb[0].mxu0
    %v2537 = vpop.f32.mrb[0].mxu0
    %2538 = vdwg.mxu0
    %2539 = vrot.lane.b32.xlu0 %v447, 120
    %v2540 = vpop.permute.xlu0 %2539
    %2541 = vrot.lane.b32.xlu0 %v447, 108
    %v2542 = vpop.permute.xlu0 %2541
    %v2544 = vsel %vm452, %v2540, 0
    %v2547 = vsel %vm452, %v2542, 0
    %2549 = vmatprep.subr.bf16.mxu0 0
    %2550 = vmatpush1.bf16.xpose.msra.mxu0 %v2547
    %2551 = vmatprep.subr.bf16.mxu0 0
    %2552 = vmatpush1.bf16.xpose.msra.mxu0 0
    %2553 = vmatprep.subr.bf16.mxu0 0
    %2554 = vmatpush1.bf16.xpose.msra.mxu0 0
    %2555 = vmatprep.subr.bf16.mxu0 0
    %2556 = vmatpush1.bf16.xpose.msra.mxu0 0
    %2557 = vmatprep.subr.bf16.mxu0 0
    %2558 = vmatpush1.bf16.xpose.msra.mxu0 0
    %2559 = vmatprep.subr.bf16.mxu0 0
    %2560 = vmatpush1.bf16.xpose.msra.mxu0 0
    %2561 = vmatprep.subr.bf16.mxu0 0
    %2562 = vmatpush1.bf16.xpose.msra.mxu0 0
    %2563 = vmatprep.subr.bf16.mxu0 0
    %2564 = vmatpush1.bf16.xpose.msra.mxu0 0
    %2565 = vmatprep.subr.bf16.mxu0 0
    %2566 = vmatpush1.bf16.xpose.msra.mxu0 0
    %2567 = vmatprep.subr.bf16.mxu0 0
    %2568 = vmatpush1.bf16.xpose.msra.mxu0 0
    %2569 = vmatprep.subr.bf16.mxu0 0
    %2570 = vmatpush1.bf16.xpose.msra.mxu0 0
    %2571 = vmatprep.subr.bf16.mxu0 0
    %2572 = vmatpush1.bf16.xpose.msra.mxu0 0
    %2573 = vmatprep.subr.bf16.mxu0 0
    %2574 = vmatpush1.bf16.xpose.msra.mxu0 0
    %2575 = vmatprep.subr.bf16.mxu0 0
    %2576 = vmatpush1.bf16.xpose.msra.mxu0 0
    %2577 = vmatprep.subr.bf16.mxu0 0
    %2578 = vmatpush1.bf16.xpose.msra.mxu0 0
    %2579 = vmatprep.subr.bf16.mxu0 0
    %2580 = vmatpush1.bf16.xpose.msra.mxu0 0
    %2581 = vmatprep.mubr.bf16.mxu0 0
    %2582 = vmatmul.mubr.bf16.gmra.mrb[0].mxu0 %v2544
    %v2583 = vpop.f32.mrb[0].mxu0
    %v2584 = vadd.f32 0.0, %v2583
    %v2585 = vpop.f32.mrb[0].mxu0
    %v2586 = vpop.f32.mrb[0].mxu0
    %v2587 = vpop.f32.mrb[0].mxu0
    %2588 = vdwg.mxu0
    %2589 = vrot.lane.b32.xlu0 %v448, 120
    %v2590 = vpop.permute.xlu0 %2589
    %2591 = vrot.lane.b32.xlu0 %v448, 108
    %v2592 = vpop.permute.xlu0 %2591
    %v2594 = vsel %vm452, %v2590, 0
    %v2597 = vsel %vm452, %v2592, 0
    %2599 = vmatprep.subr.bf16.mxu0 0
    %2600 = vmatpush1.bf16.xpose.msra.mxu0 %v2597
    %2601 = vmatprep.subr.bf16.mxu0 0
    %2602 = vmatpush1.bf16.xpose.msra.mxu0 0
    %2603 = vmatprep.subr.bf16.mxu0 0
    %2604 = vmatpush1.bf16.xpose.msra.mxu0 0
    %2605 = vmatprep.subr.bf16.mxu0 0
    %2606 = vmatpush1.bf16.xpose.msra.mxu0 0
    %2607 = vmatprep.subr.bf16.mxu0 0
    %2608 = vmatpush1.bf16.xpose.msra.mxu0 0
    %2609 = vmatprep.subr.bf16.mxu0 0
    %2610 = vmatpush1.bf16.xpose.msra.mxu0 0
    %2611 = vmatprep.subr.bf16.mxu0 0
    %2612 = vmatpush1.bf16.xpose.msra.mxu0 0
    %2613 = vmatprep.subr.bf16.mxu0 0
    %2614 = vmatpush1.bf16.xpose.msra.mxu0 0
    %2615 = vmatprep.subr.bf16.mxu0 0
    %2616 = vmatpush1.bf16.xpose.msra.mxu0 0
    %2617 = vmatprep.subr.bf16.mxu0 0
    %2618 = vmatpush1.bf16.xpose.msra.mxu0 0
    %2619 = vmatprep.subr.bf16.mxu0 0
    %2620 = vmatpush1.bf16.xpose.msra.mxu0 0
    %2621 = vmatprep.subr.bf16.mxu0 0
    %2622 = vmatpush1.bf16.xpose.msra.mxu0 0
    %2623 = vmatprep.subr.bf16.mxu0 0
    %2624 = vmatpush1.bf16.xpose.msra.mxu0 0
    %2625 = vmatprep.subr.bf16.mxu0 0
    %2626 = vmatpush1.bf16.xpose.msra.mxu0 0
    %2627 = vmatprep.subr.bf16.mxu0 0
    %2628 = vmatpush1.bf16.xpose.msra.mxu0 0
    %2629 = vmatprep.subr.bf16.mxu0 0
    %2630 = vmatpush1.bf16.xpose.msra.mxu0 0
    %2631 = vmatprep.mubr.bf16.mxu0 0
    %2632 = vmatmul.mubr.bf16.gmra.mrb[0].mxu0 %v2594
    %v2633 = vpop.f32.mrb[0].mxu0
    %v2634 = vadd.f32 0.0, %v2633
    %v2635 = vpop.f32.mrb[0].mxu0
    %v2636 = vpop.f32.mrb[0].mxu0
    %v2637 = vpop.f32.mrb[0].mxu0
    %2638 = vdwg.mxu0
    %v2639 = vmul.f32 %v2284, 0.5
    %v2640 = vmul.f32 %v2334, 0.5
    %v2641 = vmul.f32 %v2384, 0.5
    %v2642 = vmul.f32 %v2434, 0.5
    %v2643 = vmul.f32 %v2484, 0.5
    %v2644 = vmul.f32 %v2534, 0.5
    %v2645 = vmul.f32 %v2584, 0.5
    %v2646 = vmul.f32 %v2634, 0.5
    %v2647 = vsel %vm850, %v2639, -inf
    %2648 = vmax.xlane.f32.xlu0 %v2647
    %v2649 = vpop.xlane.xlu0 %2648
    %v2650 = vsel %vm850, %v2640, -inf
    %2651 = vmax.xlane.f32.xlu0 %v2650
    %v2652 = vpop.xlane.xlu0 %2651
    %v2653 = vsel %vm850, %v2641, -inf
    %2654 = vmax.xlane.f32.xlu0 %v2653
    %v2655 = vpop.xlane.xlu0 %2654
    %v2656 = vsel %vm850, %v2642, -inf
    %2657 = vmax.xlane.f32.xlu0 %v2656
    %v2658 = vpop.xlane.xlu0 %2657
    %v2659 = vsel %vm850, %v2643, -inf
    %2660 = vmax.xlane.f32.xlu0 %v2659
    %v2661 = vpop.xlane.xlu0 %2660
    %v2662 = vsel %vm850, %v2644, -inf
    %2663 = vmax.xlane.f32.xlu0 %v2662
    %v2664 = vpop.xlane.xlu0 %2663
    %v2665 = vsel %vm850, %v2645, -inf
    %2666 = vmax.xlane.f32.xlu0 %v2665
    %v2667 = vpop.xlane.xlu0 %2666
    %v2668 = vsel %vm850, %v2646, -inf
    %2669 = vmax.xlane.f32.xlu0 %v2668
    %v2670 = vpop.xlane.xlu0 %2669
    %v2671 = vsub.f32 %v2639, %v2649
    %v2672 = vsub.f32 %v2640, %v2652
    %v2673 = vsub.f32 %v2641, %v2655
    %v2674 = vsub.f32 %v2642, %v2658
    %v2675 = vsub.f32 %v2643, %v2661
    %v2676 = vsub.f32 %v2644, %v2664
    %v2677 = vsub.f32 %v2645, %v2667
    %v2678 = vsub.f32 %v2646, %v2670
    %v2679 = vmul.f32 %v2671, 1.442695
    %v2680 = vpow.pop %v2679
    %v2681 = vmul.f32 %v2672, 1.442695
    %v2682 = vpow.pop %v2681
    %v2683 = vmul.f32 %v2673, 1.442695
    %v2684 = vpow.pop %v2683
    %v2685 = vmul.f32 %v2674, 1.442695
    %v2686 = vpow.pop %v2685
    %v2687 = vmul.f32 %v2675, 1.442695
    %v2688 = vpow.pop %v2687
    %v2689 = vmul.f32 %v2676, 1.442695
    %v2690 = vpow.pop %v2689
    %v2691 = vmul.f32 %v2677, 1.442695
    %v2692 = vpow.pop %v2691
    %v2693 = vmul.f32 %v2678, 1.442695
    %v2694 = vpow.pop %v2693
    %v2695 = vsel %vm850, %v2680, 0.0
    %2696 = vadd.xlane.f32.xlu0 %v2695
    %v2697 = vpop.xlane.xlu0 %2696
    %v2698 = vsel %vm850, %v2682, 0.0
    %2699 = vadd.xlane.f32.xlu0 %v2698
    %v2700 = vpop.xlane.xlu0 %2699
    %v2701 = vsel %vm850, %v2684, 0.0
    %2702 = vadd.xlane.f32.xlu0 %v2701
    %v2703 = vpop.xlane.xlu0 %2702
    %v2704 = vsel %vm850, %v2686, 0.0
    %2705 = vadd.xlane.f32.xlu0 %v2704
    %v2706 = vpop.xlane.xlu0 %2705
    %v2707 = vsel %vm850, %v2688, 0.0
    %2708 = vadd.xlane.f32.xlu0 %v2707
    %v2709 = vpop.xlane.xlu0 %2708
    %v2710 = vsel %vm850, %v2690, 0.0
    %2711 = vadd.xlane.f32.xlu0 %v2710
    %v2712 = vpop.xlane.xlu0 %2711
    %v2713 = vsel %vm850, %v2692, 0.0
    %2714 = vadd.xlane.f32.xlu0 %v2713
    %v2715 = vpop.xlane.xlu0 %2714
    %v2716 = vsel %vm850, %v2694, 0.0
    %2717 = vadd.xlane.f32.xlu0 %v2716
    %v2718 = vpop.xlane.xlu0 %2717
    %v2719 = vrcp.pop %v2697
    %v2720 = vrcp.pop %v2700
    %v2721 = vrcp.pop %v2703
    %v2722 = vrcp.pop %v2706
    %v2723 = vrcp.pop %v2709
    %v2724 = vrcp.pop %v2712
    %v2725 = vrcp.pop %v2715
    %v2726 = vrcp.pop %v2718
    %v2727 = vmul.f32 %v2680, %v2719
    %v2728 = vmul.f32 %v2682, %v2720
    %v2729 = vmul.f32 %v2684, %v2721
    %v2730 = vmul.f32 %v2686, %v2722
    %v2731 = vmul.f32 %v2688, %v2723
    %v2732 = vmul.f32 %v2690, %v2724
    %v2733 = vmul.f32 %v2692, %v2725
    %v2734 = vmul.f32 %v2694, %v2726
    %s2735 = scalar_lea.vmem %s5, 16
    %v2736 = vld [vmem:[%s2735] sm:$0xff]
    %v2737 = vmul.f32 %v2727, %v2736
    %v2738 = vmul.f32 %v2728, %v2736
    %v2739 = vmul.f32 %v2729, %v2736
    %v2740 = vmul.f32 %v2730, %v2736
    %v2741 = vmul.f32 %v2731, %v2736
    %v2742 = vmul.f32 %v2732, %v2736
    %v2743 = vmul.f32 %v2733, %v2736
    %v2744 = vmul.f32 %v2734, %v2736
    %v2745 = vpack.c.bf16 %v2737, %v2737
    %v2746 = vpack.c.bf16 %v2738, %v2738
    %v2747 = vpack.c.bf16 %v2739, %v2739
    %v2748 = vpack.c.bf16 %v2740, %v2740
    %v2749 = vpack.c.bf16 %v2741, %v2741
    %v2750 = vpack.c.bf16 %v2742, %v2742
    %v2751 = vpack.c.bf16 %v2743, %v2743
    %v2752 = vpack.c.bf16 %v2744, %v2744
    %2753 = vrot.lane.b32.xlu0 %v956, 64
    %v2754 = vpop.permute.xlu0 %2753
    %v2756 = vsel %vm850, %v2745, 0
    %v2759 = vsel %vm1484, %v2754, 0
    %2761 = vmatprep.subr.bf16.mxu0 0
    %2762 = vmatpush1.bf16.msra.mxu0 %v2759
    %2763 = vmatprep.subr.bf16.mxu0 0
    %2764 = vmatpush1.bf16.msra.mxu0 0
    %2765 = vmatprep.subr.bf16.mxu0 0
    %2766 = vmatpush1.bf16.msra.mxu0 0
    %2767 = vmatprep.subr.bf16.mxu0 0
    %2768 = vmatpush1.bf16.msra.mxu0 0
    %2769 = vmatprep.subr.bf16.mxu0 0
    %2770 = vmatpush1.bf16.msra.mxu0 0
    %2771 = vmatprep.subr.bf16.mxu0 0
    %2772 = vmatpush1.bf16.msra.mxu0 0
    %2773 = vmatprep.subr.bf16.mxu0 0
    %2774 = vmatpush1.bf16.msra.mxu0 0
    %2775 = vmatprep.subr.bf16.mxu0 0
    %2776 = vmatpush1.bf16.msra.mxu0 0
    %2777 = vmatprep.subr.bf16.mxu0 0
    %2778 = vmatpush1.bf16.msra.mxu0 0
    %2779 = vmatprep.subr.bf16.mxu0 0
    %2780 = vmatpush1.bf16.msra.mxu0 0
    %2781 = vmatprep.subr.bf16.mxu0 0
    %2782 = vmatpush1.bf16.msra.mxu0 0
    %2783 = vmatprep.subr.bf16.mxu0 0
    %2784 = vmatpush1.bf16.msra.mxu0 0
    %2785 = vmatprep.subr.bf16.mxu0 0
    %2786 = vmatpush1.bf16.msra.mxu0 0
    %2787 = vmatprep.subr.bf16.mxu0 0
    %2788 = vmatpush1.bf16.msra.mxu0 0
    %2789 = vmatprep.subr.bf16.mxu0 0
    %2790 = vmatpush1.bf16.msra.mxu0 0
    %2791 = vmatprep.subr.bf16.mxu0 0
    %2792 = vmatpush1.bf16.msra.mxu0 0
    %2793 = vmatprep.mubr.bf16.mxu0 0
    %2794 = vmatmul.mubr.bf16.gmra.mrb[0].mxu0 %v2756
    %v2795 = vpop.f32.mrb[0].mxu0
    %v2796 = vadd.f32 0.0, %v2795
    %v2797 = vpop.f32.mrb[0].mxu0
    %v2798 = vpop.f32.mrb[0].mxu0
    %v2799 = vpop.f32.mrb[0].mxu0
    %2800 = vdwg.mxu0
    %2801 = vrot.lane.b32.xlu0 %v957, 64
    %v2802 = vpop.permute.xlu0 %2801
    %v2804 = vsel %vm850, %v2746, 0
    %v2807 = vsel %vm1484, %v2802, 0
    %2809 = vmatprep.subr.bf16.mxu0 0
    %2810 = vmatpush1.bf16.msra.mxu0 %v2807
    %2811 = vmatprep.subr.bf16.mxu0 0
    %2812 = vmatpush1.bf16.msra.mxu0 0
    %2813 = vmatprep.subr.bf16.mxu0 0
    %2814 = vmatpush1.bf16.msra.mxu0 0
    %2815 = vmatprep.subr.bf16.mxu0 0
    %2816 = vmatpush1.bf16.msra.mxu0 0
    %2817 = vmatprep.subr.bf16.mxu0 0
    %2818 = vmatpush1.bf16.msra.mxu0 0
    %2819 = vmatprep.subr.bf16.mxu0 0
    %2820 = vmatpush1.bf16.msra.mxu0 0
    %2821 = vmatprep.subr.bf16.mxu0 0
    %2822 = vmatpush1.bf16.msra.mxu0 0
    %2823 = vmatprep.subr.bf16.mxu0 0
    %2824 = vmatpush1.bf16.msra.mxu0 0
    %2825 = vmatprep.subr.bf16.mxu0 0
    %2826 = vmatpush1.bf16.msra.mxu0 0
    %2827 = vmatprep.subr.bf16.mxu0 0
    %2828 = vmatpush1.bf16.msra.mxu0 0
    %2829 = vmatprep.subr.bf16.mxu0 0
    %2830 = vmatpush1.bf16.msra.mxu0 0
    %2831 = vmatprep.subr.bf16.mxu0 0
    %2832 = vmatpush1.bf16.msra.mxu0 0
    %2833 = vmatprep.subr.bf16.mxu0 0
    %2834 = vmatpush1.bf16.msra.mxu0 0
    %2835 = vmatprep.subr.bf16.mxu0 0
    %2836 = vmatpush1.bf16.msra.mxu0 0
    %2837 = vmatprep.subr.bf16.mxu0 0
    %2838 = vmatpush1.bf16.msra.mxu0 0
    %2839 = vmatprep.subr.bf16.mxu0 0
    %2840 = vmatpush1.bf16.msra.mxu0 0
    %2841 = vmatprep.mubr.bf16.mxu0 0
    %2842 = vmatmul.mubr.bf16.gmra.mrb[0].mxu0 %v2804
    %v2843 = vpop.f32.mrb[0].mxu0
    %v2844 = vadd.f32 0.0, %v2843
    %v2845 = vpop.f32.mrb[0].mxu0
    %v2846 = vpop.f32.mrb[0].mxu0
    %v2847 = vpop.f32.mrb[0].mxu0
    %2848 = vdwg.mxu0
    %2849 = vrot.lane.b32.xlu0 %v958, 64
    %v2850 = vpop.permute.xlu0 %2849
    %v2852 = vsel %vm850, %v2747, 0
    %v2855 = vsel %vm1484, %v2850, 0
    %2857 = vmatprep.subr.bf16.mxu0 0
    %2858 = vmatpush1.bf16.msra.mxu0 %v2855
    %2859 = vmatprep.subr.bf16.mxu0 0
    %2860 = vmatpush1.bf16.msra.mxu0 0
    %2861 = vmatprep.subr.bf16.mxu0 0
    %2862 = vmatpush1.bf16.msra.mxu0 0
    %2863 = vmatprep.subr.bf16.mxu0 0
    %2864 = vmatpush1.bf16.msra.mxu0 0
    %2865 = vmatprep.subr.bf16.mxu0 0
    %2866 = vmatpush1.bf16.msra.mxu0 0
    %2867 = vmatprep.subr.bf16.mxu0 0
    %2868 = vmatpush1.bf16.msra.mxu0 0
    %2869 = vmatprep.subr.bf16.mxu0 0
    %2870 = vmatpush1.bf16.msra.mxu0 0
    %2871 = vmatprep.subr.bf16.mxu0 0
    %2872 = vmatpush1.bf16.msra.mxu0 0
    %2873 = vmatprep.subr.bf16.mxu0 0
    %2874 = vmatpush1.bf16.msra.mxu0 0
    %2875 = vmatprep.subr.bf16.mxu0 0
    %2876 = vmatpush1.bf16.msra.mxu0 0
    %2877 = vmatprep.subr.bf16.mxu0 0
    %2878 = vmatpush1.bf16.msra.mxu0 0
    %2879 = vmatprep.subr.bf16.mxu0 0
    %2880 = vmatpush1.bf16.msra.mxu0 0
    %2881 = vmatprep.subr.bf16.mxu0 0
    %2882 = vmatpush1.bf16.msra.mxu0 0
    %2883 = vmatprep.subr.bf16.mxu0 0
    %2884 = vmatpush1.bf16.msra.mxu0 0
    %2885 = vmatprep.subr.bf16.mxu0 0
    %2886 = vmatpush1.bf16.msra.mxu0 0
    %2887 = vmatprep.subr.bf16.mxu0 0
    %2888 = vmatpush1.bf16.msra.mxu0 0
    %2889 = vmatprep.mubr.bf16.mxu0 0
    %2890 = vmatmul.mubr.bf16.gmra.mrb[0].mxu0 %v2852
    %v2891 = vpop.f32.mrb[0].mxu0
    %v2892 = vadd.f32 0.0, %v2891
    %v2893 = vpop.f32.mrb[0].mxu0
    %v2894 = vpop.f32.mrb[0].mxu0
    %v2895 = vpop.f32.mrb[0].mxu0
    %2896 = vdwg.mxu0
    %2897 = vrot.lane.b32.xlu0 %v959, 64
    %v2898 = vpop.permute.xlu0 %2897
    %v2900 = vsel %vm850, %v2748, 0
    %v2903 = vsel %vm1484, %v2898, 0
    %2905 = vmatprep.subr.bf16.mxu0 0
    %2906 = vmatpush1.bf16.msra.mxu0 %v2903
    %2907 = vmatprep.subr.bf16.mxu0 0
    %2908 = vmatpush1.bf16.msra.mxu0 0
    %2909 = vmatprep.subr.bf16.mxu0 0
    %2910 = vmatpush1.bf16.msra.mxu0 0
    %2911 = vmatprep.subr.bf16.mxu0 0
    %2912 = vmatpush1.bf16.msra.mxu0 0
    %2913 = vmatprep.subr.bf16.mxu0 0
    %2914 = vmatpush1.bf16.msra.mxu0 0
    %2915 = vmatprep.subr.bf16.mxu0 0
    %2916 = vmatpush1.bf16.msra.mxu0 0
    %2917 = vmatprep.subr.bf16.mxu0 0
    %2918 = vmatpush1.bf16.msra.mxu0 0
    %2919 = vmatprep.subr.bf16.mxu0 0
    %2920 = vmatpush1.bf16.msra.mxu0 0
    %2921 = vmatprep.subr.bf16.mxu0 0
    %2922 = vmatpush1.bf16.msra.mxu0 0
    %2923 = vmatprep.subr.bf16.mxu0 0
    %2924 = vmatpush1.bf16.msra.mxu0 0
    %2925 = vmatprep.subr.bf16.mxu0 0
    %2926 = vmatpush1.bf16.msra.mxu0 0
    %2927 = vmatprep.subr.bf16.mxu0 0
    %2928 = vmatpush1.bf16.msra.mxu0 0
    %2929 = vmatprep.subr.bf16.mxu0 0
    %2930 = vmatpush1.bf16.msra.mxu0 0
    %2931 = vmatprep.subr.bf16.mxu0 0
    %2932 = vmatpush1.bf16.msra.mxu0 0
    %2933 = vmatprep.subr.bf16.mxu0 0
    %2934 = vmatpush1.bf16.msra.mxu0 0
    %2935 = vmatprep.subr.bf16.mxu0 0
    %2936 = vmatpush1.bf16.msra.mxu0 0
    %2937 = vmatprep.mubr.bf16.mxu0 0
    %2938 = vmatmul.mubr.bf16.gmra.mrb[0].mxu0 %v2900
    %v2939 = vpop.f32.mrb[0].mxu0
    %v2940 = vadd.f32 0.0, %v2939
    %v2941 = vpop.f32.mrb[0].mxu0
    %v2942 = vpop.f32.mrb[0].mxu0
    %v2943 = vpop.f32.mrb[0].mxu0
    %2944 = vdwg.mxu0
    %2945 = vrot.lane.b32.xlu0 %v960, 64
    %v2946 = vpop.permute.xlu0 %2945
    %v2948 = vsel %vm850, %v2749, 0
    %v2951 = vsel %vm1484, %v2946, 0
    %2953 = vmatprep.subr.bf16.mxu0 0
    %2954 = vmatpush1.bf16.msra.mxu0 %v2951
    %2955 = vmatprep.subr.bf16.mxu0 0
    %2956 = vmatpush1.bf16.msra.mxu0 0
    %2957 = vmatprep.subr.bf16.mxu0 0
    %2958 = vmatpush1.bf16.msra.mxu0 0
    %2959 = vmatprep.subr.bf16.mxu0 0
    %2960 = vmatpush1.bf16.msra.mxu0 0
    %2961 = vmatprep.subr.bf16.mxu0 0
    %2962 = vmatpush1.bf16.msra.mxu0 0
    %2963 = vmatprep.subr.bf16.mxu0 0
    %2964 = vmatpush1.bf16.msra.mxu0 0
    %2965 = vmatprep.subr.bf16.mxu0 0
    %2966 = vmatpush1.bf16.msra.mxu0 0
    %2967 = vmatprep.subr.bf16.mxu0 0
    %2968 = vmatpush1.bf16.msra.mxu0 0
    %2969 = vmatprep.subr.bf16.mxu0 0
    %2970 = vmatpush1.bf16.msra.mxu0 0
    %2971 = vmatprep.subr.bf16.mxu0 0
    %2972 = vmatpush1.bf16.msra.mxu0 0
    %2973 = vmatprep.subr.bf16.mxu0 0
    %2974 = vmatpush1.bf16.msra.mxu0 0
    %2975 = vmatprep.subr.bf16.mxu0 0
    %2976 = vmatpush1.bf16.msra.mxu0 0
    %2977 = vmatprep.subr.bf16.mxu0 0
    %2978 = vmatpush1.bf16.msra.mxu0 0
    %2979 = vmatprep.subr.bf16.mxu0 0
    %2980 = vmatpush1.bf16.msra.mxu0 0
    %2981 = vmatprep.subr.bf16.mxu0 0
    %2982 = vmatpush1.bf16.msra.mxu0 0
    %2983 = vmatprep.subr.bf16.mxu0 0
    %2984 = vmatpush1.bf16.msra.mxu0 0
    %2985 = vmatprep.mubr.bf16.mxu0 0
    %2986 = vmatmul.mubr.bf16.gmra.mrb[0].mxu0 %v2948
    %v2987 = vpop.f32.mrb[0].mxu0
    %v2988 = vadd.f32 0.0, %v2987
    %v2989 = vpop.f32.mrb[0].mxu0
    %v2990 = vpop.f32.mrb[0].mxu0
    %v2991 = vpop.f32.mrb[0].mxu0
    %2992 = vdwg.mxu0
    %2993 = vrot.lane.b32.xlu0 %v961, 64
    %v2994 = vpop.permute.xlu0 %2993
    %v2996 = vsel %vm850, %v2750, 0
    %v2999 = vsel %vm1484, %v2994, 0
    %3001 = vmatprep.subr.bf16.mxu0 0
    %3002 = vmatpush1.bf16.msra.mxu0 %v2999
    %3003 = vmatprep.subr.bf16.mxu0 0
    %3004 = vmatpush1.bf16.msra.mxu0 0
    %3005 = vmatprep.subr.bf16.mxu0 0
    %3006 = vmatpush1.bf16.msra.mxu0 0
    %3007 = vmatprep.subr.bf16.mxu0 0
    %3008 = vmatpush1.bf16.msra.mxu0 0
    %3009 = vmatprep.subr.bf16.mxu0 0
    %3010 = vmatpush1.bf16.msra.mxu0 0
    %3011 = vmatprep.subr.bf16.mxu0 0
    %3012 = vmatpush1.bf16.msra.mxu0 0
    %3013 = vmatprep.subr.bf16.mxu0 0
    %3014 = vmatpush1.bf16.msra.mxu0 0
    %3015 = vmatprep.subr.bf16.mxu0 0
    %3016 = vmatpush1.bf16.msra.mxu0 0
    %3017 = vmatprep.subr.bf16.mxu0 0
    %3018 = vmatpush1.bf16.msra.mxu0 0
    %3019 = vmatprep.subr.bf16.mxu0 0
    %3020 = vmatpush1.bf16.msra.mxu0 0
    %3021 = vmatprep.subr.bf16.mxu0 0
    %3022 = vmatpush1.bf16.msra.mxu0 0
    %3023 = vmatprep.subr.bf16.mxu0 0
    %3024 = vmatpush1.bf16.msra.mxu0 0
    %3025 = vmatprep.subr.bf16.mxu0 0
    %3026 = vmatpush1.bf16.msra.mxu0 0
    %3027 = vmatprep.subr.bf16.mxu0 0
    %3028 = vmatpush1.bf16.msra.mxu0 0
    %3029 = vmatprep.subr.bf16.mxu0 0
    %3030 = vmatpush1.bf16.msra.mxu0 0
    %3031 = vmatprep.subr.bf16.mxu0 0
    %3032 = vmatpush1.bf16.msra.mxu0 0
    %3033 = vmatprep.mubr.bf16.mxu0 0
    %3034 = vmatmul.mubr.bf16.gmra.mrb[0].mxu0 %v2996
    %v3035 = vpop.f32.mrb[0].mxu0
    %v3036 = vadd.f32 0.0, %v3035
    %v3037 = vpop.f32.mrb[0].mxu0
    %v3038 = vpop.f32.mrb[0].mxu0
    %v3039 = vpop.f32.mrb[0].mxu0
    %3040 = vdwg.mxu0
    %3041 = vrot.lane.b32.xlu0 %v962, 64
    %v3042 = vpop.permute.xlu0 %3041
    %v3044 = vsel %vm850, %v2751, 0
    %v3047 = vsel %vm1484, %v3042, 0
    %3049 = vmatprep.subr.bf16.mxu0 0
    %3050 = vmatpush1.bf16.msra.mxu0 %v3047
    %3051 = vmatprep.subr.bf16.mxu0 0
    %3052 = vmatpush1.bf16.msra.mxu0 0
    %3053 = vmatprep.subr.bf16.mxu0 0
    %3054 = vmatpush1.bf16.msra.mxu0 0
    %3055 = vmatprep.subr.bf16.mxu0 0
    %3056 = vmatpush1.bf16.msra.mxu0 0
    %3057 = vmatprep.subr.bf16.mxu0 0
    %3058 = vmatpush1.bf16.msra.mxu0 0
    %3059 = vmatprep.subr.bf16.mxu0 0
    %3060 = vmatpush1.bf16.msra.mxu0 0
    %3061 = vmatprep.subr.bf16.mxu0 0
    %3062 = vmatpush1.bf16.msra.mxu0 0
    %3063 = vmatprep.subr.bf16.mxu0 0
    %3064 = vmatpush1.bf16.msra.mxu0 0
    %3065 = vmatprep.subr.bf16.mxu0 0
    %3066 = vmatpush1.bf16.msra.mxu0 0
    %3067 = vmatprep.subr.bf16.mxu0 0
    %3068 = vmatpush1.bf16.msra.mxu0 0
    %3069 = vmatprep.subr.bf16.mxu0 0
    %3070 = vmatpush1.bf16.msra.mxu0 0
    %3071 = vmatprep.subr.bf16.mxu0 0
    %3072 = vmatpush1.bf16.msra.mxu0 0
    %3073 = vmatprep.subr.bf16.mxu0 0
    %3074 = vmatpush1.bf16.msra.mxu0 0
    %3075 = vmatprep.subr.bf16.mxu0 0
    %3076 = vmatpush1.bf16.msra.mxu0 0
    %3077 = vmatprep.subr.bf16.mxu0 0
    %3078 = vmatpush1.bf16.msra.mxu0 0
    %3079 = vmatprep.subr.bf16.mxu0 0
    %3080 = vmatpush1.bf16.msra.mxu0 0
    %3081 = vmatprep.mubr.bf16.mxu0 0
    %3082 = vmatmul.mubr.bf16.gmra.mrb[0].mxu0 %v3044
    %v3083 = vpop.f32.mrb[0].mxu0
    %v3084 = vadd.f32 0.0, %v3083
    %v3085 = vpop.f32.mrb[0].mxu0
    %v3086 = vpop.f32.mrb[0].mxu0
    %v3087 = vpop.f32.mrb[0].mxu0
    %3088 = vdwg.mxu0
    %3089 = vrot.lane.b32.xlu0 %v963, 64
    %v3090 = vpop.permute.xlu0 %3089
    %v3092 = vsel %vm850, %v2752, 0
    %v3095 = vsel %vm1484, %v3090, 0
    %3097 = vmatprep.subr.bf16.mxu0 0
    %3098 = vmatpush1.bf16.msra.mxu0 %v3095
    %3099 = vmatprep.subr.bf16.mxu0 0
    %3100 = vmatpush1.bf16.msra.mxu0 0
    %3101 = vmatprep.subr.bf16.mxu0 0
    %3102 = vmatpush1.bf16.msra.mxu0 0
    %3103 = vmatprep.subr.bf16.mxu0 0
    %3104 = vmatpush1.bf16.msra.mxu0 0
    %3105 = vmatprep.subr.bf16.mxu0 0
    %3106 = vmatpush1.bf16.msra.mxu0 0
    %3107 = vmatprep.subr.bf16.mxu0 0
    %3108 = vmatpush1.bf16.msra.mxu0 0
    %3109 = vmatprep.subr.bf16.mxu0 0
    %3110 = vmatpush1.bf16.msra.mxu0 0
    %3111 = vmatprep.subr.bf16.mxu0 0
    %3112 = vmatpush1.bf16.msra.mxu0 0
    %3113 = vmatprep.subr.bf16.mxu0 0
    %3114 = vmatpush1.bf16.msra.mxu0 0
    %3115 = vmatprep.subr.bf16.mxu0 0
    %3116 = vmatpush1.bf16.msra.mxu0 0
    %3117 = vmatprep.subr.bf16.mxu0 0
    %3118 = vmatpush1.bf16.msra.mxu0 0
    %3119 = vmatprep.subr.bf16.mxu0 0
    %3120 = vmatpush1.bf16.msra.mxu0 0
    %3121 = vmatprep.subr.bf16.mxu0 0
    %3122 = vmatpush1.bf16.msra.mxu0 0
    %3123 = vmatprep.subr.bf16.mxu0 0
    %3124 = vmatpush1.bf16.msra.mxu0 0
    %3125 = vmatprep.subr.bf16.mxu0 0
    %3126 = vmatpush1.bf16.msra.mxu0 0
    %3127 = vmatprep.subr.bf16.mxu0 0
    %3128 = vmatpush1.bf16.msra.mxu0 0
    %3129 = vmatprep.mubr.bf16.mxu0 0
    %3130 = vmatmul.mubr.bf16.gmra.mrb[0].mxu0 %v3092
    %v3131 = vpop.f32.mrb[0].mxu0
    %v3132 = vadd.f32 0.0, %v3131
    %v3133 = vpop.f32.mrb[0].mxu0
    %v3134 = vpop.f32.mrb[0].mxu0
    %v3135 = vpop.f32.mrb[0].mxu0
    %3136 = vdwg.mxu0
    %v3137 = vadd.f32 %v1912, %v2796
    %v3138 = vadd.f32 %v1958, %v2844
    %v3139 = vadd.f32 %v2004, %v2892
    %v3140 = vadd.f32 %v2050, %v2940
    %v3141 = vadd.f32 %v2096, %v2988
    %v3142 = vadd.f32 %v2142, %v3036
    %v3143 = vadd.f32 %v2188, %v3084
    %v3144 = vadd.f32 %v2234, %v3132
    %v3145 = vld [vmem:[%s7] sm:$0x1]
    %v3147 = vlaneseq
    %v3148 = vshrl.u32 %v3147, 7
    %v3149 = vsub.s32 0, %v3148
    %v3150 = vrot.slane %v3145, %v3149
    %v3152 = vmul.f32 %v3137, %v3150
    %v3153 = vmul.f32 %v3138, %v3150
    %v3154 = vmul.f32 %v3139, %v3150
    %v3155 = vmul.f32 %v3140, %v3150
    %v3156 = vmul.f32 %v3141, %v3150
    %v3157 = vmul.f32 %v3142, %v3150
    %v3158 = vmul.f32 %v3143, %v3150
    %v3159 = vmul.f32 %v3144, %v3150
    %v3160 = vld [vmem:[%s8] sm:$0x1]
    %v3162 = vlaneseq
    %v3163 = vshrl.u32 %v3162, 7
    %v3164 = vsub.s32 0, %v3163
    %v3165 = vrot.slane %v3160, %v3164
    %v3167 = vadd.f32 %v3152, %v3165
    %v3168 = vadd.f32 %v3153, %v3165
    %v3169 = vadd.f32 %v3154, %v3165
    %v3170 = vadd.f32 %v3155, %v3165
    %v3171 = vadd.f32 %v3156, %v3165
    %v3172 = vadd.f32 %v3157, %v3165
    %v3173 = vadd.f32 %v3158, %v3165
    %v3174 = vadd.f32 %v3159, %v3165
    %v3175 = vadd.f32 %v3167, %v48
    %v3176 = vadd.f32 %v3168, %v49
    %v3177 = vadd.f32 %v3169, %v50
    %v3178 = vadd.f32 %v3170, %v51
    %v3179 = vadd.f32 %v3171, %v52
    %v3180 = vadd.f32 %v3172, %v53
    %v3181 = vadd.f32 %v3173, %v54
    %v3182 = vadd.f32 %v3174, %v55
    %v3183 = vmax.f32 %v3175, 0.0
    %v3184 = vmax.f32 %v3176, 0.0
    %v3185 = vmax.f32 %v3177, 0.0
    %v3186 = vmax.f32 %v3178, 0.0
    %v3187 = vmax.f32 %v3179, 0.0
    %v3188 = vmax.f32 %v3180, 0.0
    %v3189 = vmax.f32 %v3181, 0.0
    %v3190 = vmax.f32 %v3182, 0.0
    %3191 = vst.msk [vmem:[#allocation5] sm:$0xff] %vm56, %v3183
    %3192 = vst.msk [vmem:[#allocation5 + $0x8] sm:$0xff] %vm56, %v3184
    %3193 = vst.msk [vmem:[#allocation5 + $0x10] sm:$0xff] %vm56, %v3185
    %3194 = vst.msk [vmem:[#allocation5 + $0x18] sm:$0xff] %vm56, %v3186
    %3195 = vst.msk [vmem:[#allocation5 + $0x20] sm:$0xff] %vm56, %v3187
    %3196 = vst.msk [vmem:[#allocation5 + $0x28] sm:$0xff] %vm56, %v3188
    %3197 = vst.msk [vmem:[#allocation5 + $0x30] sm:$0xff] %vm56, %v3189
    %3198 = vst.msk [vmem:[#allocation5 + $0x38] sm:$0xff] %vm56, %v3190
    // Predicated region
    $region42: #{tpu_custom_call.1} parent=1 // pred_check
      _
    $region43: #{tpu_custom_call.1} parent=1 // pred_check_branch
      %3200 = sbr.rel (0) target = $region45
    $region44: #{tpu_custom_call.1} parent=1 // pred_region
      %s3202 = ssub.s32 1024, 1024
      %3203 = vsyncadd [#allocation4], %s3202
      %s3204 = sshll.u32 [#allocation5], 4
      %s3205 = int_to_ptr.vmem [resolvable:$true] %s3204
      %3210 = dma.vmem_to_hbm [thread:$0]  %s3205, 1024, %s9, [#allocation4], 128, 128, 8
    $region45: #{tpu_custom_call.1} parent=1 // pred_fallthru
      _
    // Predicated region
    $region46: #{tpu_custom_call.1} parent=1 // pred_check
      _
    $region47: #{tpu_custom_call.1} parent=1 // pred_check_branch
      %3212 = sbr.rel (0) target = $region49
    $region48: #{tpu_custom_call.1} parent=1 // pred_region
      %3213 = dma.done [#allocation4], 1024
    $region49: #{tpu_custom_call.1} parent=1 // pred_fallthru
      _
    %3214 = vsyncpa [#allocation3], 1
    %3215 = vsyncpa [#allocation4], 1

</llo_original>
